<compile_context>
chip_gen: v7x
topology: tpu7x:2x2x1
jax: 0.10.0
libtpu: 0.0.40
codegen_flags: <defaults>
</compile_context>

<pallas_src>
import math

import jax
import jax.numpy as jnp
from jax import lax
from jax.experimental import pallas as pl
from jax.experimental.pallas import tpu as pltpu


def _round_up(x, m):
    return ((x + m - 1) // m) * m


def _lrelu(v):
    # LeakyReLU(negative_slope=0.5), matching nn.LeakyReLU(0.5) in the module.
    return jnp.where(v > 0, v, 0.5 * v)


def _dot(v, w_ref):
    # bf16 operands into the MXU, f32 accumulate.  Elementwise math stays f32.
    return jnp.dot(v.astype(jnp.bfloat16), w_ref[...],
                   preferred_element_type=jnp.float32)


# ---------------------------------------------------------------------------
# Kernel: one decode step per grid point; weights VMEM-resident across steps.
# ---------------------------------------------------------------------------
def decoder_attn_full_kernel(
    # per-step inputs + initial hidden
    enc_ref, status_ref, hn_ref,
    # attn MLP
    aw1, ab1, aw2, ab2, aw3, ab3, aw4, ab4,
    # attn_combine MLP
    cw1, cb1, cw2, cb2, cw3, cb3, cw4, cb4,
    # BatchNorm1d(2H) affine
    bn_g, bn_b,
    # GRU packed weights/biases (gate order r, z, n along columns)
    wi, wh, bi, bh,
    # output linear
    wo, bo,
    # packed per-step output slab
    packed_ref,
    # carried hidden state (VMEM scratch)
    h_scr,
):
    t = pl.program_id(0)

    @pl.when(t == 0)
    def _():
        h_scr[...] = hn_ref[...]

    enc = enc_ref[0]          # (B, H) f32
    st = status_ref[0]        # (B, S) f32
    h = h_scr[...]            # (B, H) f32, carried across steps
    B, H = h.shape
    S = st.shape[1]
    OUT = bo.shape[1]
    K1 = aw1.shape[0]
    pack_w = packed_ref.shape[2]

    # --- attn MLP on cat([enc, h, status], dim=1) ---------------------------
    # Single fused first-layer matmul: lane-concat the inputs (zero-pad to
    # the 128-aligned contraction dim; the matching weight rows are zero).
    pad1 = K1 - (2 * H + S)
    parts = [enc, h, st]
    if pad1 > 0:
        parts.append(jnp.zeros((B, pad1), jnp.float32))
    x1 = jnp.concatenate(parts, axis=1)                 # (B, K1)

    a = _lrelu(_dot(x1, aw1) + ab1[...])
    a = _lrelu(_dot(a, aw2) + ab2[...])
    a = _lrelu(_dot(a, aw3) + ab3[...])
    a = _dot(a, aw4) + ab4[...]

    # softmax over features (dim=1), exact divide (user-visible output)
    m = jnp.max(a, axis=1, keepdims=True)
    e = jnp.exp(a - m)
    attn_w = e / jnp.sum(e, axis=1, keepdims=True)

    # attn_applied = attn_weights * encoderOutput
    attn_applied = attn_w * enc

    # --- BatchNorm1d on cat([enc, attn_applied], dim=1) ---------------------
    # Training-mode biased batch statistics, eps=1e-5.
    # TODO(synk): running_mean/running_var tracking (stateful) not implemented.
    cat2 = jnp.concatenate([enc, attn_applied], axis=1)          # (B, 2H)
    mu = jnp.mean(cat2, axis=0, keepdims=True)
    var = jnp.mean((cat2 - mu) * (cat2 - mu), axis=0, keepdims=True)
    cat2_n = (cat2 - mu) * lax.rsqrt(var + 1e-5) * bn_g[...] + bn_b[...]

    # --- attn_combine MLP, then ReLU ----------------------------------------
    c = _lrelu(_dot(cat2_n, cw1) + cb1[...])
    c = _lrelu(_dot(c, cw2) + cb2[...])
    c = _lrelu(_dot(c, cw3) + cb3[...])
    c = _dot(c, cw4) + cb4[...]
    gru_x = jnp.maximum(c, 0.0)

    # --- Single-step GRU (PyTorch semantics), 2 fused matmuls ---------------
    #   gi = x @ [Wir|Wiz|Win] + [bir|biz|bin]
    #   gh = h @ [Whr|Whz|Whn] + [bhr|bhz|bhn]
    #   r = sigmoid(gi_r + gh_r); z = sigmoid(gi_z + gh_z)
    #   n = tanh(gi_n + r * gh_n); h' = (1 - z) * n + z * h
    gi = _dot(gru_x, wi) + bi[...]
    gh = _dot(h, wh) + bh[...]
    r = jax.nn.sigmoid(gi[:, 0:H] + gh[:, 0:H])
    z = jax.nn.sigmoid(gi[:, H:2 * H] + gh[:, H:2 * H])
    n = jnp.tanh(gi[:, 2 * H:3 * H] + r * gh[:, 2 * H:3 * H])
    h_new = (1.0 - z) * n + z * h

    # carry hidden state to the next decode step
    h_scr[...] = h_new

    # output linear (.squeeze(1) handled by layout)
    out = _dot(h_new, wo) + bo[...]

    # --- single unmasked lane-dense store of [h_new | attn_w | out | pad] ---
    pad_out = pack_w - (2 * H + OUT)
    parts_o = [h_new, attn_w, out]
    if pad_out > 0:
        parts_o.append(jnp.zeros((B, pad_out), jnp.float32))
    packed_ref[...] = jnp.concatenate(parts_o, axis=1).reshape(1, B, pack_w)


# ---------------------------------------------------------------------------
# Parameter construction (deterministic, PyTorch-default-style uniform init)
# ---------------------------------------------------------------------------
def _linear_init(key, fan_in, fan_out):
    kw, kb = jax.random.split(key)
    bound = 1.0 / math.sqrt(fan_in)
    w = jax.random.uniform(kw, (fan_in, fan_out), jnp.float32, -bound, bound)
    b = jax.random.uniform(kb, (1, fan_out), jnp.float32, -bound, bound)
    return w, b


PARAM_ORDER = [
    "aw1", "ab1", "aw2", "ab2", "aw3", "ab3", "aw4", "ab4",
    "cw1", "cb1", "cw2", "cb2", "cw3", "cb3", "cw4", "cb4",
    "bn_g", "bn_b",
    "wi", "wh", "bi", "bh",
    "wo", "bo",
]


def make_params(key, status_size, hidden_size, output_size):
    H, S = hidden_size, status_size
    bf16 = jnp.bfloat16
    keys = jax.random.split(key, 10)
    p = {}

    # attn: Linear(2H+S,512) -> 512 -> 256 -> H.  First layer's contraction
    # dim is zero-padded up to a 128-aligned K (exact: padded rows are zero
    # and the kernel zero-pads the matching activation lanes).
    k1 = 2 * H + S
    k1_pad = _round_up(k1, 128)
    aw1, ab1 = _linear_init(keys[0], k1, 512)
    p["aw1"] = jnp.zeros((k1_pad, 512), jnp.float32).at[:k1].set(aw1).astype(bf16)
    p["ab1"] = ab1
    for i, (nw, nb, fi, fo) in enumerate(
            [("aw2", "ab2", 512, 512), ("aw3", "ab3", 512, 256),
             ("aw4", "ab4", 256, H)], start=1):
        w, b = _linear_init(keys[i], fi, fo)
        p[nw] = w.astype(bf16)
        p[nb] = b

    # attn_combine: Linear(2H,512) -> 512 -> 256 -> H (single fused cw1)
    cw1, cb1 = _linear_init(keys[4], 2 * H, 512)
    p["cw1"] = cw1.astype(bf16)
    p["cb1"] = cb1
    for i, (nw, nb, fi, fo) in enumerate(
            [("cw2", "cb2", 512, 512), ("cw3", "cb3", 512, 256),
             ("cw4", "cb4", 256, H)], start=5):
        w, b = _linear_init(keys[i], fi, fo)
        p[nw] = w.astype(bf16)
        p[nb] = b

    # BatchNorm1d(2H): gamma=1, beta=0 (PyTorch default)
    p["bn_g"] = jnp.ones((1, 2 * H), jnp.float32)
    p["bn_b"] = jnp.zeros((1, 2 * H), jnp.float32)

    # GRU weights packed per gate (r, z, n) along columns -> (H, 3H).
    bound = 1.0 / math.sqrt(H)
    gk = jax.random.split(keys[8], 12)
    ws = [jax.random.uniform(gk[i], (H, H), jnp.float32, -bound, bound)
          for i in range(6)]
    bs = [jax.random.uniform(gk[6 + i], (1, H), jnp.float32, -bound, bound)
          for i in range(6)]
    p["wi"] = jnp.concatenate(ws[0:3], axis=1).astype(bf16)
    p["wh"] = jnp.concatenate(ws[3:6], axis=1).astype(bf16)
    p["bi"] = jnp.concatenate(bs[0:3], axis=1)
    p["bh"] = jnp.concatenate(bs[3:6], axis=1)

    # out: Linear(H, outputSize)
    wo, bo = _linear_init(keys[9], H, output_size)
    p["wo"] = wo.astype(bf16)
    p["bo"] = bo
    return p


# ---------------------------------------------------------------------------
# pallas_call wrapper: fused T-step decode with weights resident in VMEM
# ---------------------------------------------------------------------------
@jax.jit
def _decode_steps(enc_seq, status_seq, h0, params):
    """enc_seq (T,B,H), status_seq (T,B,S), h0 (B,H) -> packed (T,B,pack_w)."""
    T, B, H = enc_seq.shape
    S = status_seq.shape[2]
    out_size = params["bo"].shape[1]
    pack_w = _round_up(2 * H + out_size, 128)   # lane-dense output slab

    const2 = lambda t: (0, 0)                   # weights: fetched once, resident
    in_specs = [
        pl.BlockSpec((1, B, H), lambda t: (t, 0, 0)),   # encoderOutput[t]
        pl.BlockSpec((1, B, S), lambda t: (t, 0, 0)),   # status[t]
        pl.BlockSpec((B, H), const2),                   # initial hidden
    ]
    for k in PARAM_ORDER:
        in_specs.append(pl.BlockSpec(params[k].shape, const2))

    out_specs = pl.BlockSpec((1, B, pack_w), lambda t: (t, 0, 0))

    args = [enc_seq, status_seq, h0] + [params[k] for k in PARAM_ORDER]

    return pl.pallas_call(
        decoder_attn_full_kernel,
        out_shape=jax.ShapeDtypeStruct((T, B, pack_w), jnp.float32),
        grid=(T,),
        in_specs=in_specs,
        out_specs=out_specs,
        scratch_shapes=[pltpu.VMEM((B, H), jnp.float32)],   # carried hidden
        compiler_params=pltpu.CompilerParams(
            dimension_semantics=("arbitrary",)),
    )(*args)


def decoder_attn_full(encoder_output, hn, status, params):
    """Single-step forward — matches DecoderAttnFull.forward.

    encoder_output: (B, H) f32;  hn: (1, B, H) f32;  status: (B, S) f32
    returns (output (B, outputSize), hn (1, B, H), attn_weights (B, H))
    """
    B, H = encoder_output.shape
    out_size = params["bo"].shape[1]
    packed = _decode_steps(encoder_output[None], status[None],
                           hn.reshape(B, H), params)
    h_new = packed[0, :, 0:H]
    attn_w = packed[0, :, H:2 * H]
    out = packed[0, :, 2 * H:2 * H + out_size]
    return out, h_new.reshape(1, B, H), attn_w


def decoder_attn_full_fused_decode(encoder_outputs, hn, statuses, params):
    """T fused decode steps (weights stay VMEM-resident across steps).

    encoder_outputs: (T, B, H);  hn: (1, B, H);  statuses: (T, B, S)
    returns (outputs (T, B, outputSize), hn (1, B, H), attn_weights (T, B, H))
    """
    T, B, H = encoder_outputs.shape
    out_size = params["bo"].shape[1]
    packed = _decode_steps(encoder_outputs, statuses, hn.reshape(B, H), params)
    outs = packed[:, :, 2 * H:2 * H + out_size]
    attn_ws = packed[:, :, H:2 * H]
    hn_final = packed[-1, :, 0:H].reshape(1, B, H)
    return outs, hn_final, attn_ws


# ---------------------------------------------------------------------------
# Main
# ---------------------------------------------------------------------------
if __name__ == "__main__":
    B = 8            # batch (multiple of 8 sublanes)
    HIDDEN = 32      # hiddenSize
    STATUS = 16      # statusSize
    OUT = 8          # outputSize
    T = 4            # fused decode steps to exercise the grid path
    # maxSeqLen / dropout_p are unused in forward

    key = jax.random.PRNGKey(0)
    k_enc, k_hn, k_st, k_par = jax.random.split(key, 4)

    enc_seq = jax.random.normal(k_enc, (T, B, HIDDEN), jnp.float32)
    hn0 = jax.random.normal(k_hn, (1, B, HIDDEN), jnp.float32)
    st_seq = jax.random.normal(k_st, (T, B, STATUS), jnp.float32)

    params = make_params(k_par, STATUS, HIDDEN, OUT)

    # 1) single-step forward (the PyTorch module's forward, T=1 grid)
    out, hn_new, attn_w = decoder_attn_full(enc_seq[0], hn0, st_seq[0], params)
    jax.block_until_ready((out, hn_new, attn_w))

    assert out.shape == (B, OUT)
    assert hn_new.shape == (1, B, HIDDEN)
    assert attn_w.shape == (B, HIDDEN)
    assert bool(jnp.all(jnp.isfinite(out)))
    assert bool(jnp.all(jnp.isfinite(hn_new)))
    assert bool(jnp.all(jnp.isfinite(attn_w)))
    # exact softmax divide -> rows sum to 1 within f32 rounding
    assert bool(jnp.allclose(jnp.sum(attn_w, axis=1), 1.0, atol=1e-3))

    # 2) fused T-step decode (weights DMA'd once, hidden carried in VMEM);
    #    must agree with T sequential single-step calls.
    outs_f, hn_f, attn_f = decoder_attn_full_fused_decode(
        enc_seq, hn0, st_seq, params)
    jax.block_until_ready((outs_f, hn_f, attn_f))
    assert outs_f.shape == (T, B, OUT)
    assert attn_f.shape == (T, B, HIDDEN)

    hn_cur = hn0
    for t in range(T):
        o_t, hn_cur, a_t = decoder_attn_full(enc_seq[t], hn_cur, st_seq[t],
                                             params)
        assert bool(jnp.allclose(o_t, outs_f[t], atol=2e-3, rtol=2e-3))
        assert bool(jnp.allclose(a_t, attn_f[t], atol=2e-3, rtol=2e-3))
    assert bool(jnp.allclose(hn_cur, hn_f, atol=2e-3, rtol=2e-3))

    print("KERNEL_OK")
</pallas_src>

<mosaic_0001>
module attributes {stable_mosaic.version = 11 : i64} {
  func.func @decoder_attn_full_kernel(%arg0: i32, %arg1: memref<1x8x32xf32, #tpu.memory_space<vmem>>, %arg2: memref<1x8x16xf32, #tpu.memory_space<vmem>>, %arg3: memref<8x32xf32, #tpu.memory_space<vmem>>, %arg4: memref<128x512xbf16, #tpu.memory_space<vmem>>, %arg5: memref<1x512xf32, #tpu.memory_space<vmem>>, %arg6: memref<512x512xbf16, #tpu.memory_space<vmem>>, %arg7: memref<1x512xf32, #tpu.memory_space<vmem>>, %arg8: memref<512x256xbf16, #tpu.memory_space<vmem>>, %arg9: memref<1x256xf32, #tpu.memory_space<vmem>>, %arg10: memref<256x32xbf16, #tpu.memory_space<vmem>>, %arg11: memref<1x32xf32, #tpu.memory_space<vmem>>, %arg12: memref<64x512xbf16, #tpu.memory_space<vmem>>, %arg13: memref<1x512xf32, #tpu.memory_space<vmem>>, %arg14: memref<512x512xbf16, #tpu.memory_space<vmem>>, %arg15: memref<1x512xf32, #tpu.memory_space<vmem>>, %arg16: memref<512x256xbf16, #tpu.memory_space<vmem>>, %arg17: memref<1x256xf32, #tpu.memory_space<vmem>>, %arg18: memref<256x32xbf16, #tpu.memory_space<vmem>>, %arg19: memref<1x32xf32, #tpu.memory_space<vmem>>, %arg20: memref<1x64xf32, #tpu.memory_space<vmem>>, %arg21: memref<1x64xf32, #tpu.memory_space<vmem>>, %arg22: memref<32x96xbf16, #tpu.memory_space<vmem>>, %arg23: memref<32x96xbf16, #tpu.memory_space<vmem>>, %arg24: memref<1x96xf32, #tpu.memory_space<vmem>>, %arg25: memref<1x96xf32, #tpu.memory_space<vmem>>, %arg26: memref<32x8xbf16, #tpu.memory_space<vmem>>, %arg27: memref<1x8xf32, #tpu.memory_space<vmem>>, %arg28: memref<1x8x128xf32, #tpu.memory_space<vmem>>, %arg29: memref<8x32xf32, #tpu.memory_space<vmem>>) attributes {dimension_semantics = [#tpu.dimension_semantics<arbitrary>], iteration_bounds = array<i64: 1>, scalar_prefetch = 0 : i64, scratch_operands = 1 : i64, tpu.core_type = #tpu.core_type<tc>, window_params = [{transform_indices = @transform_0, window_bounds = array<i64: 1, 8, 32>}, {transform_indices = @transform_1, window_bounds = array<i64: 1, 8, 16>}, {pipeline_mode = #tpu.pipeline_mode<synchronous>, transform_indices = @transform_2, window_bounds = array<i64: 8, 32>}, {pipeline_mode = #tpu.pipeline_mode<synchronous>, transform_indices = @transform_3, window_bounds = array<i64: 128, 512>}, {pipeline_mode = #tpu.pipeline_mode<synchronous>, transform_indices = @transform_4, window_bounds = array<i64: 1, 512>}, {pipeline_mode = #tpu.pipeline_mode<synchronous>, transform_indices = @transform_5, window_bounds = array<i64: 512, 512>}, {pipeline_mode = #tpu.pipeline_mode<synchronous>, transform_indices = @transform_6, window_bounds = array<i64: 1, 512>}, {pipeline_mode = #tpu.pipeline_mode<synchronous>, transform_indices = @transform_7, window_bounds = array<i64: 512, 256>}, {pipeline_mode = #tpu.pipeline_mode<synchronous>, transform_indices = @transform_8, window_bounds = array<i64: 1, 256>}, {pipeline_mode = #tpu.pipeline_mode<synchronous>, transform_indices = @transform_9, window_bounds = array<i64: 256, 32>}, {pipeline_mode = #tpu.pipeline_mode<synchronous>, transform_indices = @transform_10, window_bounds = array<i64: 1, 32>}, {pipeline_mode = #tpu.pipeline_mode<synchronous>, transform_indices = @transform_11, window_bounds = array<i64: 64, 512>}, {pipeline_mode = #tpu.pipeline_mode<synchronous>, transform_indices = @transform_12, window_bounds = array<i64: 1, 512>}, {pipeline_mode = #tpu.pipeline_mode<synchronous>, transform_indices = @transform_13, window_bounds = array<i64: 512, 512>}, {pipeline_mode = #tpu.pipeline_mode<synchronous>, transform_indices = @transform_14, window_bounds = array<i64: 1, 512>}, {pipeline_mode = #tpu.pipeline_mode<synchronous>, transform_indices = @transform_15, window_bounds = array<i64: 512, 256>}, {pipeline_mode = #tpu.pipeline_mode<synchronous>, transform_indices = @transform_16, window_bounds = array<i64: 1, 256>}, {pipeline_mode = #tpu.pipeline_mode<synchronous>, transform_indices = @transform_17, window_bounds = array<i64: 256, 32>}, {pipeline_mode = #tpu.pipeline_mode<synchronous>, transform_indices = @transform_18, window_bounds = array<i64: 1, 32>}, {pipeline_mode = #tpu.pipeline_mode<synchronous>, transform_indices = @transform_19, window_bounds = array<i64: 1, 64>}, {pipeline_mode = #tpu.pipeline_mode<synchronous>, transform_indices = @transform_20, window_bounds = array<i64: 1, 64>}, {pipeline_mode = #tpu.pipeline_mode<synchronous>, transform_indices = @transform_21, window_bounds = array<i64: 32, 96>}, {pipeline_mode = #tpu.pipeline_mode<synchronous>, transform_indices = @transform_22, window_bounds = array<i64: 32, 96>}, {pipeline_mode = #tpu.pipeline_mode<synchronous>, transform_indices = @transform_23, window_bounds = array<i64: 1, 96>}, {pipeline_mode = #tpu.pipeline_mode<synchronous>, transform_indices = @transform_24, window_bounds = array<i64: 1, 96>}, {pipeline_mode = #tpu.pipeline_mode<synchronous>, transform_indices = @transform_25, window_bounds = array<i64: 32, 8>}, {pipeline_mode = #tpu.pipeline_mode<synchronous>, transform_indices = @transform_26, window_bounds = array<i64: 1, 8>}, {transform_indices = @transform_27, window_bounds = array<i64: 1, 8, 128>}]} {
    %c0_i32 = arith.constant 0 : i32
    %0 = arith.cmpi eq, %arg0, %c0_i32 : i32
    %1 = arith.extui %0 : i1 to i32
    %c0_i32_0 = arith.constant 0 : i32
    %2 = arith.cmpi ne, %1, %c0_i32_0 : i32
    scf.if %2 {
      %c0_96 = arith.constant 0 : index
      %c0_97 = arith.constant 0 : index
      %176 = vector.load %arg3[%c0_96, %c0_97] : memref<8x32xf32, #tpu.memory_space<vmem>>, vector<8x32xf32>
      %c0_98 = arith.constant 0 : index
      %c0_99 = arith.constant 0 : index
      %177 = vector.load %arg29[%c0_98, %c0_99] : memref<8x32xf32, #tpu.memory_space<vmem>>, vector<8x32xf32>
      tpu.vector_store %arg29[%c0_98, %c0_99], %176 {strides = array<i32>} : memref<8x32xf32, #tpu.memory_space<vmem>>, vector<8x32xf32>,
    } else {
    }
    %c0 = arith.constant 0 : index
    %c0_1 = arith.constant 0 : index
    %c0_2 = arith.constant 0 : index
    %3 = vector.load %arg1[%c0, %c0_1, %c0_2] : memref<1x8x32xf32, #tpu.memory_space<vmem>>, vector<1x8x32xf32>
    %4 = vector.shape_cast %3 : vector<1x8x32xf32> to vector<8x32xf32>
    %c0_3 = arith.constant 0 : index
    %c0_4 = arith.constant 0 : index
    %c0_5 = arith.constant 0 : index
    %5 = vector.load %arg2[%c0_3, %c0_4, %c0_5] : memref<1x8x16xf32, #tpu.memory_space<vmem>>, vector<1x8x16xf32>
    %6 = vector.shape_cast %5 : vector<1x8x16xf32> to vector<8x16xf32>
    %c0_6 = arith.constant 0 : index
    %c0_7 = arith.constant 0 : index
    %7 = vector.load %arg29[%c0_6, %c0_7] : memref<8x32xf32, #tpu.memory_space<vmem>>, vector<8x32xf32>
    %cst = arith.constant 0.000000e+00 : f32
    %8 = vector.broadcast %cst : f32 to vector<8x48xf32>
    %9 = tpu.concatenate %4, %7, %6, %8 in 1 : vector<8x32xf32>, vector<8x32xf32>, vector<8x16xf32>, vector<8x48xf32> -> vector<8x128xf32>
    %10 = arith.truncf %9 : vector<8x128xf32> to vector<8x128xbf16>
    %c0_8 = arith.constant 0 : index
    %c0_9 = arith.constant 0 : index
    %11 = vector.load %arg4[%c0_8, %c0_9] : memref<128x512xbf16, #tpu.memory_space<vmem>>, vector<128x512xbf16>
    %cst_10 = arith.constant dense<0.000000e+00> : vector<8x512xf32>
    %12 = tpu.matmul %10, %11, %cst_10 {dimension_numbers = #tpu.dot_dimension_numbers<[1], [0], [0], [1], [0, 0, 1, 1], [], []>} : vector<8x128xbf16>, vector<128x512xbf16>, vector<8x512xf32> -> vector<8x512xf32>
    %c0_11 = arith.constant 0 : index
    %c0_12 = arith.constant 0 : index
    %13 = vector.load %arg5[%c0_11, %c0_12] : memref<1x512xf32, #tpu.memory_space<vmem>>, vector<1x512xf32>
    %14 = vector.broadcast %13 : vector<1x512xf32> to vector<8x512xf32>
    %15 = arith.addf %12, %14 : vector<8x512xf32>
    %cst_13 = arith.constant 0.000000e+00 : f32
    %16 = vector.broadcast %cst_13 : f32 to vector<8x512xf32>
    %17 = arith.cmpf ogt, %15, %16 : vector<8x512xf32>
    %cst_14 = arith.constant 5.000000e-01 : f32
    %18 = vector.broadcast %cst_14 : f32 to vector<8x512xf32>
    %19 = arith.mulf %18, %15 : vector<8x512xf32>
    %20 = arith.select %17, %15, %19 : vector<8x512xi1>, vector<8x512xf32>
    %21 = arith.truncf %20 : vector<8x512xf32> to vector<8x512xbf16>
    %c0_15 = arith.constant 0 : index
    %c0_16 = arith.constant 0 : index
    %22 = vector.load %arg6[%c0_15, %c0_16] : memref<512x512xbf16, #tpu.memory_space<vmem>>, vector<512x512xbf16>
    %cst_17 = arith.constant dense<0.000000e+00> : vector<8x512xf32>
    %23 = tpu.matmul %21, %22, %cst_17 {dimension_numbers = #tpu.dot_dimension_numbers<[1], [0], [0], [1], [0, 0, 1, 1], [], []>} : vector<8x512xbf16>, vector<512x512xbf16>, vector<8x512xf32> -> vector<8x512xf32>
    %c0_18 = arith.constant 0 : index
    %c0_19 = arith.constant 0 : index
    %24 = vector.load %arg7[%c0_18, %c0_19] : memref<1x512xf32, #tpu.memory_space<vmem>>, vector<1x512xf32>
    %25 = vector.broadcast %24 : vector<1x512xf32> to vector<8x512xf32>
    %26 = arith.addf %23, %25 : vector<8x512xf32>
    %cst_20 = arith.constant 0.000000e+00 : f32
    %27 = vector.broadcast %cst_20 : f32 to vector<8x512xf32>
    %28 = arith.cmpf ogt, %26, %27 : vector<8x512xf32>
    %cst_21 = arith.constant 5.000000e-01 : f32
    %29 = vector.broadcast %cst_21 : f32 to vector<8x512xf32>
    %30 = arith.mulf %29, %26 : vector<8x512xf32>
    %31 = arith.select %28, %26, %30 : vector<8x512xi1>, vector<8x512xf32>
    %32 = arith.truncf %31 : vector<8x512xf32> to vector<8x512xbf16>
    %c0_22 = arith.constant 0 : index
    %c0_23 = arith.constant 0 : index
    %33 = vector.load %arg8[%c0_22, %c0_23] : memref<512x256xbf16, #tpu.memory_space<vmem>>, vector<512x256xbf16>
    %cst_24 = arith.constant dense<0.000000e+00> : vector<8x256xf32>
    %34 = tpu.matmul %32, %33, %cst_24 {dimension_numbers = #tpu.dot_dimension_numbers<[1], [0], [0], [1], [0, 0, 1, 1], [], []>} : vector<8x512xbf16>, vector<512x256xbf16>, vector<8x256xf32> -> vector<8x256xf32>
    %c0_25 = arith.constant 0 : index
    %c0_26 = arith.constant 0 : index
    %35 = vector.load %arg9[%c0_25, %c0_26] : memref<1x256xf32, #tpu.memory_space<vmem>>, vector<1x256xf32>
    %36 = vector.broadcast %35 : vector<1x256xf32> to vector<8x256xf32>
    %37 = arith.addf %34, %36 : vector<8x256xf32>
    %cst_27 = arith.constant 0.000000e+00 : f32
    %38 = vector.broadcast %cst_27 : f32 to vector<8x256xf32>
    %39 = arith.cmpf ogt, %37, %38 : vector<8x256xf32>
    %cst_28 = arith.constant 5.000000e-01 : f32
    %40 = vector.broadcast %cst_28 : f32 to vector<8x256xf32>
    %41 = arith.mulf %40, %37 : vector<8x256xf32>
    %42 = arith.select %39, %37, %41 : vector<8x256xi1>, vector<8x256xf32>
    %43 = arith.truncf %42 : vector<8x256xf32> to vector<8x256xbf16>
    %c0_29 = arith.constant 0 : index
    %c0_30 = arith.constant 0 : index
    %44 = vector.load %arg10[%c0_29, %c0_30] : memref<256x32xbf16, #tpu.memory_space<vmem>>, vector<256x32xbf16>
    %cst_31 = arith.constant dense<0.000000e+00> : vector<8x32xf32>
    %45 = tpu.matmul %43, %44, %cst_31 {dimension_numbers = #tpu.dot_dimension_numbers<[1], [0], [0], [1], [0, 0, 1, 1], [], []>} : vector<8x256xbf16>, vector<256x32xbf16>, vector<8x32xf32> -> vector<8x32xf32>
    %c0_32 = arith.constant 0 : index
    %c0_33 = arith.constant 0 : index
    %46 = vector.load %arg11[%c0_32, %c0_33] : memref<1x32xf32, #tpu.memory_space<vmem>>, vector<1x32xf32>
    %47 = vector.broadcast %46 : vector<1x32xf32> to vector<8x32xf32>
    %48 = arith.addf %45, %47 : vector<8x32xf32>
    %cst_34 = arith.constant dense<0xFF800000> : vector<8xf32>
    %49 = vector.multi_reduction <maximumf>, %48, %cst_34 [1] : vector<8x32xf32> to vector<8xf32>
    %50 = vector.shape_cast %49 : vector<8xf32> to vector<8x1xf32>
    %51 = vector.broadcast %50 : vector<8x1xf32> to vector<8x32xf32>
    %52 = arith.subf %48, %51 : vector<8x32xf32>
    %53 = math.exp %52 : vector<8x32xf32>
    %cst_35 = arith.constant dense<0.000000e+00> : vector<8xf32>
    %54 = vector.multi_reduction <add>, %53, %cst_35 [1] : vector<8x32xf32> to vector<8xf32>
    %55 = vector.shape_cast %54 : vector<8xf32> to vector<8x1xf32>
    %56 = vector.broadcast %55 : vector<8x1xf32> to vector<8x32xf32>
    %57 = arith.divf %53, %56 : vector<8x32xf32>
    %58 = arith.mulf %57, %4 : vector<8x32xf32>
    %59 = tpu.concatenate %4, %58 in 1 : vector<8x32xf32>, vector<8x32xf32> -> vector<8x64xf32>
    %cst_36 = arith.constant dense<0.000000e+00> : vector<64xf32>
    %60 = vector.multi_reduction <add>, %59, %cst_36 [0] : vector<8x64xf32> to vector<64xf32>
    %61 = vector.shape_cast %60 : vector<64xf32> to vector<1x64xf32>
    %cst_37 = arith.constant 8.000000e+00 : f32
    %62 = vector.broadcast %cst_37 : f32 to vector<1x64xf32>
    %63 = arith.divf %61, %62 : vector<1x64xf32>
    %64 = vector.broadcast %63 : vector<1x64xf32> to vector<8x64xf32>
    %65 = arith.subf %59, %64 : vector<8x64xf32>
    %66 = vector.broadcast %63 : vector<1x64xf32> to vector<8x64xf32>
    %67 = arith.subf %59, %66 : vector<8x64xf32>
    %68 = arith.mulf %65, %67 : vector<8x64xf32>
    %cst_38 = arith.constant dense<0.000000e+00> : vector<64xf32>
    %69 = vector.multi_reduction <add>, %68, %cst_38 [0] : vector<8x64xf32> to vector<64xf32>
    %70 = vector.shape_cast %69 : vector<64xf32> to vector<1x64xf32>
    %cst_39 = arith.constant 8.000000e+00 : f32
    %71 = vector.broadcast %cst_39 : f32 to vector<1x64xf32>
    %72 = arith.divf %70, %71 : vector<1x64xf32>
    %73 = vector.broadcast %63 : vector<1x64xf32> to vector<8x64xf32>
    %74 = arith.subf %59, %73 : vector<8x64xf32>
    %cst_40 = arith.constant 9.99999974E-6 : f32
    %75 = vector.broadcast %cst_40 : f32 to vector<1x64xf32>
    %76 = arith.addf %72, %75 : vector<1x64xf32>
    %77 = math.rsqrt %76 : vector<1x64xf32>
    %78 = vector.broadcast %77 : vector<1x64xf32> to vector<8x64xf32>
    %79 = arith.mulf %74, %78 : vector<8x64xf32>
    %c0_41 = arith.constant 0 : index
    %c0_42 = arith.constant 0 : index
    %80 = vector.load %arg20[%c0_41, %c0_42] : memref<1x64xf32, #tpu.memory_space<vmem>>, vector<1x64xf32>
    %81 = vector.broadcast %80 : vector<1x64xf32> to vector<8x64xf32>
    %82 = arith.mulf %79, %81 : vector<8x64xf32>
    %c0_43 = arith.constant 0 : index
    %c0_44 = arith.constant 0 : index
    %83 = vector.load %arg21[%c0_43, %c0_44] : memref<1x64xf32, #tpu.memory_space<vmem>>, vector<1x64xf32>
    %84 = vector.broadcast %83 : vector<1x64xf32> to vector<8x64xf32>
    %85 = arith.addf %82, %84 : vector<8x64xf32>
    %86 = arith.truncf %85 : vector<8x64xf32> to vector<8x64xbf16>
    %c0_45 = arith.constant 0 : index
    %c0_46 = arith.constant 0 : index
    %87 = vector.load %arg12[%c0_45, %c0_46] : memref<64x512xbf16, #tpu.memory_space<vmem>>, vector<64x512xbf16>
    %cst_47 = arith.constant dense<0.000000e+00> : vector<8x512xf32>
    %88 = tpu.matmul %86, %87, %cst_47 {dimension_numbers = #tpu.dot_dimension_numbers<[1], [0], [0], [1], [0, 0, 1, 1], [], []>} : vector<8x64xbf16>, vector<64x512xbf16>, vector<8x512xf32> -> vector<8x512xf32>
    %c0_48 = arith.constant 0 : index
    %c0_49 = arith.constant 0 : index
    %89 = vector.load %arg13[%c0_48, %c0_49] : memref<1x512xf32, #tpu.memory_space<vmem>>, vector<1x512xf32>
    %90 = vector.broadcast %89 : vector<1x512xf32> to vector<8x512xf32>
    %91 = arith.addf %88, %90 : vector<8x512xf32>
    %cst_50 = arith.constant 0.000000e+00 : f32
    %92 = vector.broadcast %cst_50 : f32 to vector<8x512xf32>
    %93 = arith.cmpf ogt, %91, %92 : vector<8x512xf32>
    %cst_51 = arith.constant 5.000000e-01 : f32
    %94 = vector.broadcast %cst_51 : f32 to vector<8x512xf32>
    %95 = arith.mulf %94, %91 : vector<8x512xf32>
    %96 = arith.select %93, %91, %95 : vector<8x512xi1>, vector<8x512xf32>
    %97 = arith.truncf %96 : vector<8x512xf32> to vector<8x512xbf16>
    %c0_52 = arith.constant 0 : index
    %c0_53 = arith.constant 0 : index
    %98 = vector.load %arg14[%c0_52, %c0_53] : memref<512x512xbf16, #tpu.memory_space<vmem>>, vector<512x512xbf16>
    %cst_54 = arith.constant dense<0.000000e+00> : vector<8x512xf32>
    %99 = tpu.matmul %97, %98, %cst_54 {dimension_numbers = #tpu.dot_dimension_numbers<[1], [0], [0], [1], [0, 0, 1, 1], [], []>} : vector<8x512xbf16>, vector<512x512xbf16>, vector<8x512xf32> -> vector<8x512xf32>
    %c0_55 = arith.constant 0 : index
    %c0_56 = arith.constant 0 : index
    %100 = vector.load %arg15[%c0_55, %c0_56] : memref<1x512xf32, #tpu.memory_space<vmem>>, vector<1x512xf32>
    %101 = vector.broadcast %100 : vector<1x512xf32> to vector<8x512xf32>
    %102 = arith.addf %99, %101 : vector<8x512xf32>
    %cst_57 = arith.constant 0.000000e+00 : f32
    %103 = vector.broadcast %cst_57 : f32 to vector<8x512xf32>
    %104 = arith.cmpf ogt, %102, %103 : vector<8x512xf32>
    %cst_58 = arith.constant 5.000000e-01 : f32
    %105 = vector.broadcast %cst_58 : f32 to vector<8x512xf32>
    %106 = arith.mulf %105, %102 : vector<8x512xf32>
    %107 = arith.select %104, %102, %106 : vector<8x512xi1>, vector<8x512xf32>
    %108 = arith.truncf %107 : vector<8x512xf32> to vector<8x512xbf16>
    %c0_59 = arith.constant 0 : index
    %c0_60 = arith.constant 0 : index
    %109 = vector.load %arg16[%c0_59, %c0_60] : memref<512x256xbf16, #tpu.memory_space<vmem>>, vector<512x256xbf16>
    %cst_61 = arith.constant dense<0.000000e+00> : vector<8x256xf32>
    %110 = tpu.matmul %108, %109, %cst_61 {dimension_numbers = #tpu.dot_dimension_numbers<[1], [0], [0], [1], [0, 0, 1, 1], [], []>} : vector<8x512xbf16>, vector<512x256xbf16>, vector<8x256xf32> -> vector<8x256xf32>
    %c0_62 = arith.constant 0 : index
    %c0_63 = arith.constant 0 : index
    %111 = vector.load %arg17[%c0_62, %c0_63] : memref<1x256xf32, #tpu.memory_space<vmem>>, vector<1x256xf32>
    %112 = vector.broadcast %111 : vector<1x256xf32> to vector<8x256xf32>
    %113 = arith.addf %110, %112 : vector<8x256xf32>
    %cst_64 = arith.constant 0.000000e+00 : f32
    %114 = vector.broadcast %cst_64 : f32 to vector<8x256xf32>
    %115 = arith.cmpf ogt, %113, %114 : vector<8x256xf32>
    %cst_65 = arith.constant 5.000000e-01 : f32
    %116 = vector.broadcast %cst_65 : f32 to vector<8x256xf32>
    %117 = arith.mulf %116, %113 : vector<8x256xf32>
    %118 = arith.select %115, %113, %117 : vector<8x256xi1>, vector<8x256xf32>
    %119 = arith.truncf %118 : vector<8x256xf32> to vector<8x256xbf16>
    %c0_66 = arith.constant 0 : index
    %c0_67 = arith.constant 0 : index
    %120 = vector.load %arg18[%c0_66, %c0_67] : memref<256x32xbf16, #tpu.memory_space<vmem>>, vector<256x32xbf16>
    %cst_68 = arith.constant dense<0.000000e+00> : vector<8x32xf32>
    %121 = tpu.matmul %119, %120, %cst_68 {dimension_numbers = #tpu.dot_dimension_numbers<[1], [0], [0], [1], [0, 0, 1, 1], [], []>} : vector<8x256xbf16>, vector<256x32xbf16>, vector<8x32xf32> -> vector<8x32xf32>
    %c0_69 = arith.constant 0 : index
    %c0_70 = arith.constant 0 : index
    %122 = vector.load %arg19[%c0_69, %c0_70] : memref<1x32xf32, #tpu.memory_space<vmem>>, vector<1x32xf32>
    %123 = vector.broadcast %122 : vector<1x32xf32> to vector<8x32xf32>
    %124 = arith.addf %121, %123 : vector<8x32xf32>
    %cst_71 = arith.constant 0.000000e+00 : f32
    %125 = vector.broadcast %cst_71 : f32 to vector<8x32xf32>
    %126 = arith.maximumf %124, %125 : vector<8x32xf32>
    %127 = arith.truncf %126 : vector<8x32xf32> to vector<8x32xbf16>
    %c0_72 = arith.constant 0 : index
    %c0_73 = arith.constant 0 : index
    %128 = vector.load %arg22[%c0_72, %c0_73] : memref<32x96xbf16, #tpu.memory_space<vmem>>, vector<32x96xbf16>
    %cst_74 = arith.constant dense<0.000000e+00> : vector<8x96xf32>
    %129 = tpu.matmul %127, %128, %cst_74 {dimension_numbers = #tpu.dot_dimension_numbers<[1], [0], [0], [1], [0, 0, 1, 1], [], []>} : vector<8x32xbf16>, vector<32x96xbf16>, vector<8x96xf32> -> vector<8x96xf32>
    %c0_75 = arith.constant 0 : index
    %c0_76 = arith.constant 0 : index
    %130 = vector.load %arg24[%c0_75, %c0_76] : memref<1x96xf32, #tpu.memory_space<vmem>>, vector<1x96xf32>
    %131 = vector.broadcast %130 : vector<1x96xf32> to vector<8x96xf32>
    %132 = arith.addf %129, %131 : vector<8x96xf32>
    %133 = arith.truncf %7 : vector<8x32xf32> to vector<8x32xbf16>
    %c0_77 = arith.constant 0 : index
    %c0_78 = arith.constant 0 : index
    %134 = vector.load %arg23[%c0_77, %c0_78] : memref<32x96xbf16, #tpu.memory_space<vmem>>, vector<32x96xbf16>
    %cst_79 = arith.constant dense<0.000000e+00> : vector<8x96xf32>
    %135 = tpu.matmul %133, %134, %cst_79 {dimension_numbers = #tpu.dot_dimension_numbers<[1], [0], [0], [1], [0, 0, 1, 1], [], []>} : vector<8x32xbf16>, vector<32x96xbf16>, vector<8x96xf32> -> vector<8x96xf32>
    %c0_80 = arith.constant 0 : index
    %c0_81 = arith.constant 0 : index
    %136 = vector.load %arg25[%c0_80, %c0_81] : memref<1x96xf32, #tpu.memory_space<vmem>>, vector<1x96xf32>
    %137 = vector.broadcast %136 : vector<1x96xf32> to vector<8x96xf32>
    %138 = arith.addf %135, %137 : vector<8x96xf32>
    %139 = vector.extract_strided_slice %132 {offsets = [0, 0], sizes = [8, 32], strides = [1, 1]} : vector<8x96xf32> to vector<8x32xf32>
    %140 = vector.extract_strided_slice %138 {offsets = [0, 0], sizes = [8, 32], strides = [1, 1]} : vector<8x96xf32> to vector<8x32xf32>
    %141 = arith.addf %139, %140 : vector<8x32xf32>
    %142 = arith.negf %141 : vector<8x32xf32>
    %143 = math.exp %142 : vector<8x32xf32>
    %cst_82 = arith.constant 1.000000e+00 : f32
    %144 = vector.broadcast %cst_82 : f32 to vector<8x32xf32>
    %145 = arith.addf %144, %143 : vector<8x32xf32>
    %146 = arith.divf %144, %145 : vector<8x32xf32>
    %147 = vector.extract_strided_slice %132 {offsets = [0, 32], sizes = [8, 32], strides = [1, 1]} : vector<8x96xf32> to vector<8x32xf32>
    %148 = vector.extract_strided_slice %138 {offsets = [0, 32], sizes = [8, 32], strides = [1, 1]} : vector<8x96xf32> to vector<8x32xf32>
    %149 = arith.addf %147, %148 : vector<8x32xf32>
    %150 = arith.negf %149 : vector<8x32xf32>
    %151 = math.exp %150 : vector<8x32xf32>
    %cst_83 = arith.constant 1.000000e+00 : f32
    %152 = vector.broadcast %cst_83 : f32 to vector<8x32xf32>
    %153 = arith.addf %152, %151 : vector<8x32xf32>
    %154 = arith.divf %152, %153 : vector<8x32xf32>
    %155 = vector.extract_strided_slice %132 {offsets = [0, 64], sizes = [8, 32], strides = [1, 1]} : vector<8x96xf32> to vector<8x32xf32>
    %156 = vector.extract_strided_slice %138 {offsets = [0, 64], sizes = [8, 32], strides = [1, 1]} : vector<8x96xf32> to vector<8x32xf32>
    %157 = arith.mulf %146, %156 : vector<8x32xf32>
    %158 = arith.addf %155, %157 : vector<8x32xf32>
    %159 = math.tanh %158 : vector<8x32xf32>
    %cst_84 = arith.constant 1.000000e+00 : f32
    %160 = vector.broadcast %cst_84 : f32 to vector<8x32xf32>
    %161 = arith.subf %160, %154 : vector<8x32xf32>
    %162 = arith.mulf %161, %159 : vector<8x32xf32>
    %163 = arith.mulf %154, %7 : vector<8x32xf32>
    %164 = arith.addf %162, %163 : vector<8x32xf32>
    %c0_85 = arith.constant 0 : index
    %c0_86 = arith.constant 0 : index
    %165 = vector.load %arg29[%c0_85, %c0_86] : memref<8x32xf32, #tpu.memory_space<vmem>>, vector<8x32xf32>
    tpu.vector_store %arg29[%c0_85, %c0_86], %164 {strides = array<i32>} : memref<8x32xf32, #tpu.memory_space<vmem>>, vector<8x32xf32>,
    %166 = arith.truncf %164 : vector<8x32xf32> to vector<8x32xbf16>
    %c0_87 = arith.constant 0 : index
    %c0_88 = arith.constant 0 : index
    %167 = vector.load %arg26[%c0_87, %c0_88] : memref<32x8xbf16, #tpu.memory_space<vmem>>, vector<32x8xbf16>
    %cst_89 = arith.constant dense<0.000000e+00> : vector<8x8xf32>
    %168 = tpu.matmul %166, %167, %cst_89 {dimension_numbers = #tpu.dot_dimension_numbers<[1], [0], [0], [1], [0, 0, 1, 1], [], []>} : vector<8x32xbf16>, vector<32x8xbf16>, vector<8x8xf32> -> vector<8x8xf32>
    %c0_90 = arith.constant 0 : index
    %c0_91 = arith.constant 0 : index
    %169 = vector.load %arg27[%c0_90, %c0_91] : memref<1x8xf32, #tpu.memory_space<vmem>>, vector<1x8xf32>
    %170 = vector.broadcast %169 : vector<1x8xf32> to vector<8x8xf32>
    %171 = arith.addf %168, %170 : vector<8x8xf32>
    %cst_92 = arith.constant 0.000000e+00 : f32
    %172 = vector.broadcast %cst_92 : f32 to vector<8x56xf32>
    %173 = tpu.concatenate %164, %57, %171, %172 in 1 : vector<8x32xf32>, vector<8x32xf32>, vector<8x8xf32>, vector<8x56xf32> -> vector<8x128xf32>
    %174 = vector.shape_cast %173 : vector<8x128xf32> to vector<1x8x128xf32>
    %c0_93 = arith.constant 0 : index
    %c0_94 = arith.constant 0 : index
    %c0_95 = arith.constant 0 : index
    %175 = vector.load %arg28[%c0_93, %c0_94, %c0_95] : memref<1x8x128xf32, #tpu.memory_space<vmem>>, vector<1x8x128xf32>
    tpu.vector_store %arg28[%c0_93, %c0_94, %c0_95], %174 {strides = array<i32>} : memref<1x8x128xf32, #tpu.memory_space<vmem>>, vector<1x8x128xf32>,
    return
  }
  func.func @transform_0(%arg0: i32) -> (i32, i32, i32) {
    %c0_i32 = arith.constant 0 : i32
    %c0_i32_0 = arith.constant 0 : i32
    %c0_i32_1 = arith.constant 0 : i32
    return %arg0, %c0_i32, %c0_i32_0 : i32, i32, i32
  }
  func.func @transform_1(%arg0: i32) -> (i32, i32, i32) {
    %c0_i32 = arith.constant 0 : i32
    %c0_i32_0 = arith.constant 0 : i32
    %c0_i32_1 = arith.constant 0 : i32
    return %arg0, %c0_i32, %c0_i32_0 : i32, i32, i32
  }
  func.func @transform_2(%arg0: i32) -> (i32, i32) {
    %c0_i32 = arith.constant 0 : i32
    %c0_i32_0 = arith.constant 0 : i32
    %c0_i32_1 = arith.constant 0 : i32
    return %c0_i32, %c0_i32_0 : i32, i32
  }
  func.func @transform_3(%arg0: i32) -> (i32, i32) {
    %c0_i32 = arith.constant 0 : i32
    %c0_i32_0 = arith.constant 0 : i32
    %c0_i32_1 = arith.constant 0 : i32
    return %c0_i32, %c0_i32_0 : i32, i32
  }
  func.func @transform_4(%arg0: i32) -> (i32, i32) {
    %c0_i32 = arith.constant 0 : i32
    %c0_i32_0 = arith.constant 0 : i32
    %c0_i32_1 = arith.constant 0 : i32
    return %c0_i32, %c0_i32_0 : i32, i32
  }
  func.func @transform_5(%arg0: i32) -> (i32, i32) {
    %c0_i32 = arith.constant 0 : i32
    %c0_i32_0 = arith.constant 0 : i32
    %c0_i32_1 = arith.constant 0 : i32
    return %c0_i32, %c0_i32_0 : i32, i32
  }
  func.func @transform_6(%arg0: i32) -> (i32, i32) {
    %c0_i32 = arith.constant 0 : i32
    %c0_i32_0 = arith.constant 0 : i32
    %c0_i32_1 = arith.constant 0 : i32
    return %c0_i32, %c0_i32_0 : i32, i32
  }
  func.func @transform_7(%arg0: i32) -> (i32, i32) {
    %c0_i32 = arith.constant 0 : i32
    %c0_i32_0 = arith.constant 0 : i32
    %c0_i32_1 = arith.constant 0 : i32
    return %c0_i32, %c0_i32_0 : i32, i32
  }
  func.func @transform_8(%arg0: i32) -> (i32, i32) {
    %c0_i32 = arith.constant 0 : i32
    %c0_i32_0 = arith.constant 0 : i32
    %c0_i32_1 = arith.constant 0 : i32
    return %c0_i32, %c0_i32_0 : i32, i32
  }
  func.func @transform_9(%arg0: i32) -> (i32, i32) {
    %c0_i32 = arith.constant 0 : i32
    %c0_i32_0 = arith.constant 0 : i32
    %c0_i32_1 = arith.constant 0 : i32
    return %c0_i32, %c0_i32_0 : i32, i32
  }
  func.func @transform_10(%arg0: i32) -> (i32, i32) {
    %c0_i32 = arith.constant 0 : i32
    %c0_i32_0 = arith.constant 0 : i32
    %c0_i32_1 = arith.constant 0 : i32
    return %c0_i32, %c0_i32_0 : i32, i32
  }
  func.func @transform_11(%arg0: i32) -> (i32, i32) {
    %c0_i32 = arith.constant 0 : i32
    %c0_i32_0 = arith.constant 0 : i32
    %c0_i32_1 = arith.constant 0 : i32
    return %c0_i32, %c0_i32_0 : i32, i32
  }
  func.func @transform_12(%arg0: i32) -> (i32, i32) {
    %c0_i32 = arith.constant 0 : i32
    %c0_i32_0 = arith.constant 0 : i32
    %c0_i32_1 = arith.constant 0 : i32
    return %c0_i32, %c0_i32_0 : i32, i32
  }
  func.func @transform_13(%arg0: i32) -> (i32, i32) {
    %c0_i32 = arith.constant 0 : i32
    %c0_i32_0 = arith.constant 0 : i32
    %c0_i32_1 = arith.constant 0 : i32
    return %c0_i32, %c0_i32_0 : i32, i32
  }
  func.func @transform_14(%arg0: i32) -> (i32, i32) {
    %c0_i32 = arith.constant 0 : i32
    %c0_i32_0 = arith.constant 0 : i32
    %c0_i32_1 = arith.constant 0 : i32
    return %c0_i32, %c0_i32_0 : i32, i32
  }
  func.func @transform_15(%arg0: i32) -> (i32, i32) {
    %c0_i32 = arith.constant 0 : i32
    %c0_i32_0 = arith.constant 0 : i32
    %c0_i32_1 = arith.constant 0 : i32
    return %c0_i32, %c0_i32_0 : i32, i32
  }
  func.func @transform_16(%arg0: i32) -> (i32, i32) {
    %c0_i32 = arith.constant 0 : i32
    %c0_i32_0 = arith.constant 0 : i32
    %c0_i32_1 = arith.constant 0 : i32
    return %c0_i32, %c0_i32_0 : i32, i32
  }
  func.func @transform_17(%arg0: i32) -> (i32, i32) {
    %c0_i32 = arith.constant 0 : i32
    %c0_i32_0 = arith.constant 0 : i32
    %c0_i32_1 = arith.constant 0 : i32
    return %c0_i32, %c0_i32_0 : i32, i32
  }
  func.func @transform_18(%arg0: i32) -> (i32, i32) {
    %c0_i32 = arith.constant 0 : i32
    %c0_i32_0 = arith.constant 0 : i32
    %c0_i32_1 = arith.constant 0 : i32
    return %c0_i32, %c0_i32_0 : i32, i32
  }
  func.func @transform_19(%arg0: i32) -> (i32, i32) {
    %c0_i32 = arith.constant 0 : i32
    %c0_i32_0 = arith.constant 0 : i32
    %c0_i32_1 = arith.constant 0 : i32
    return %c0_i32, %c0_i32_0 : i32, i32
  }
  func.func @transform_20(%arg0: i32) -> (i32, i32) {
    %c0_i32 = arith.constant 0 : i32
    %c0_i32_0 = arith.constant 0 : i32
    %c0_i32_1 = arith.constant 0 : i32
    return %c0_i32, %c0_i32_0 : i32, i32
  }
  func.func @transform_21(%arg0: i32) -> (i32, i32) {
    %c0_i32 = arith.constant 0 : i32
    %c0_i32_0 = arith.constant 0 : i32
    %c0_i32_1 = arith.constant 0 : i32
    return %c0_i32, %c0_i32_0 : i32, i32
  }
  func.func @transform_22(%arg0: i32) -> (i32, i32) {
    %c0_i32 = arith.constant 0 : i32
    %c0_i32_0 = arith.constant 0 : i32
    %c0_i32_1 = arith.constant 0 : i32
    return %c0_i32, %c0_i32_0 : i32, i32
  }
  func.func @transform_23(%arg0: i32) -> (i32, i32) {
    %c0_i32 = arith.constant 0 : i32
    %c0_i32_0 = arith.constant 0 : i32
    %c0_i32_1 = arith.constant 0 : i32
    return %c0_i32, %c0_i32_0 : i32, i32
  }
  func.func @transform_24(%arg0: i32) -> (i32, i32) {
    %c0_i32 = arith.constant 0 : i32
    %c0_i32_0 = arith.constant 0 : i32
    %c0_i32_1 = arith.constant 0 : i32
    return %c0_i32, %c0_i32_0 : i32, i32
  }
  func.func @transform_25(%arg0: i32) -> (i32, i32) {
    %c0_i32 = arith.constant 0 : i32
    %c0_i32_0 = arith.constant 0 : i32
    %c0_i32_1 = arith.constant 0 : i32
    return %c0_i32, %c0_i32_0 : i32, i32
  }
  func.func @transform_26(%arg0: i32) -> (i32, i32) {
    %c0_i32 = arith.constant 0 : i32
    %c0_i32_0 = arith.constant 0 : i32
    %c0_i32_1 = arith.constant 0 : i32
    return %c0_i32, %c0_i32_0 : i32, i32
  }
  func.func @transform_27(%arg0: i32) -> (i32, i32, i32) {
    %c0_i32 = arith.constant 0 : i32
    %c0_i32_0 = arith.constant 0 : i32
    %c0_i32_1 = arith.constant 0 : i32
    return %arg0, %c0_i32, %c0_i32_0 : i32, i32, i32
  }
}

</mosaic_0001>

<llo_original>
// kernel: _decode_steps.1
$region0: #{_decode_steps.1}
  #allocation0 [shape = 'u32[]', space=smem, size = 0x4, offset = 0x4, fixed_abs, tag = 'smem constant byte address 0x4 - core index']
  #allocation1 [shape = 'u32[144,128]{1,0:T(1,128)}', space=vmem, size = 0x12000, scoped, tag = 'internal scratch']
  #allocation2 [shape = 'f32[8,32]{1,0:T(8,128)}', space=vmem, size = 0x1000, scoped, tag = 'scratch operand']
  %s0 = inlined_call_operand.hbm [shape: f32[1,8,32], index: 0, kind: input, shape index: {}]
  %s1 = inlined_call_operand.hbm [shape: f32[1,8,16], index: 1, kind: input, shape index: {}]
  %s2 = inlined_call_operand.hbm [shape: f32[8,32], index: 2, kind: input, shape index: {}]
  %s3 = inlined_call_operand.vmem [shape: bf16[128,512], index: 3, kind: input, shape index: {}]
  %s4 = inlined_call_operand.hbm [shape: f32[1,512], index: 4, kind: input, shape index: {}]
  %s5 = inlined_call_operand.hbm [shape: bf16[512,512], index: 5, kind: input, shape index: {}]
  %s6 = inlined_call_operand.hbm [shape: f32[1,512], index: 6, kind: input, shape index: {}]
  %s7 = inlined_call_operand.hbm [shape: bf16[512,256], index: 7, kind: input, shape index: {}]
  %s8 = inlined_call_operand.hbm [shape: f32[1,256], index: 8, kind: input, shape index: {}]
  %s9 = inlined_call_operand.vmem [shape: bf16[256,32], index: 9, kind: input, shape index: {}]
  %s10 = inlined_call_operand.vmem [shape: f32[1,32], index: 10, kind: input, shape index: {}]
  %s11 = inlined_call_operand.vmem [shape: bf16[64,512], index: 11, kind: input, shape index: {}]
  %s12 = inlined_call_operand.hbm [shape: f32[1,512], index: 12, kind: input, shape index: {}]
  %s13 = inlined_call_operand.hbm [shape: bf16[512,512], index: 13, kind: input, shape index: {}]
  %s14 = inlined_call_operand.hbm [shape: f32[1,512], index: 14, kind: input, shape index: {}]
  %s15 = inlined_call_operand.hbm [shape: bf16[512,256], index: 15, kind: input, shape index: {}]
  %s16 = inlined_call_operand.vmem [shape: f32[1,256], index: 16, kind: input, shape index: {}]
  %s17 = inlined_call_operand.vmem [shape: bf16[256,32], index: 17, kind: input, shape index: {}]
  %s18 = inlined_call_operand.hbm [shape: f32[1,32], index: 18, kind: input, shape index: {}]
  %s19 = inlined_call_operand.hbm [shape: f32[1,64], index: 19, kind: input, shape index: {}]
  %s20 = inlined_call_operand.hbm [shape: f32[1,64], index: 20, kind: input, shape index: {}]
  %s21 = inlined_call_operand.hbm [shape: bf16[32,96], index: 21, kind: input, shape index: {}]
  %s22 = inlined_call_operand.hbm [shape: bf16[32,96], index: 22, kind: input, shape index: {}]
  %s23 = inlined_call_operand.hbm [shape: f32[1,96], index: 23, kind: input, shape index: {}]
  %s24 = inlined_call_operand.hbm [shape: f32[1,96], index: 24, kind: input, shape index: {}]
  %s25 = inlined_call_operand.vmem [shape: bf16[32,8], index: 25, kind: input, shape index: {}]
  %s26 = inlined_call_operand.hbm [shape: f32[1,8], index: 26, kind: input, shape index: {}]
  %s27 = inlined_call_operand.hbm [shape: f32[1,8,128], index: 27, kind: output, shape index: {}]
  %s28 = sld [smem:[#allocation0]]
  $region202: #{_decode_steps.1} parent=0
    _
  %s30 = ssub.s32 1, %s28
  %s31 = scalar_select 0, %s30, %s28
  $region1: #{_decode_steps.1} parent=0
    #allocation3 [shape = 'u8[4096]{0}', space=vmem, size = 0x1000, scoped, tag = 'input window, operand 0, single buffered']
    #allocation4 [shape = 's32[1]{0}', space=sflag, size = 0x4, scoped, tag = 'scoped memory for _decode_steps.1']
    #allocation5 [shape = 's32[1]{0}', space=sflag, size = 0x4, scoped, tag = 'scoped memory for _decode_steps.1']
    #allocation6 [shape = 'u8[4096]{0}', space=vmem, size = 0x1000, scoped, tag = 'input window, operand 1, single buffered']
    #allocation7 [shape = 's32[1]{0}', space=sflag, size = 0x4, scoped, tag = 'scoped memory for _decode_steps.1']
    #allocation8 [shape = 'u8[4096]{0}', space=vmem, size = 0x1000, scoped, tag = 'input window, operand 2, single buffered']
    #allocation9 [shape = 'u8[2048]{0}', space=vmem, size = 0x800, scoped, tag = 'input window, operand 4, single buffered']
    #allocation10 [shape = 's32[1]{0}', space=sflag, size = 0x4, scoped, tag = 'scoped memory for _decode_steps.1']
    #allocation11 [shape = 'u8[524288]{0}', space=vmem, size = 0x80000, scoped, tag = 'input window, operand 5, single buffered']
    #allocation12 [shape = 'u8[2048]{0}', space=vmem, size = 0x800, scoped, tag = 'input window, operand 6, single buffered']
    #allocation13 [shape = 's32[1]{0}', space=sflag, size = 0x4, scoped, tag = 'scoped memory for _decode_steps.1']
    #allocation14 [shape = 'u8[262144]{0}', space=vmem, size = 0x40000, scoped, tag = 'input window, operand 7, single buffered']
    #allocation15 [shape = 'u8[1024]{0}', space=vmem, size = 0x400, scoped, tag = 'input window, operand 8, single buffered']
    #allocation16 [shape = 's32[1]{0}', space=sflag, size = 0x4, scoped, tag = 'scoped memory for _decode_steps.1']
    #allocation17 [shape = 'u8[2048]{0}', space=vmem, size = 0x800, scoped, tag = 'input window, operand 12, single buffered']
    #allocation18 [shape = 'u8[524288]{0}', space=vmem, size = 0x80000, scoped, tag = 'input window, operand 13, single buffered']
    #allocation19 [shape = 's32[1]{0}', space=sflag, size = 0x4, scoped, tag = 'scoped memory for _decode_steps.1']
    #allocation20 [shape = 'u8[2048]{0}', space=vmem, size = 0x800, scoped, tag = 'input window, operand 14, single buffered']
    #allocation21 [shape = 'u8[262144]{0}', space=vmem, size = 0x40000, scoped, tag = 'input window, operand 15, single buffered']
    #allocation22 [shape = 's32[1]{0}', space=sflag, size = 0x4, scoped, tag = 'scoped memory for _decode_steps.1']
    #allocation23 [shape = 'u8[512]{0}', space=vmem, size = 0x400, scoped, tag = 'input window, operand 18, single buffered']
    #allocation24 [shape = 'u8[512]{0}', space=vmem, size = 0x400, scoped, tag = 'input window, operand 19, single buffered']
    #allocation25 [shape = 's32[1]{0}', space=sflag, size = 0x4, scoped, tag = 'scoped memory for _decode_steps.1']
    #allocation26 [shape = 'u8[512]{0}', space=vmem, size = 0x400, scoped, tag = 'input window, operand 20, single buffered']
    #allocation27 [shape = 'u8[8192]{0}', space=vmem, size = 0x2000, scoped, tag = 'input window, operand 21, single buffered']
    #allocation28 [shape = 's32[1]{0}', space=sflag, size = 0x4, scoped, tag = 'scoped memory for _decode_steps.1']
    #allocation29 [shape = 'u8[8192]{0}', space=vmem, size = 0x2000, scoped, tag = 'input window, operand 22, single buffered']
    #allocation30 [shape = 'u8[512]{0}', space=vmem, size = 0x400, scoped, tag = 'input window, operand 23, single buffered']
    #allocation31 [shape = 's32[1]{0}', space=sflag, size = 0x4, scoped, tag = 'scoped memory for _decode_steps.1']
    #allocation32 [shape = 'u8[512]{0}', space=vmem, size = 0x400, scoped, tag = 'input window, operand 24, single buffered']
    #allocation33 [shape = 'u8[512]{0}', space=vmem, size = 0x400, scoped, tag = 'input window, operand 26, single buffered']
    #allocation34 [shape = 's32[1]{0}', space=sflag, size = 0x4, scoped, tag = 'scoped memory for _decode_steps.1']
    #allocation35 [shape = 'u8[4096]{0}', space=vmem, size = 0x1000, scoped, tag = 'output window, operand 0, single buffered']
    %32 = vsyncpa [#allocation4], 0
    %33 = vsyncpa [#allocation7], 0
    %34 = vsyncpa [#allocation10], 0
    %35 = vsyncpa [#allocation13], 0
    %36 = vsyncpa [#allocation16], 0
    %37 = vsyncpa [#allocation19], 0
    %38 = vsyncpa [#allocation22], 0
    %39 = vsyncpa [#allocation25], 0
    %40 = vsyncpa [#allocation28], 0
    %41 = vsyncpa [#allocation31], 0
    %42 = vsyncpa [#allocation34], 0
    %43 = vsyncpa [#allocation5], 0
    // Predicated region
    $region2: #{_decode_steps.1} parent=1 // pred_check
      _
    $region3: #{_decode_steps.1} parent=1 // pred_check_branch
      %45 = sbr.rel (0) target = $region5
    $region4: #{_decode_steps.1} parent=1 // pred_region
      %s47 = ssub.s32 128, 128
      %48 = vsyncadd [#allocation4], %s47
      %s50 = sshll.u32 [#allocation3], 4
      %s51 = int_to_ptr.vmem [resolvable:$true] %s50
      %53 = dma.hbm_to_vmem [thread:$0]  %s0, 128, %s51, [#allocation4]
    $region5: #{_decode_steps.1} parent=1 // pred_fallthru
      _
    // Predicated region
    $region6: #{_decode_steps.1} parent=1 // pred_check
      _
    $region7: #{_decode_steps.1} parent=1 // pred_check_branch
      %55 = sbr.rel (0) target = $region9
    $region8: #{_decode_steps.1} parent=1 // pred_region
      %s57 = ssub.s32 128, 128
      %58 = vsyncadd [#allocation7], %s57
      %s60 = sshll.u32 [#allocation6], 4
      %s61 = int_to_ptr.vmem [resolvable:$true] %s60
      %63 = dma.hbm_to_vmem [thread:$0]  %s1, 128, %s61, [#allocation7]
    $region9: #{_decode_steps.1} parent=1 // pred_fallthru
      _
    // Predicated region
    $region10: #{_decode_steps.1} parent=1 // pred_check
      _
    $region11: #{_decode_steps.1} parent=1 // pred_check_branch
      %65 = sbr.rel (0) target = $region13
    $region12: #{_decode_steps.1} parent=1 // pred_region
      %s67 = ssub.s32 128, 128
      %68 = vsyncadd [#allocation7], %s67
      %s70 = sshll.u32 [#allocation8], 4
      %s71 = int_to_ptr.vmem [resolvable:$true] %s70
      %73 = dma.hbm_to_vmem [thread:$0]  %s2, 128, %s71, [#allocation7]
    $region13: #{_decode_steps.1} parent=1 // pred_fallthru
      _
    // Predicated region
    $region14: #{_decode_steps.1} parent=1 // pred_check
      _
    $region15: #{_decode_steps.1} parent=1 // pred_check_branch
      %75 = sbr.rel (0) target = $region17
    $region16: #{_decode_steps.1} parent=1 // pred_region
      _
    $region17: #{_decode_steps.1} parent=1 // pred_fallthru
      _
    // Predicated region
    $region18: #{_decode_steps.1} parent=1 // pred_check
      _
    $region19: #{_decode_steps.1} parent=1 // pred_check_branch
      %77 = sbr.rel (0) target = $region21
    $region20: #{_decode_steps.1} parent=1 // pred_region
      %s79 = ssub.s32 64, 64
      %80 = vsyncadd [#allocation10], %s79
      %s82 = sshll.u32 [#allocation9], 4
      %s83 = int_to_ptr.vmem [resolvable:$true] %s82
      %85 = dma.hbm_to_vmem [thread:$0]  %s4, 64, %s83, [#allocation10]
    $region21: #{_decode_steps.1} parent=1 // pred_fallthru
      _
    // Predicated region
    $region22: #{_decode_steps.1} parent=1 // pred_check
      _
    $region23: #{_decode_steps.1} parent=1 // pred_check_branch
      %87 = sbr.rel (0) target = $region25
    $region24: #{_decode_steps.1} parent=1 // pred_region
      %s89 = ssub.s32 16384, 16384
      %90 = vsyncadd [#allocation10], %s89
      %s91 = sshll.u32 [#allocation11], 4
      %s92 = int_to_ptr.vmem [resolvable:$true] %s91
      %97 = dma.hbm_to_vmem [thread:$0]  %s5, 16384, %s92, [#allocation10], 256, 256, 16
    $region25: #{_decode_steps.1} parent=1 // pred_fallthru
      _
    // Predicated region
    $region26: #{_decode_steps.1} parent=1 // pred_check
      _
    $region27: #{_decode_steps.1} parent=1 // pred_check_branch
      %99 = sbr.rel (0) target = $region29
    $region28: #{_decode_steps.1} parent=1 // pred_region
      %s101 = ssub.s32 64, 64
      %102 = vsyncadd [#allocation13], %s101
      %s104 = sshll.u32 [#allocation12], 4
      %s105 = int_to_ptr.vmem [resolvable:$true] %s104
      %107 = dma.hbm_to_vmem [thread:$0]  %s6, 64, %s105, [#allocation13]
    $region29: #{_decode_steps.1} parent=1 // pred_fallthru
      _
    // Predicated region
    $region30: #{_decode_steps.1} parent=1 // pred_check
      _
    $region31: #{_decode_steps.1} parent=1 // pred_check_branch
      %109 = sbr.rel (0) target = $region33
    $region32: #{_decode_steps.1} parent=1 // pred_region
      %s111 = ssub.s32 8192, 8192
      %112 = vsyncadd [#allocation13], %s111
      %s113 = sshll.u32 [#allocation14], 4
      %s114 = int_to_ptr.vmem [resolvable:$true] %s113
      %119 = dma.hbm_to_vmem [thread:$0]  %s7, 8192, %s114, [#allocation13], 128, 128, 8
    $region33: #{_decode_steps.1} parent=1 // pred_fallthru
      _
    // Predicated region
    $region34: #{_decode_steps.1} parent=1 // pred_check
      _
    $region35: #{_decode_steps.1} parent=1 // pred_check_branch
      %121 = sbr.rel (0) target = $region37
    $region36: #{_decode_steps.1} parent=1 // pred_region
      %s123 = ssub.s32 32, 32
      %124 = vsyncadd [#allocation16], %s123
      %s126 = sshll.u32 [#allocation15], 4
      %s127 = int_to_ptr.vmem [resolvable:$true] %s126
      %129 = dma.hbm_to_vmem [thread:$0]  %s8, 32, %s127, [#allocation16]
    $region37: #{_decode_steps.1} parent=1 // pred_fallthru
      _
    // Predicated region
    $region38: #{_decode_steps.1} parent=1 // pred_check
      _
    $region39: #{_decode_steps.1} parent=1 // pred_check_branch
      %131 = sbr.rel (0) target = $region41
    $region40: #{_decode_steps.1} parent=1 // pred_region
      _
    $region41: #{_decode_steps.1} parent=1 // pred_fallthru
      _
    // Predicated region
    $region42: #{_decode_steps.1} parent=1 // pred_check
      _
    $region43: #{_decode_steps.1} parent=1 // pred_check_branch
      %133 = sbr.rel (0) target = $region45
    $region44: #{_decode_steps.1} parent=1 // pred_region
      _
    $region45: #{_decode_steps.1} parent=1 // pred_fallthru
      _
    // Predicated region
    $region46: #{_decode_steps.1} parent=1 // pred_check
      _
    $region47: #{_decode_steps.1} parent=1 // pred_check_branch
      %135 = sbr.rel (0) target = $region49
    $region48: #{_decode_steps.1} parent=1 // pred_region
      _
    $region49: #{_decode_steps.1} parent=1 // pred_fallthru
      _
    // Predicated region
    $region50: #{_decode_steps.1} parent=1 // pred_check
      _
    $region51: #{_decode_steps.1} parent=1 // pred_check_branch
      %137 = sbr.rel (0) target = $region53
    $region52: #{_decode_steps.1} parent=1 // pred_region
      %s139 = ssub.s32 64, 64
      %140 = vsyncadd [#allocation16], %s139
      %s142 = sshll.u32 [#allocation17], 4
      %s143 = int_to_ptr.vmem [resolvable:$true] %s142
      %145 = dma.hbm_to_vmem [thread:$0]  %s12, 64, %s143, [#allocation16]
    $region53: #{_decode_steps.1} parent=1 // pred_fallthru
      _
    // Predicated region
    $region54: #{_decode_steps.1} parent=1 // pred_check
      _
    $region55: #{_decode_steps.1} parent=1 // pred_check_branch
      %147 = sbr.rel (0) target = $region57
    $region56: #{_decode_steps.1} parent=1 // pred_region
      %s149 = ssub.s32 16384, 16384
      %150 = vsyncadd [#allocation19], %s149
      %s151 = sshll.u32 [#allocation18], 4
      %s152 = int_to_ptr.vmem [resolvable:$true] %s151
      %157 = dma.hbm_to_vmem [thread:$0]  %s13, 16384, %s152, [#allocation19], 256, 256, 16
    $region57: #{_decode_steps.1} parent=1 // pred_fallthru
      _
    // Predicated region
    $region58: #{_decode_steps.1} parent=1 // pred_check
      _
    $region59: #{_decode_steps.1} parent=1 // pred_check_branch
      %159 = sbr.rel (0) target = $region61
    $region60: #{_decode_steps.1} parent=1 // pred_region
      %s161 = ssub.s32 64, 64
      %162 = vsyncadd [#allocation19], %s161
      %s164 = sshll.u32 [#allocation20], 4
      %s165 = int_to_ptr.vmem [resolvable:$true] %s164
      %167 = dma.hbm_to_vmem [thread:$0]  %s14, 64, %s165, [#allocation19]
    $region61: #{_decode_steps.1} parent=1 // pred_fallthru
      _
    // Predicated region
    $region62: #{_decode_steps.1} parent=1 // pred_check
      _
    $region63: #{_decode_steps.1} parent=1 // pred_check_branch
      %169 = sbr.rel (0) target = $region65
    $region64: #{_decode_steps.1} parent=1 // pred_region
      %s171 = ssub.s32 8192, 8192
      %172 = vsyncadd [#allocation22], %s171
      %s173 = sshll.u32 [#allocation21], 4
      %s174 = int_to_ptr.vmem [resolvable:$true] %s173
      %179 = dma.hbm_to_vmem [thread:$0]  %s15, 8192, %s174, [#allocation22], 128, 128, 8
    $region65: #{_decode_steps.1} parent=1 // pred_fallthru
      _
    // Predicated region
    $region66: #{_decode_steps.1} parent=1 // pred_check
      _
    $region67: #{_decode_steps.1} parent=1 // pred_check_branch
      %181 = sbr.rel (0) target = $region69
    $region68: #{_decode_steps.1} parent=1 // pred_region
      _
    $region69: #{_decode_steps.1} parent=1 // pred_fallthru
      _
    // Predicated region
    $region70: #{_decode_steps.1} parent=1 // pred_check
      _
    $region71: #{_decode_steps.1} parent=1 // pred_check_branch
      %183 = sbr.rel (0) target = $region73
    $region72: #{_decode_steps.1} parent=1 // pred_region
      _
    $region73: #{_decode_steps.1} parent=1 // pred_fallthru
      _
    // Predicated region
    $region74: #{_decode_steps.1} parent=1 // pred_check
      _
    $region75: #{_decode_steps.1} parent=1 // pred_check_branch
      %185 = sbr.rel (0) target = $region77
    $region76: #{_decode_steps.1} parent=1 // pred_region
      %s187 = ssub.s32 16, 16
      %188 = vsyncadd [#allocation22], %s187
      %s190 = sshll.u32 [#allocation23], 4
      %s191 = int_to_ptr.vmem [resolvable:$true] %s190
      %193 = dma.hbm_to_vmem [thread:$0]  %s18, 16, %s191, [#allocation22]
    $region77: #{_decode_steps.1} parent=1 // pred_fallthru
      _
    // Predicated region
    $region78: #{_decode_steps.1} parent=1 // pred_check
      _
    $region79: #{_decode_steps.1} parent=1 // pred_check_branch
      %195 = sbr.rel (0) target = $region81
    $region80: #{_decode_steps.1} parent=1 // pred_region
      %s197 = ssub.s32 16, 16
      %198 = vsyncadd [#allocation25], %s197
      %s200 = sshll.u32 [#allocation24], 4
      %s201 = int_to_ptr.vmem [resolvable:$true] %s200
      %203 = dma.hbm_to_vmem [thread:$0]  %s19, 16, %s201, [#allocation25]
    $region81: #{_decode_steps.1} parent=1 // pred_fallthru
      _
    // Predicated region
    $region82: #{_decode_steps.1} parent=1 // pred_check
      _
    $region83: #{_decode_steps.1} parent=1 // pred_check_branch
      %205 = sbr.rel (0) target = $region85
    $region84: #{_decode_steps.1} parent=1 // pred_region
      %s207 = ssub.s32 16, 16
      %208 = vsyncadd [#allocation25], %s207
      %s210 = sshll.u32 [#allocation26], 4
      %s211 = int_to_ptr.vmem [resolvable:$true] %s210
      %213 = dma.hbm_to_vmem [thread:$0]  %s20, 16, %s211, [#allocation25]
    $region85: #{_decode_steps.1} parent=1 // pred_fallthru
      _
    // Predicated region
    $region86: #{_decode_steps.1} parent=1 // pred_check
      _
    $region87: #{_decode_steps.1} parent=1 // pred_check_branch
      %215 = sbr.rel (0) target = $region89
    $region88: #{_decode_steps.1} parent=1 // pred_region
      %s217 = ssub.s32 256, 256
      %218 = vsyncadd [#allocation28], %s217
      %s219 = sshll.u32 [#allocation27], 4
      %s220 = int_to_ptr.vmem [resolvable:$true] %s219
      %225 = dma.hbm_to_vmem [thread:$0]  %s21, 256, %s220, [#allocation28], 64, 64, 4
    $region89: #{_decode_steps.1} parent=1 // pred_fallthru
      _
    // Predicated region
    $region90: #{_decode_steps.1} parent=1 // pred_check
      _
    $region91: #{_decode_steps.1} parent=1 // pred_check_branch
      %227 = sbr.rel (0) target = $region93
    $region92: #{_decode_steps.1} parent=1 // pred_region
      %s229 = ssub.s32 256, 256
      %230 = vsyncadd [#allocation28], %s229
      %s231 = sshll.u32 [#allocation29], 4
      %s232 = int_to_ptr.vmem [resolvable:$true] %s231
      %237 = dma.hbm_to_vmem [thread:$0]  %s22, 256, %s232, [#allocation28], 64, 64, 4
    $region93: #{_decode_steps.1} parent=1 // pred_fallthru
      _
    // Predicated region
    $region94: #{_decode_steps.1} parent=1 // pred_check
      _
    $region95: #{_decode_steps.1} parent=1 // pred_check_branch
      %239 = sbr.rel (0) target = $region97
    $region96: #{_decode_steps.1} parent=1 // pred_region
      %s241 = ssub.s32 16, 16
      %242 = vsyncadd [#allocation31], %s241
      %s244 = sshll.u32 [#allocation30], 4
      %s245 = int_to_ptr.vmem [resolvable:$true] %s244
      %247 = dma.hbm_to_vmem [thread:$0]  %s23, 16, %s245, [#allocation31]
    $region97: #{_decode_steps.1} parent=1 // pred_fallthru
      _
    // Predicated region
    $region98: #{_decode_steps.1} parent=1 // pred_check
      _
    $region99: #{_decode_steps.1} parent=1 // pred_check_branch
      %249 = sbr.rel (0) target = $region101
    $region100: #{_decode_steps.1} parent=1 // pred_region
      %s251 = ssub.s32 16, 16
      %252 = vsyncadd [#allocation31], %s251
      %s254 = sshll.u32 [#allocation32], 4
      %s255 = int_to_ptr.vmem [resolvable:$true] %s254
      %257 = dma.hbm_to_vmem [thread:$0]  %s24, 16, %s255, [#allocation31]
    $region101: #{_decode_steps.1} parent=1 // pred_fallthru
      _
    // Predicated region
    $region102: #{_decode_steps.1} parent=1 // pred_check
      _
    $region103: #{_decode_steps.1} parent=1 // pred_check_branch
      %259 = sbr.rel (0) target = $region105
    $region104: #{_decode_steps.1} parent=1 // pred_region
      _
    $region105: #{_decode_steps.1} parent=1 // pred_fallthru
      _
    // Predicated region
    $region106: #{_decode_steps.1} parent=1 // pred_check
      _
    $region107: #{_decode_steps.1} parent=1 // pred_check_branch
      %261 = sbr.rel (0) target = $region109
    $region108: #{_decode_steps.1} parent=1 // pred_region
      %s263 = ssub.s32 16, 16
      %264 = vsyncadd [#allocation34], %s263
      %s266 = sshll.u32 [#allocation33], 4
      %s267 = int_to_ptr.vmem [resolvable:$true] %s266
      %269 = dma.hbm_to_vmem [thread:$0]  %s26, 16, %s267, [#allocation34]
    $region109: #{_decode_steps.1} parent=1 // pred_fallthru
      _
    // Predicated region
    $region110: #{_decode_steps.1} parent=1 // pred_check
      _
    $region111: #{_decode_steps.1} parent=1 // pred_check_branch
      %271 = sbr.rel (0) target = $region113
    $region112: #{_decode_steps.1} parent=1 // pred_region
      %272 = dma.done [#allocation4], 128
    $region113: #{_decode_steps.1} parent=1 // pred_fallthru
      _
    // Predicated region
    $region114: #{_decode_steps.1} parent=1 // pred_check
      _
    $region115: #{_decode_steps.1} parent=1 // pred_check_branch
      %274 = sbr.rel (0) target = $region117
    $region116: #{_decode_steps.1} parent=1 // pred_region
      %275 = dma.done [#allocation7], 128
    $region117: #{_decode_steps.1} parent=1 // pred_fallthru
      _
    // Predicated region
    $region118: #{_decode_steps.1} parent=1 // pred_check
      _
    $region119: #{_decode_steps.1} parent=1 // pred_check_branch
      %277 = sbr.rel (0) target = $region121
    $region120: #{_decode_steps.1} parent=1 // pred_region
      %278 = dma.done [#allocation7], 128
    $region121: #{_decode_steps.1} parent=1 // pred_fallthru
      _
    // Predicated region
    $region122: #{_decode_steps.1} parent=1 // pred_check
      _
    $region123: #{_decode_steps.1} parent=1 // pred_check_branch
      %280 = sbr.rel (0) target = $region125
    $region124: #{_decode_steps.1} parent=1 // pred_region
      %281 = dma.done [#allocation10], 64
    $region125: #{_decode_steps.1} parent=1 // pred_fallthru
      _
    // Predicated region
    $region126: #{_decode_steps.1} parent=1 // pred_check
      _
    $region127: #{_decode_steps.1} parent=1 // pred_check_branch
      %283 = sbr.rel (0) target = $region129
    $region128: #{_decode_steps.1} parent=1 // pred_region
      %284 = dma.done [#allocation10], 16384
    $region129: #{_decode_steps.1} parent=1 // pred_fallthru
      _
    // Predicated region
    $region130: #{_decode_steps.1} parent=1 // pred_check
      _
    $region131: #{_decode_steps.1} parent=1 // pred_check_branch
      %286 = sbr.rel (0) target = $region133
    $region132: #{_decode_steps.1} parent=1 // pred_region
      %287 = dma.done [#allocation13], 64
    $region133: #{_decode_steps.1} parent=1 // pred_fallthru
      _
    // Predicated region
    $region134: #{_decode_steps.1} parent=1 // pred_check
      _
    $region135: #{_decode_steps.1} parent=1 // pred_check_branch
      %289 = sbr.rel (0) target = $region137
    $region136: #{_decode_steps.1} parent=1 // pred_region
      %290 = dma.done [#allocation13], 8192
    $region137: #{_decode_steps.1} parent=1 // pred_fallthru
      _
    // Predicated region
    $region138: #{_decode_steps.1} parent=1 // pred_check
      _
    $region139: #{_decode_steps.1} parent=1 // pred_check_branch
      %292 = sbr.rel (0) target = $region141
    $region140: #{_decode_steps.1} parent=1 // pred_region
      %293 = dma.done [#allocation16], 32
    $region141: #{_decode_steps.1} parent=1 // pred_fallthru
      _
    // Predicated region
    $region142: #{_decode_steps.1} parent=1 // pred_check
      _
    $region143: #{_decode_steps.1} parent=1 // pred_check_branch
      %295 = sbr.rel (0) target = $region145
    $region144: #{_decode_steps.1} parent=1 // pred_region
      %296 = dma.done [#allocation16], 64
    $region145: #{_decode_steps.1} parent=1 // pred_fallthru
      _
    // Predicated region
    $region146: #{_decode_steps.1} parent=1 // pred_check
      _
    $region147: #{_decode_steps.1} parent=1 // pred_check_branch
      %298 = sbr.rel (0) target = $region149
    $region148: #{_decode_steps.1} parent=1 // pred_region
      %299 = dma.done [#allocation19], 16384
    $region149: #{_decode_steps.1} parent=1 // pred_fallthru
      _
    // Predicated region
    $region150: #{_decode_steps.1} parent=1 // pred_check
      _
    $region151: #{_decode_steps.1} parent=1 // pred_check_branch
      %301 = sbr.rel (0) target = $region153
    $region152: #{_decode_steps.1} parent=1 // pred_region
      %302 = dma.done [#allocation19], 64
    $region153: #{_decode_steps.1} parent=1 // pred_fallthru
      _
    // Predicated region
    $region154: #{_decode_steps.1} parent=1 // pred_check
      _
    $region155: #{_decode_steps.1} parent=1 // pred_check_branch
      %304 = sbr.rel (0) target = $region157
    $region156: #{_decode_steps.1} parent=1 // pred_region
      %305 = dma.done [#allocation22], 8192
    $region157: #{_decode_steps.1} parent=1 // pred_fallthru
      _
    // Predicated region
    $region158: #{_decode_steps.1} parent=1 // pred_check
      _
    $region159: #{_decode_steps.1} parent=1 // pred_check_branch
      %307 = sbr.rel (0) target = $region161
    $region160: #{_decode_steps.1} parent=1 // pred_region
      %308 = dma.done [#allocation22], 16
    $region161: #{_decode_steps.1} parent=1 // pred_fallthru
      _
    // Predicated region
    $region162: #{_decode_steps.1} parent=1 // pred_check
      _
    $region163: #{_decode_steps.1} parent=1 // pred_check_branch
      %310 = sbr.rel (0) target = $region165
    $region164: #{_decode_steps.1} parent=1 // pred_region
      %311 = dma.done [#allocation25], 16
    $region165: #{_decode_steps.1} parent=1 // pred_fallthru
      _
    // Predicated region
    $region166: #{_decode_steps.1} parent=1 // pred_check
      _
    $region167: #{_decode_steps.1} parent=1 // pred_check_branch
      %313 = sbr.rel (0) target = $region169
    $region168: #{_decode_steps.1} parent=1 // pred_region
      %314 = dma.done [#allocation25], 16
    $region169: #{_decode_steps.1} parent=1 // pred_fallthru
      _
    // Predicated region
    $region170: #{_decode_steps.1} parent=1 // pred_check
      _
    $region171: #{_decode_steps.1} parent=1 // pred_check_branch
      %316 = sbr.rel (0) target = $region173
    $region172: #{_decode_steps.1} parent=1 // pred_region
      %317 = dma.done [#allocation28], 256
    $region173: #{_decode_steps.1} parent=1 // pred_fallthru
      _
    // Predicated region
    $region174: #{_decode_steps.1} parent=1 // pred_check
      _
    $region175: #{_decode_steps.1} parent=1 // pred_check_branch
      %319 = sbr.rel (0) target = $region177
    $region176: #{_decode_steps.1} parent=1 // pred_region
      %320 = dma.done [#allocation28], 256
    $region177: #{_decode_steps.1} parent=1 // pred_fallthru
      _
    // Predicated region
    $region178: #{_decode_steps.1} parent=1 // pred_check
      _
    $region179: #{_decode_steps.1} parent=1 // pred_check_branch
      %322 = sbr.rel (0) target = $region181
    $region180: #{_decode_steps.1} parent=1 // pred_region
      %323 = dma.done [#allocation31], 16
    $region181: #{_decode_steps.1} parent=1 // pred_fallthru
      _
    // Predicated region
    $region182: #{_decode_steps.1} parent=1 // pred_check
      _
    $region183: #{_decode_steps.1} parent=1 // pred_check_branch
      %325 = sbr.rel (0) target = $region185
    $region184: #{_decode_steps.1} parent=1 // pred_region
      %326 = dma.done [#allocation31], 16
    $region185: #{_decode_steps.1} parent=1 // pred_fallthru
      _
    // Predicated region
    $region186: #{_decode_steps.1} parent=1 // pred_check
      _
    $region187: #{_decode_steps.1} parent=1 // pred_check_branch
      %328 = sbr.rel (0) target = $region189
    $region188: #{_decode_steps.1} parent=1 // pred_region
      %329 = dma.done [#allocation34], 16
    $region189: #{_decode_steps.1} parent=1 // pred_fallthru
      _
    %p331 = scmp.eq.s32.totalorder 0, 0
    // Predicated region
    $region190: #{_decode_steps.1} parent=1 // pred_check
      %p332 = pneg %p331
    $region191: #{_decode_steps.1} parent=1 // pred_check_branch
      %334 = sbr.rel (%p332) target = $region193
    $region192: #{_decode_steps.1} parent=1 // pred_region
      %v335 = vld [vmem:[#allocation8] sm:$0xff]
      %vm336 = vcmask 261120
      %337 = vst.msk [vmem:[#allocation2] sm:$0xff] %vm336, %v335
    $region193: #{_decode_steps.1} parent=1 // pred_fallthru
      _
    %v338 = vld [vmem:[#allocation3] sm:$0xff]
    %v339 = vld [vmem:[#allocation6] sm:$0xff]
    %v340 = vld [vmem:[#allocation2] sm:$0xff]
    %342 = vrot.lane.b32.xlu0 %v340, 32
    %v343 = vpop.permute.xlu0 %342
    %346 = vrot.lane.b32.xlu0 %v339, 64
    %v347 = vpop.permute.xlu0 %346
    %vm349 = vcmask 261120
    %v350 = vsel %vm349, %v338, %v343
    %vm351 = vcmask 523264
    %v352 = vsel %vm351, %v350, %v347
    %vm353 = vcmask 654336
    %v354 = vsel %vm353, %v352, 0.0
    %v355 = vpack.c.bf16 %v354, %v354
    %v356 = vld [vmem:[%s3] sm:$0xff]
    %v357 = vld [vmem:[%s3 + $0x8] sm:$0xff]
    %v358 = vld [vmem:[%s3 + $0x10] sm:$0xff]
    %v359 = vld [vmem:[%s3 + $0x18] sm:$0xff]
    %v360 = vld [vmem:[%s3 + $0x20] sm:$0xff]
    %v361 = vld [vmem:[%s3 + $0x28] sm:$0xff]
    %v362 = vld [vmem:[%s3 + $0x30] sm:$0xff]
    %v363 = vld [vmem:[%s3 + $0x38] sm:$0xff]
    %v364 = vld [vmem:[%s3 + $0x40] sm:$0xff]
    %v365 = vld [vmem:[%s3 + $0x48] sm:$0xff]
    %v366 = vld [vmem:[%s3 + $0x50] sm:$0xff]
    %v367 = vld [vmem:[%s3 + $0x58] sm:$0xff]
    %v368 = vld [vmem:[%s3 + $0x60] sm:$0xff]
    %v369 = vld [vmem:[%s3 + $0x68] sm:$0xff]
    %v370 = vld [vmem:[%s3 + $0x70] sm:$0xff]
    %v371 = vld [vmem:[%s3 + $0x78] sm:$0xff]
    %v372 = vld [vmem:[%s3 + $0x80] sm:$0xff]
    %v373 = vld [vmem:[%s3 + $0x88] sm:$0xff]
    %v374 = vld [vmem:[%s3 + $0x90] sm:$0xff]
    %v375 = vld [vmem:[%s3 + $0x98] sm:$0xff]
    %v376 = vld [vmem:[%s3 + $0xa0] sm:$0xff]
    %v377 = vld [vmem:[%s3 + $0xa8] sm:$0xff]
    %v378 = vld [vmem:[%s3 + $0xb0] sm:$0xff]
    %v379 = vld [vmem:[%s3 + $0xb8] sm:$0xff]
    %v380 = vld [vmem:[%s3 + $0xc0] sm:$0xff]
    %v381 = vld [vmem:[%s3 + $0xc8] sm:$0xff]
    %v382 = vld [vmem:[%s3 + $0xd0] sm:$0xff]
    %v383 = vld [vmem:[%s3 + $0xd8] sm:$0xff]
    %v384 = vld [vmem:[%s3 + $0xe0] sm:$0xff]
    %v385 = vld [vmem:[%s3 + $0xe8] sm:$0xff]
    %v386 = vld [vmem:[%s3 + $0xf0] sm:$0xff]
    %v387 = vld [vmem:[%s3 + $0xf8] sm:$0xff]
    %v388 = vld [vmem:[#allocation9] sm:$0xf]
    %v390 = vlaneseq
    %v391 = vshrl.u32 %v390, 7
    %v392 = vsub.s32 0, %v391
    %v393 = vrot.slane %v388, %v392
    %v394 = vlaneseq
    %v395 = vshrl.u32 %v394, 7
    %v396 = vsub.s32 1, %v395
    %v397 = vrot.slane %v388, %v396
    %v398 = vlaneseq
    %v399 = vshrl.u32 %v398, 7
    %v400 = vsub.s32 2, %v399
    %v401 = vrot.slane %v388, %v400
    %v402 = vlaneseq
    %v403 = vshrl.u32 %v402, 7
    %v404 = vsub.s32 3, %v403
    %v405 = vrot.slane %v388, %v404
    %v442 = vunpack.c.l.b16 %v356
    %v443 = vunpack.c.h.b16 %v356
    %v444 = vunpack.c.l.b16 %v357
    %v445 = vunpack.c.h.b16 %v357
    %v446 = vunpack.c.l.b16 %v358
    %v447 = vunpack.c.h.b16 %v358
    %v448 = vunpack.c.l.b16 %v359
    %v449 = vunpack.c.h.b16 %v359
    %v450 = vunpack.c.l.b16 %v360
    %v451 = vunpack.c.h.b16 %v360
    %v452 = vunpack.c.l.b16 %v361
    %v453 = vunpack.c.h.b16 %v361
    %v454 = vunpack.c.l.b16 %v362
    %v455 = vunpack.c.h.b16 %v362
    %v456 = vunpack.c.l.b16 %v363
    %v457 = vunpack.c.h.b16 %v363
    %v458 = vunpack.c.l.b16 %v364
    %v459 = vunpack.c.h.b16 %v364
    %v460 = vunpack.c.l.b16 %v365
    %v461 = vunpack.c.h.b16 %v365
    %v462 = vunpack.c.l.b16 %v366
    %v463 = vunpack.c.h.b16 %v366
    %v464 = vunpack.c.l.b16 %v367
    %v465 = vunpack.c.h.b16 %v367
    %v466 = vunpack.c.l.b16 %v368
    %v467 = vunpack.c.h.b16 %v368
    %v468 = vunpack.c.l.b16 %v369
    %v469 = vunpack.c.h.b16 %v369
    %v470 = vunpack.c.l.b16 %v370
    %v471 = vunpack.c.h.b16 %v370
    %v472 = vunpack.c.l.b16 %v371
    %v473 = vunpack.c.h.b16 %v371
    %v474 = vunpack.c.l.b16 %v372
    %v475 = vunpack.c.h.b16 %v372
    %v476 = vunpack.c.l.b16 %v373
    %v477 = vunpack.c.h.b16 %v373
    %v478 = vunpack.c.l.b16 %v374
    %v479 = vunpack.c.h.b16 %v374
    %v480 = vunpack.c.l.b16 %v375
    %v481 = vunpack.c.h.b16 %v375
    %v482 = vunpack.c.l.b16 %v376
    %v483 = vunpack.c.h.b16 %v376
    %v484 = vunpack.c.l.b16 %v377
    %v485 = vunpack.c.h.b16 %v377
    %v486 = vunpack.c.l.b16 %v378
    %v487 = vunpack.c.h.b16 %v378
    %v488 = vunpack.c.l.b16 %v379
    %v489 = vunpack.c.h.b16 %v379
    %v490 = vunpack.c.l.b16 %v380
    %v491 = vunpack.c.h.b16 %v380
    %v492 = vunpack.c.l.b16 %v381
    %v493 = vunpack.c.h.b16 %v381
    %v494 = vunpack.c.l.b16 %v382
    %v495 = vunpack.c.h.b16 %v382
    %v496 = vunpack.c.l.b16 %v383
    %v497 = vunpack.c.h.b16 %v383
    %v498 = vunpack.c.l.b16 %v384
    %v499 = vunpack.c.h.b16 %v384
    %v500 = vunpack.c.l.b16 %v385
    %v501 = vunpack.c.h.b16 %v385
    %v502 = vunpack.c.l.b16 %v386
    %v503 = vunpack.c.h.b16 %v386
    %v504 = vunpack.c.l.b16 %v387
    %v505 = vunpack.c.h.b16 %v387
    %v506 = vpack.c.b16 %v446, %v442
    %v507 = vpack.c.b16 %v447, %v443
    %v508 = vpack.c.b16 %v448, %v444
    %v509 = vpack.c.b16 %v449, %v445
    %v510 = vpack.c.b16 %v454, %v450
    %v511 = vpack.c.b16 %v455, %v451
    %v512 = vpack.c.b16 %v456, %v452
    %v513 = vpack.c.b16 %v457, %v453
    %v514 = vpack.c.b16 %v462, %v458
    %v515 = vpack.c.b16 %v463, %v459
    %v516 = vpack.c.b16 %v464, %v460
    %v517 = vpack.c.b16 %v465, %v461
    %v518 = vpack.c.b16 %v470, %v466
    %v519 = vpack.c.b16 %v471, %v467
    %v520 = vpack.c.b16 %v472, %v468
    %v521 = vpack.c.b16 %v473, %v469
    %v522 = vpack.c.b16 %v478, %v474
    %v523 = vpack.c.b16 %v479, %v475
    %v524 = vpack.c.b16 %v480, %v476
    %v525 = vpack.c.b16 %v481, %v477
    %v526 = vpack.c.b16 %v486, %v482
    %v527 = vpack.c.b16 %v487, %v483
    %v528 = vpack.c.b16 %v488, %v484
    %v529 = vpack.c.b16 %v489, %v485
    %v530 = vpack.c.b16 %v494, %v490
    %v531 = vpack.c.b16 %v495, %v491
    %v532 = vpack.c.b16 %v496, %v492
    %v533 = vpack.c.b16 %v497, %v493
    %v534 = vpack.c.b16 %v502, %v498
    %v535 = vpack.c.b16 %v503, %v499
    %v536 = vpack.c.b16 %v504, %v500
    %v537 = vpack.c.b16 %v505, %v501
    %570 = vmatprep.subr.bf16.mxu0 %v507
    %571 = vmatpush1.bf16.msra.mxu0 %v506
    %572 = vmatprep.subr.bf16.mxu0 %v511
    %573 = vmatpush1.bf16.msra.mxu0 %v510
    %574 = vmatprep.subr.bf16.mxu0 %v515
    %575 = vmatpush1.bf16.msra.mxu0 %v514
    %576 = vmatprep.subr.bf16.mxu0 %v519
    %577 = vmatpush1.bf16.msra.mxu0 %v518
    %578 = vmatprep.subr.bf16.mxu0 %v523
    %579 = vmatpush1.bf16.msra.mxu0 %v522
    %580 = vmatprep.subr.bf16.mxu0 %v527
    %581 = vmatpush1.bf16.msra.mxu0 %v526
    %582 = vmatprep.subr.bf16.mxu0 %v531
    %583 = vmatpush1.bf16.msra.mxu0 %v530
    %584 = vmatprep.subr.bf16.mxu0 %v535
    %585 = vmatpush1.bf16.msra.mxu0 %v534
    %586 = vmatprep.subr.bf16.mxu0 0
    %587 = vmatpush1.bf16.msra.mxu0 0
    %588 = vmatprep.subr.bf16.mxu0 0
    %589 = vmatpush1.bf16.msra.mxu0 0
    %590 = vmatprep.subr.bf16.mxu0 0
    %591 = vmatpush1.bf16.msra.mxu0 0
    %592 = vmatprep.subr.bf16.mxu0 0
    %593 = vmatpush1.bf16.msra.mxu0 0
    %594 = vmatprep.subr.bf16.mxu0 0
    %595 = vmatpush1.bf16.msra.mxu0 0
    %596 = vmatprep.subr.bf16.mxu0 0
    %597 = vmatpush1.bf16.msra.mxu0 0
    %598 = vmatprep.subr.bf16.mxu0 0
    %599 = vmatpush1.bf16.msra.mxu0 0
    %600 = vmatprep.subr.bf16.mxu0 0
    %601 = vmatpush1.bf16.msra.mxu0 0
    %602 = vmatprep.mubr.bf16.mxu0 0
    %603 = vmatmul.mubr.bf16.gmra.mrb[0].mxu0 %v355
    %v604 = vpop.f32.mrb[0].mxu0
    %v605 = vadd.f32 %v393, %v604
    %v606 = vpop.f32.mrb[0].mxu0
    %v607 = vadd.f32 %v397, %v606
    %v608 = vpop.f32.mrb[0].mxu0
    %v609 = vpop.f32.mrb[0].mxu0
    %610 = vdwg.mxu0
    %611 = vmatprep.subr.bf16.mxu0 %v509
    %612 = vmatpush1.bf16.msra.mxu0 %v508
    %613 = vmatprep.subr.bf16.mxu0 %v513
    %614 = vmatpush1.bf16.msra.mxu0 %v512
    %615 = vmatprep.subr.bf16.mxu0 %v517
    %616 = vmatpush1.bf16.msra.mxu0 %v516
    %617 = vmatprep.subr.bf16.mxu0 %v521
    %618 = vmatpush1.bf16.msra.mxu0 %v520
    %619 = vmatprep.subr.bf16.mxu0 %v525
    %620 = vmatpush1.bf16.msra.mxu0 %v524
    %621 = vmatprep.subr.bf16.mxu0 %v529
    %622 = vmatpush1.bf16.msra.mxu0 %v528
    %623 = vmatprep.subr.bf16.mxu0 %v533
    %624 = vmatpush1.bf16.msra.mxu0 %v532
    %625 = vmatprep.subr.bf16.mxu0 %v537
    %626 = vmatpush1.bf16.msra.mxu0 %v536
    %627 = vmatprep.subr.bf16.mxu0 0
    %628 = vmatpush1.bf16.msra.mxu0 0
    %629 = vmatprep.subr.bf16.mxu0 0
    %630 = vmatpush1.bf16.msra.mxu0 0
    %631 = vmatprep.subr.bf16.mxu0 0
    %632 = vmatpush1.bf16.msra.mxu0 0
    %633 = vmatprep.subr.bf16.mxu0 0
    %634 = vmatpush1.bf16.msra.mxu0 0
    %635 = vmatprep.subr.bf16.mxu0 0
    %636 = vmatpush1.bf16.msra.mxu0 0
    %637 = vmatprep.subr.bf16.mxu0 0
    %638 = vmatpush1.bf16.msra.mxu0 0
    %639 = vmatprep.subr.bf16.mxu0 0
    %640 = vmatpush1.bf16.msra.mxu0 0
    %641 = vmatprep.subr.bf16.mxu0 0
    %642 = vmatpush1.bf16.msra.mxu0 0
    %643 = vmatprep.mubr.bf16.mxu0 0
    %644 = vmatmul.mubr.bf16.gmra.mrb[0].mxu0 %v355
    %v645 = vpop.f32.mrb[0].mxu0
    %v646 = vadd.f32 %v401, %v645
    %v647 = vpop.f32.mrb[0].mxu0
    %v648 = vadd.f32 %v405, %v647
    %v649 = vpop.f32.mrb[0].mxu0
    %v650 = vpop.f32.mrb[0].mxu0
    %651 = vdwg.mxu0
    %vm652 = vcmp.gt.f32.partialorder %v605, 0.0
    %vm653 = vcmp.gt.f32.partialorder %v607, 0.0
    %vm654 = vcmp.gt.f32.partialorder %v646, 0.0
    %vm655 = vcmp.gt.f32.partialorder %v648, 0.0
    %v656 = vmul.f32 %v605, 0.5
    %v657 = vmul.f32 %v607, 0.5
    %v658 = vmul.f32 %v646, 0.5
    %v659 = vmul.f32 %v648, 0.5
    %v660 = vsel %vm652, %v605, %v656
    %v661 = vsel %vm653, %v607, %v657
    %v662 = vsel %vm654, %v646, %v658
    %v663 = vsel %vm655, %v648, %v659
    %v664 = vpack.c.bf16 %v660, %v660
    %v665 = vpack.c.bf16 %v661, %v661
    %v666 = vpack.c.bf16 %v662, %v662
    %v667 = vpack.c.bf16 %v663, %v663
    %v668 = vld [vmem:[#allocation11] sm:$0xff]
    %v669 = vld [vmem:[#allocation11 + $0x8] sm:$0xff]
    %v670 = vld [vmem:[#allocation11 + $0x10] sm:$0xff]
    %v671 = vld [vmem:[#allocation11 + $0x18] sm:$0xff]
    %v672 = vld [vmem:[#allocation11 + $0x20] sm:$0xff]
    %v673 = vld [vmem:[#allocation11 + $0x28] sm:$0xff]
    %v674 = vld [vmem:[#allocation11 + $0x30] sm:$0xff]
    %v675 = vld [vmem:[#allocation11 + $0x38] sm:$0xff]
    %v676 = vld [vmem:[#allocation11 + $0x40] sm:$0xff]
    %v677 = vld [vmem:[#allocation11 + $0x48] sm:$0xff]
    %v678 = vld [vmem:[#allocation11 + $0x50] sm:$0xff]
    %v679 = vld [vmem:[#allocation11 + $0x58] sm:$0xff]
    %v680 = vld [vmem:[#allocation11 + $0x60] sm:$0xff]
    %v681 = vld [vmem:[#allocation11 + $0x68] sm:$0xff]
    %v682 = vld [vmem:[#allocation11 + $0x70] sm:$0xff]
    %v683 = vld [vmem:[#allocation11 + $0x78] sm:$0xff]
    %v684 = vld [vmem:[#allocation11 + $0x80] sm:$0xff]
    %v685 = vld [vmem:[#allocation11 + $0x88] sm:$0xff]
    %v686 = vld [vmem:[#allocation11 + $0x90] sm:$0xff]
    %v687 = vld [vmem:[#allocation11 + $0x98] sm:$0xff]
    %v688 = vld [vmem:[#allocation11 + $0xa0] sm:$0xff]
    %v689 = vld [vmem:[#allocation11 + $0xa8] sm:$0xff]
    %v690 = vld [vmem:[#allocation11 + $0xb0] sm:$0xff]
    %v691 = vld [vmem:[#allocation11 + $0xb8] sm:$0xff]
    %v692 = vld [vmem:[#allocation11 + $0xc0] sm:$0xff]
    %v693 = vld [vmem:[#allocation11 + $0xc8] sm:$0xff]
    %v694 = vld [vmem:[#allocation11 + $0xd0] sm:$0xff]
    %v695 = vld [vmem:[#allocation11 + $0xd8] sm:$0xff]
    %v696 = vld [vmem:[#allocation11 + $0xe0] sm:$0xff]
    %v697 = vld [vmem:[#allocation11 + $0xe8] sm:$0xff]
    %v698 = vld [vmem:[#allocation11 + $0xf0] sm:$0xff]
    %v699 = vld [vmem:[#allocation11 + $0xf8] sm:$0xff]
    %v700 = vld [vmem:[#allocation11 + $0x100] sm:$0xff]
    %v701 = vld [vmem:[#allocation11 + $0x108] sm:$0xff]
    %v702 = vld [vmem:[#allocation11 + $0x110] sm:$0xff]
    %v703 = vld [vmem:[#allocation11 + $0x118] sm:$0xff]
    %v704 = vld [vmem:[#allocation11 + $0x120] sm:$0xff]
    %v705 = vld [vmem:[#allocation11 + $0x128] sm:$0xff]
    %v706 = vld [vmem:[#allocation11 + $0x130] sm:$0xff]
    %v707 = vld [vmem:[#allocation11 + $0x138] sm:$0xff]
    %v708 = vld [vmem:[#allocation11 + $0x140] sm:$0xff]
    %v709 = vld [vmem:[#allocation11 + $0x148] sm:$0xff]
    %v710 = vld [vmem:[#allocation11 + $0x150] sm:$0xff]
    %v711 = vld [vmem:[#allocation11 + $0x158] sm:$0xff]
    %v712 = vld [vmem:[#allocation11 + $0x160] sm:$0xff]
    %v713 = vld [vmem:[#allocation11 + $0x168] sm:$0xff]
    %v714 = vld [vmem:[#allocation11 + $0x170] sm:$0xff]
    %v715 = vld [vmem:[#allocation11 + $0x178] sm:$0xff]
    %v716 = vld [vmem:[#allocation11 + $0x180] sm:$0xff]
    %v717 = vld [vmem:[#allocation11 + $0x188] sm:$0xff]
    %v718 = vld [vmem:[#allocation11 + $0x190] sm:$0xff]
    %v719 = vld [vmem:[#allocation11 + $0x198] sm:$0xff]
    %v720 = vld [vmem:[#allocation11 + $0x1a0] sm:$0xff]
    %v721 = vld [vmem:[#allocation11 + $0x1a8] sm:$0xff]
    %v722 = vld [vmem:[#allocation11 + $0x1b0] sm:$0xff]
    %v723 = vld [vmem:[#allocation11 + $0x1b8] sm:$0xff]
    %v724 = vld [vmem:[#allocation11 + $0x1c0] sm:$0xff]
    %v725 = vld [vmem:[#allocation11 + $0x1c8] sm:$0xff]
    %v726 = vld [vmem:[#allocation11 + $0x1d0] sm:$0xff]
    %v727 = vld [vmem:[#allocation11 + $0x1d8] sm:$0xff]
    %v728 = vld [vmem:[#allocation11 + $0x1e0] sm:$0xff]
    %v729 = vld [vmem:[#allocation11 + $0x1e8] sm:$0xff]
    %v730 = vld [vmem:[#allocation11 + $0x1f0] sm:$0xff]
    %v731 = vld [vmem:[#allocation11 + $0x1f8] sm:$0xff]
    %v732 = vld [vmem:[#allocation11 + $0x200] sm:$0xff]
    %v733 = vld [vmem:[#allocation11 + $0x208] sm:$0xff]
    %v734 = vld [vmem:[#allocation11 + $0x210] sm:$0xff]
    %v735 = vld [vmem:[#allocation11 + $0x218] sm:$0xff]
    %v736 = vld [vmem:[#allocation11 + $0x220] sm:$0xff]
    %v737 = vld [vmem:[#allocation11 + $0x228] sm:$0xff]
    %v738 = vld [vmem:[#allocation11 + $0x230] sm:$0xff]
    %v739 = vld [vmem:[#allocation11 + $0x238] sm:$0xff]
    %v740 = vld [vmem:[#allocation11 + $0x240] sm:$0xff]
    %v741 = vld [vmem:[#allocation11 + $0x248] sm:$0xff]
    %v742 = vld [vmem:[#allocation11 + $0x250] sm:$0xff]
    %v743 = vld [vmem:[#allocation11 + $0x258] sm:$0xff]
    %v744 = vld [vmem:[#allocation11 + $0x260] sm:$0xff]
    %v745 = vld [vmem:[#allocation11 + $0x268] sm:$0xff]
    %v746 = vld [vmem:[#allocation11 + $0x270] sm:$0xff]
    %v747 = vld [vmem:[#allocation11 + $0x278] sm:$0xff]
    %v748 = vld [vmem:[#allocation11 + $0x280] sm:$0xff]
    %v749 = vld [vmem:[#allocation11 + $0x288] sm:$0xff]
    %v750 = vld [vmem:[#allocation11 + $0x290] sm:$0xff]
    %v751 = vld [vmem:[#allocation11 + $0x298] sm:$0xff]
    %v752 = vld [vmem:[#allocation11 + $0x2a0] sm:$0xff]
    %v753 = vld [vmem:[#allocation11 + $0x2a8] sm:$0xff]
    %v754 = vld [vmem:[#allocation11 + $0x2b0] sm:$0xff]
    %v755 = vld [vmem:[#allocation11 + $0x2b8] sm:$0xff]
    %v756 = vld [vmem:[#allocation11 + $0x2c0] sm:$0xff]
    %v757 = vld [vmem:[#allocation11 + $0x2c8] sm:$0xff]
    %v758 = vld [vmem:[#allocation11 + $0x2d0] sm:$0xff]
    %v759 = vld [vmem:[#allocation11 + $0x2d8] sm:$0xff]
    %v760 = vld [vmem:[#allocation11 + $0x2e0] sm:$0xff]
    %v761 = vld [vmem:[#allocation11 + $0x2e8] sm:$0xff]
    %v762 = vld [vmem:[#allocation11 + $0x2f0] sm:$0xff]
    %v763 = vld [vmem:[#allocation11 + $0x2f8] sm:$0xff]
    %v764 = vld [vmem:[#allocation11 + $0x300] sm:$0xff]
    %v765 = vld [vmem:[#allocation11 + $0x308] sm:$0xff]
    %v766 = vld [vmem:[#allocation11 + $0x310] sm:$0xff]
    %v767 = vld [vmem:[#allocation11 + $0x318] sm:$0xff]
    %v768 = vld [vmem:[#allocation11 + $0x320] sm:$0xff]
    %v769 = vld [vmem:[#allocation11 + $0x328] sm:$0xff]
    %v770 = vld [vmem:[#allocation11 + $0x330] sm:$0xff]
    %v771 = vld [vmem:[#allocation11 + $0x338] sm:$0xff]
    %v772 = vld [vmem:[#allocation11 + $0x340] sm:$0xff]
    %v773 = vld [vmem:[#allocation11 + $0x348] sm:$0xff]
    %v774 = vld [vmem:[#allocation11 + $0x350] sm:$0xff]
    %v775 = vld [vmem:[#allocation11 + $0x358] sm:$0xff]
    %v776 = vld [vmem:[#allocation11 + $0x360] sm:$0xff]
    %v777 = vld [vmem:[#allocation11 + $0x368] sm:$0xff]
    %v778 = vld [vmem:[#allocation11 + $0x370] sm:$0xff]
    %v779 = vld [vmem:[#allocation11 + $0x378] sm:$0xff]
    %v780 = vld [vmem:[#allocation11 + $0x380] sm:$0xff]
    %v781 = vld [vmem:[#allocation11 + $0x388] sm:$0xff]
    %v782 = vld [vmem:[#allocation11 + $0x390] sm:$0xff]
    %v783 = vld [vmem:[#allocation11 + $0x398] sm:$0xff]
    %v784 = vld [vmem:[#allocation11 + $0x3a0] sm:$0xff]
    %v785 = vld [vmem:[#allocation11 + $0x3a8] sm:$0xff]
    %v786 = vld [vmem:[#allocation11 + $0x3b0] sm:$0xff]
    %v787 = vld [vmem:[#allocation11 + $0x3b8] sm:$0xff]
    %v788 = vld [vmem:[#allocation11 + $0x3c0] sm:$0xff]
    %v789 = vld [vmem:[#allocation11 + $0x3c8] sm:$0xff]
    %v790 = vld [vmem:[#allocation11 + $0x3d0] sm:$0xff]
    %v791 = vld [vmem:[#allocation11 + $0x3d8] sm:$0xff]
    %v792 = vld [vmem:[#allocation11 + $0x3e0] sm:$0xff]
    %v793 = vld [vmem:[#allocation11 + $0x3e8] sm:$0xff]
    %v794 = vld [vmem:[#allocation11 + $0x3f0] sm:$0xff]
    %v795 = vld [vmem:[#allocation11 + $0x3f8] sm:$0xff]
    %v796 = vld [vmem:[#allocation12] sm:$0xf]
    %v798 = vlaneseq
    %v799 = vshrl.u32 %v798, 7
    %v800 = vsub.s32 0, %v799
    %v801 = vrot.slane %v796, %v800
    %v802 = vlaneseq
    %v803 = vshrl.u32 %v802, 7
    %v804 = vsub.s32 1, %v803
    %v805 = vrot.slane %v796, %v804
    %v806 = vlaneseq
    %v807 = vshrl.u32 %v806, 7
    %v808 = vsub.s32 2, %v807
    %v809 = vrot.slane %v796, %v808
    %v810 = vlaneseq
    %v811 = vshrl.u32 %v810, 7
    %v812 = vsub.s32 3, %v811
    %v813 = vrot.slane %v796, %v812
    %v946 = vunpack.c.l.b16 %v668
    %v947 = vunpack.c.h.b16 %v668
    %v948 = vunpack.c.l.b16 %v669
    %v949 = vunpack.c.h.b16 %v669
    %v950 = vunpack.c.l.b16 %v670
    %v951 = vunpack.c.h.b16 %v670
    %v952 = vunpack.c.l.b16 %v671
    %v953 = vunpack.c.h.b16 %v671
    %v954 = vunpack.c.l.b16 %v672
    %v955 = vunpack.c.h.b16 %v672
    %v956 = vunpack.c.l.b16 %v673
    %v957 = vunpack.c.h.b16 %v673
    %v958 = vunpack.c.l.b16 %v674
    %v959 = vunpack.c.h.b16 %v674
    %v960 = vunpack.c.l.b16 %v675
    %v961 = vunpack.c.h.b16 %v675
    %v962 = vunpack.c.l.b16 %v676
    %v963 = vunpack.c.h.b16 %v676
    %v964 = vunpack.c.l.b16 %v677
    %v965 = vunpack.c.h.b16 %v677
    %v966 = vunpack.c.l.b16 %v678
    %v967 = vunpack.c.h.b16 %v678
    %v968 = vunpack.c.l.b16 %v679
    %v969 = vunpack.c.h.b16 %v679
    %v970 = vunpack.c.l.b16 %v680
    %v971 = vunpack.c.h.b16 %v680
    %v972 = vunpack.c.l.b16 %v681
    %v973 = vunpack.c.h.b16 %v681
    %v974 = vunpack.c.l.b16 %v682
    %v975 = vunpack.c.h.b16 %v682
    %v976 = vunpack.c.l.b16 %v683
    %v977 = vunpack.c.h.b16 %v683
    %v978 = vunpack.c.l.b16 %v684
    %v979 = vunpack.c.h.b16 %v684
    %v980 = vunpack.c.l.b16 %v685
    %v981 = vunpack.c.h.b16 %v685
    %v982 = vunpack.c.l.b16 %v686
    %v983 = vunpack.c.h.b16 %v686
    %v984 = vunpack.c.l.b16 %v687
    %v985 = vunpack.c.h.b16 %v687
    %v986 = vunpack.c.l.b16 %v688
    %v987 = vunpack.c.h.b16 %v688
    %v988 = vunpack.c.l.b16 %v689
    %v989 = vunpack.c.h.b16 %v689
    %v990 = vunpack.c.l.b16 %v690
    %v991 = vunpack.c.h.b16 %v690
    %v992 = vunpack.c.l.b16 %v691
    %v993 = vunpack.c.h.b16 %v691
    %v994 = vunpack.c.l.b16 %v692
    %v995 = vunpack.c.h.b16 %v692
    %v996 = vunpack.c.l.b16 %v693
    %v997 = vunpack.c.h.b16 %v693
    %v998 = vunpack.c.l.b16 %v694
    %v999 = vunpack.c.h.b16 %v694
    %v1000 = vunpack.c.l.b16 %v695
    %v1001 = vunpack.c.h.b16 %v695
    %v1002 = vunpack.c.l.b16 %v696
    %v1003 = vunpack.c.h.b16 %v696
    %v1004 = vunpack.c.l.b16 %v697
    %v1005 = vunpack.c.h.b16 %v697
    %v1006 = vunpack.c.l.b16 %v698
    %v1007 = vunpack.c.h.b16 %v698
    %v1008 = vunpack.c.l.b16 %v699
    %v1009 = vunpack.c.h.b16 %v699
    %v1010 = vunpack.c.l.b16 %v700
    %v1011 = vunpack.c.h.b16 %v700
    %v1012 = vunpack.c.l.b16 %v701
    %v1013 = vunpack.c.h.b16 %v701
    %v1014 = vunpack.c.l.b16 %v702
    %v1015 = vunpack.c.h.b16 %v702
    %v1016 = vunpack.c.l.b16 %v703
    %v1017 = vunpack.c.h.b16 %v703
    %v1018 = vunpack.c.l.b16 %v704
    %v1019 = vunpack.c.h.b16 %v704
    %v1020 = vunpack.c.l.b16 %v705
    %v1021 = vunpack.c.h.b16 %v705
    %v1022 = vunpack.c.l.b16 %v706
    %v1023 = vunpack.c.h.b16 %v706
    %v1024 = vunpack.c.l.b16 %v707
    %v1025 = vunpack.c.h.b16 %v707
    %v1026 = vunpack.c.l.b16 %v708
    %v1027 = vunpack.c.h.b16 %v708
    %v1028 = vunpack.c.l.b16 %v709
    %v1029 = vunpack.c.h.b16 %v709
    %v1030 = vunpack.c.l.b16 %v710
    %v1031 = vunpack.c.h.b16 %v710
    %v1032 = vunpack.c.l.b16 %v711
    %v1033 = vunpack.c.h.b16 %v711
    %v1034 = vunpack.c.l.b16 %v712
    %v1035 = vunpack.c.h.b16 %v712
    %v1036 = vunpack.c.l.b16 %v713
    %v1037 = vunpack.c.h.b16 %v713
    %v1038 = vunpack.c.l.b16 %v714
    %v1039 = vunpack.c.h.b16 %v714
    %v1040 = vunpack.c.l.b16 %v715
    %v1041 = vunpack.c.h.b16 %v715
    %v1042 = vunpack.c.l.b16 %v716
    %v1043 = vunpack.c.h.b16 %v716
    %v1044 = vunpack.c.l.b16 %v717
    %v1045 = vunpack.c.h.b16 %v717
    %v1046 = vunpack.c.l.b16 %v718
    %v1047 = vunpack.c.h.b16 %v718
    %v1048 = vunpack.c.l.b16 %v719
    %v1049 = vunpack.c.h.b16 %v719
    %v1050 = vunpack.c.l.b16 %v720
    %v1051 = vunpack.c.h.b16 %v720
    %v1052 = vunpack.c.l.b16 %v721
    %v1053 = vunpack.c.h.b16 %v721
    %v1054 = vunpack.c.l.b16 %v722
    %v1055 = vunpack.c.h.b16 %v722
    %v1056 = vunpack.c.l.b16 %v723
    %v1057 = vunpack.c.h.b16 %v723
    %v1058 = vunpack.c.l.b16 %v724
    %v1059 = vunpack.c.h.b16 %v724
    %v1060 = vunpack.c.l.b16 %v725
    %v1061 = vunpack.c.h.b16 %v725
    %v1062 = vunpack.c.l.b16 %v726
    %v1063 = vunpack.c.h.b16 %v726
    %v1064 = vunpack.c.l.b16 %v727
    %v1065 = vunpack.c.h.b16 %v727
    %v1066 = vunpack.c.l.b16 %v728
    %v1067 = vunpack.c.h.b16 %v728
    %v1068 = vunpack.c.l.b16 %v729
    %v1069 = vunpack.c.h.b16 %v729
    %v1070 = vunpack.c.l.b16 %v730
    %v1071 = vunpack.c.h.b16 %v730
    %v1072 = vunpack.c.l.b16 %v731
    %v1073 = vunpack.c.h.b16 %v731
    %v1074 = vunpack.c.l.b16 %v732
    %v1075 = vunpack.c.h.b16 %v732
    %v1076 = vunpack.c.l.b16 %v733
    %v1077 = vunpack.c.h.b16 %v733
    %v1078 = vunpack.c.l.b16 %v734
    %v1079 = vunpack.c.h.b16 %v734
    %v1080 = vunpack.c.l.b16 %v735
    %v1081 = vunpack.c.h.b16 %v735
    %v1082 = vunpack.c.l.b16 %v736
    %v1083 = vunpack.c.h.b16 %v736
    %v1084 = vunpack.c.l.b16 %v737
    %v1085 = vunpack.c.h.b16 %v737
    %v1086 = vunpack.c.l.b16 %v738
    %v1087 = vunpack.c.h.b16 %v738
    %v1088 = vunpack.c.l.b16 %v739
    %v1089 = vunpack.c.h.b16 %v739
    %v1090 = vunpack.c.l.b16 %v740
    %v1091 = vunpack.c.h.b16 %v740
    %v1092 = vunpack.c.l.b16 %v741
    %v1093 = vunpack.c.h.b16 %v741
    %v1094 = vunpack.c.l.b16 %v742
    %v1095 = vunpack.c.h.b16 %v742
    %v1096 = vunpack.c.l.b16 %v743
    %v1097 = vunpack.c.h.b16 %v743
    %v1098 = vunpack.c.l.b16 %v744
    %v1099 = vunpack.c.h.b16 %v744
    %v1100 = vunpack.c.l.b16 %v745
    %v1101 = vunpack.c.h.b16 %v745
    %v1102 = vunpack.c.l.b16 %v746
    %v1103 = vunpack.c.h.b16 %v746
    %v1104 = vunpack.c.l.b16 %v747
    %v1105 = vunpack.c.h.b16 %v747
    %v1106 = vunpack.c.l.b16 %v748
    %v1107 = vunpack.c.h.b16 %v748
    %v1108 = vunpack.c.l.b16 %v749
    %v1109 = vunpack.c.h.b16 %v749
    %v1110 = vunpack.c.l.b16 %v750
    %v1111 = vunpack.c.h.b16 %v750
    %v1112 = vunpack.c.l.b16 %v751
    %v1113 = vunpack.c.h.b16 %v751
    %v1114 = vunpack.c.l.b16 %v752
    %v1115 = vunpack.c.h.b16 %v752
    %v1116 = vunpack.c.l.b16 %v753
    %v1117 = vunpack.c.h.b16 %v753
    %v1118 = vunpack.c.l.b16 %v754
    %v1119 = vunpack.c.h.b16 %v754
    %v1120 = vunpack.c.l.b16 %v755
    %v1121 = vunpack.c.h.b16 %v755
    %v1122 = vunpack.c.l.b16 %v756
    %v1123 = vunpack.c.h.b16 %v756
    %v1124 = vunpack.c.l.b16 %v757
    %v1125 = vunpack.c.h.b16 %v757
    %v1126 = vunpack.c.l.b16 %v758
    %v1127 = vunpack.c.h.b16 %v758
    %v1128 = vunpack.c.l.b16 %v759
    %v1129 = vunpack.c.h.b16 %v759
    %v1130 = vunpack.c.l.b16 %v760
    %v1131 = vunpack.c.h.b16 %v760
    %v1132 = vunpack.c.l.b16 %v761
    %v1133 = vunpack.c.h.b16 %v761
    %v1134 = vunpack.c.l.b16 %v762
    %v1135 = vunpack.c.h.b16 %v762
    %v1136 = vunpack.c.l.b16 %v763
    %v1137 = vunpack.c.h.b16 %v763
    %v1138 = vunpack.c.l.b16 %v764
    %v1139 = vunpack.c.h.b16 %v764
    %v1140 = vunpack.c.l.b16 %v765
    %v1141 = vunpack.c.h.b16 %v765
    %v1142 = vunpack.c.l.b16 %v766
    %v1143 = vunpack.c.h.b16 %v766
    %v1144 = vunpack.c.l.b16 %v767
    %v1145 = vunpack.c.h.b16 %v767
    %v1146 = vunpack.c.l.b16 %v768
    %v1147 = vunpack.c.h.b16 %v768
    %v1148 = vunpack.c.l.b16 %v769
    %v1149 = vunpack.c.h.b16 %v769
    %v1150 = vunpack.c.l.b16 %v770
    %v1151 = vunpack.c.h.b16 %v770
    %v1152 = vunpack.c.l.b16 %v771
    %v1153 = vunpack.c.h.b16 %v771
    %v1154 = vunpack.c.l.b16 %v772
    %v1155 = vunpack.c.h.b16 %v772
    %v1156 = vunpack.c.l.b16 %v773
    %v1157 = vunpack.c.h.b16 %v773
    %v1158 = vunpack.c.l.b16 %v774
    %v1159 = vunpack.c.h.b16 %v774
    %v1160 = vunpack.c.l.b16 %v775
    %v1161 = vunpack.c.h.b16 %v775
    %v1162 = vunpack.c.l.b16 %v776
    %v1163 = vunpack.c.h.b16 %v776
    %v1164 = vunpack.c.l.b16 %v777
    %v1165 = vunpack.c.h.b16 %v777
    %v1166 = vunpack.c.l.b16 %v778
    %v1167 = vunpack.c.h.b16 %v778
    %v1168 = vunpack.c.l.b16 %v779
    %v1169 = vunpack.c.h.b16 %v779
    %v1170 = vunpack.c.l.b16 %v780
    %v1171 = vunpack.c.h.b16 %v780
    %v1172 = vunpack.c.l.b16 %v781
    %v1173 = vunpack.c.h.b16 %v781
    %v1174 = vunpack.c.l.b16 %v782
    %v1175 = vunpack.c.h.b16 %v782
    %v1176 = vunpack.c.l.b16 %v783
    %v1177 = vunpack.c.h.b16 %v783
    %v1178 = vunpack.c.l.b16 %v784
    %v1179 = vunpack.c.h.b16 %v784
    %v1180 = vunpack.c.l.b16 %v785
    %v1181 = vunpack.c.h.b16 %v785
    %v1182 = vunpack.c.l.b16 %v786
    %v1183 = vunpack.c.h.b16 %v786
    %v1184 = vunpack.c.l.b16 %v787
    %v1185 = vunpack.c.h.b16 %v787
    %v1186 = vunpack.c.l.b16 %v788
    %v1187 = vunpack.c.h.b16 %v788
    %v1188 = vunpack.c.l.b16 %v789
    %v1189 = vunpack.c.h.b16 %v789
    %v1190 = vunpack.c.l.b16 %v790
    %v1191 = vunpack.c.h.b16 %v790
    %v1192 = vunpack.c.l.b16 %v791
    %v1193 = vunpack.c.h.b16 %v791
    %v1194 = vunpack.c.l.b16 %v792
    %v1195 = vunpack.c.h.b16 %v792
    %v1196 = vunpack.c.l.b16 %v793
    %v1197 = vunpack.c.h.b16 %v793
    %v1198 = vunpack.c.l.b16 %v794
    %v1199 = vunpack.c.h.b16 %v794
    %v1200 = vunpack.c.l.b16 %v795
    %v1201 = vunpack.c.h.b16 %v795
    %v1202 = vpack.c.b16 %v950, %v946
    %v1203 = vpack.c.b16 %v951, %v947
    %v1204 = vpack.c.b16 %v952, %v948
    %v1205 = vpack.c.b16 %v953, %v949
    %v1206 = vpack.c.b16 %v958, %v954
    %v1207 = vpack.c.b16 %v959, %v955
    %v1208 = vpack.c.b16 %v960, %v956
    %v1209 = vpack.c.b16 %v961, %v957
    %v1210 = vpack.c.b16 %v966, %v962
    %v1211 = vpack.c.b16 %v967, %v963
    %v1212 = vpack.c.b16 %v968, %v964
    %v1213 = vpack.c.b16 %v969, %v965
    %v1214 = vpack.c.b16 %v974, %v970
    %v1215 = vpack.c.b16 %v975, %v971
    %v1216 = vpack.c.b16 %v976, %v972
    %v1217 = vpack.c.b16 %v977, %v973
    %v1218 = vpack.c.b16 %v982, %v978
    %v1219 = vpack.c.b16 %v983, %v979
    %v1220 = vpack.c.b16 %v984, %v980
    %v1221 = vpack.c.b16 %v985, %v981
    %v1222 = vpack.c.b16 %v990, %v986
    %v1223 = vpack.c.b16 %v991, %v987
    %v1224 = vpack.c.b16 %v992, %v988
    %v1225 = vpack.c.b16 %v993, %v989
    %v1226 = vpack.c.b16 %v998, %v994
    %v1227 = vpack.c.b16 %v999, %v995
    %v1228 = vpack.c.b16 %v1000, %v996
    %v1229 = vpack.c.b16 %v1001, %v997
    %v1230 = vpack.c.b16 %v1006, %v1002
    %v1231 = vpack.c.b16 %v1007, %v1003
    %v1232 = vpack.c.b16 %v1008, %v1004
    %v1233 = vpack.c.b16 %v1009, %v1005
    %v1234 = vpack.c.b16 %v1014, %v1010
    %v1235 = vpack.c.b16 %v1015, %v1011
    %v1236 = vpack.c.b16 %v1016, %v1012
    %v1237 = vpack.c.b16 %v1017, %v1013
    %v1238 = vpack.c.b16 %v1022, %v1018
    %v1239 = vpack.c.b16 %v1023, %v1019
    %v1240 = vpack.c.b16 %v1024, %v1020
    %v1241 = vpack.c.b16 %v1025, %v1021
    %v1242 = vpack.c.b16 %v1030, %v1026
    %v1243 = vpack.c.b16 %v1031, %v1027
    %v1244 = vpack.c.b16 %v1032, %v1028
    %v1245 = vpack.c.b16 %v1033, %v1029
    %v1246 = vpack.c.b16 %v1038, %v1034
    %v1247 = vpack.c.b16 %v1039, %v1035
    %v1248 = vpack.c.b16 %v1040, %v1036
    %v1249 = vpack.c.b16 %v1041, %v1037
    %v1250 = vpack.c.b16 %v1046, %v1042
    %v1251 = vpack.c.b16 %v1047, %v1043
    %v1252 = vpack.c.b16 %v1048, %v1044
    %v1253 = vpack.c.b16 %v1049, %v1045
    %v1254 = vpack.c.b16 %v1054, %v1050
    %v1255 = vpack.c.b16 %v1055, %v1051
    %v1256 = vpack.c.b16 %v1056, %v1052
    %v1257 = vpack.c.b16 %v1057, %v1053
    %v1258 = vpack.c.b16 %v1062, %v1058
    %v1259 = vpack.c.b16 %v1063, %v1059
    %v1260 = vpack.c.b16 %v1064, %v1060
    %v1261 = vpack.c.b16 %v1065, %v1061
    %v1262 = vpack.c.b16 %v1070, %v1066
    %v1263 = vpack.c.b16 %v1071, %v1067
    %v1264 = vpack.c.b16 %v1072, %v1068
    %v1265 = vpack.c.b16 %v1073, %v1069
    %v1266 = vpack.c.b16 %v1078, %v1074
    %v1267 = vpack.c.b16 %v1079, %v1075
    %v1268 = vpack.c.b16 %v1080, %v1076
    %v1269 = vpack.c.b16 %v1081, %v1077
    %v1270 = vpack.c.b16 %v1086, %v1082
    %v1271 = vpack.c.b16 %v1087, %v1083
    %v1272 = vpack.c.b16 %v1088, %v1084
    %v1273 = vpack.c.b16 %v1089, %v1085
    %v1274 = vpack.c.b16 %v1094, %v1090
    %v1275 = vpack.c.b16 %v1095, %v1091
    %v1276 = vpack.c.b16 %v1096, %v1092
    %v1277 = vpack.c.b16 %v1097, %v1093
    %v1278 = vpack.c.b16 %v1102, %v1098
    %v1279 = vpack.c.b16 %v1103, %v1099
    %v1280 = vpack.c.b16 %v1104, %v1100
    %v1281 = vpack.c.b16 %v1105, %v1101
    %v1282 = vpack.c.b16 %v1110, %v1106
    %v1283 = vpack.c.b16 %v1111, %v1107
    %v1284 = vpack.c.b16 %v1112, %v1108
    %v1285 = vpack.c.b16 %v1113, %v1109
    %v1286 = vpack.c.b16 %v1118, %v1114
    %v1287 = vpack.c.b16 %v1119, %v1115
    %v1288 = vpack.c.b16 %v1120, %v1116
    %v1289 = vpack.c.b16 %v1121, %v1117
    %v1290 = vpack.c.b16 %v1126, %v1122
    %v1291 = vpack.c.b16 %v1127, %v1123
    %v1292 = vpack.c.b16 %v1128, %v1124
    %v1293 = vpack.c.b16 %v1129, %v1125
    %v1294 = vpack.c.b16 %v1134, %v1130
    %v1295 = vpack.c.b16 %v1135, %v1131
    %v1296 = vpack.c.b16 %v1136, %v1132
    %v1297 = vpack.c.b16 %v1137, %v1133
    %v1298 = vpack.c.b16 %v1142, %v1138
    %v1299 = vpack.c.b16 %v1143, %v1139
    %v1300 = vpack.c.b16 %v1144, %v1140
    %v1301 = vpack.c.b16 %v1145, %v1141
    %v1302 = vpack.c.b16 %v1150, %v1146
    %v1303 = vpack.c.b16 %v1151, %v1147
    %v1304 = vpack.c.b16 %v1152, %v1148
    %v1305 = vpack.c.b16 %v1153, %v1149
    %v1306 = vpack.c.b16 %v1158, %v1154
    %v1307 = vpack.c.b16 %v1159, %v1155
    %v1308 = vpack.c.b16 %v1160, %v1156
    %v1309 = vpack.c.b16 %v1161, %v1157
    %v1310 = vpack.c.b16 %v1166, %v1162
    %v1311 = vpack.c.b16 %v1167, %v1163
    %v1312 = vpack.c.b16 %v1168, %v1164
    %v1313 = vpack.c.b16 %v1169, %v1165
    %v1314 = vpack.c.b16 %v1174, %v1170
    %v1315 = vpack.c.b16 %v1175, %v1171
    %v1316 = vpack.c.b16 %v1176, %v1172
    %v1317 = vpack.c.b16 %v1177, %v1173
    %v1318 = vpack.c.b16 %v1182, %v1178
    %v1319 = vpack.c.b16 %v1183, %v1179
    %v1320 = vpack.c.b16 %v1184, %v1180
    %v1321 = vpack.c.b16 %v1185, %v1181
    %v1322 = vpack.c.b16 %v1190, %v1186
    %v1323 = vpack.c.b16 %v1191, %v1187
    %v1324 = vpack.c.b16 %v1192, %v1188
    %v1325 = vpack.c.b16 %v1193, %v1189
    %v1326 = vpack.c.b16 %v1198, %v1194
    %v1327 = vpack.c.b16 %v1199, %v1195
    %v1328 = vpack.c.b16 %v1200, %v1196
    %v1329 = vpack.c.b16 %v1201, %v1197
    %1458 = vmatprep.subr.bf16.mxu0 %v1203
    %1459 = vmatpush1.bf16.msra.mxu0 %v1202
    %1460 = vmatprep.subr.bf16.mxu0 %v1207
    %1461 = vmatpush1.bf16.msra.mxu0 %v1206
    %1462 = vmatprep.subr.bf16.mxu0 %v1211
    %1463 = vmatpush1.bf16.msra.mxu0 %v1210
    %1464 = vmatprep.subr.bf16.mxu0 %v1215
    %1465 = vmatpush1.bf16.msra.mxu0 %v1214
    %1466 = vmatprep.subr.bf16.mxu0 %v1219
    %1467 = vmatpush1.bf16.msra.mxu0 %v1218
    %1468 = vmatprep.subr.bf16.mxu0 %v1223
    %1469 = vmatpush1.bf16.msra.mxu0 %v1222
    %1470 = vmatprep.subr.bf16.mxu0 %v1227
    %1471 = vmatpush1.bf16.msra.mxu0 %v1226
    %1472 = vmatprep.subr.bf16.mxu0 %v1231
    %1473 = vmatpush1.bf16.msra.mxu0 %v1230
    %1474 = vmatprep.subr.bf16.mxu0 %v1235
    %1475 = vmatpush1.bf16.msra.mxu0 %v1234
    %1476 = vmatprep.subr.bf16.mxu0 %v1239
    %1477 = vmatpush1.bf16.msra.mxu0 %v1238
    %1478 = vmatprep.subr.bf16.mxu0 %v1243
    %1479 = vmatpush1.bf16.msra.mxu0 %v1242
    %1480 = vmatprep.subr.bf16.mxu0 %v1247
    %1481 = vmatpush1.bf16.msra.mxu0 %v1246
    %1482 = vmatprep.subr.bf16.mxu0 %v1251
    %1483 = vmatpush1.bf16.msra.mxu0 %v1250
    %1484 = vmatprep.subr.bf16.mxu0 %v1255
    %1485 = vmatpush1.bf16.msra.mxu0 %v1254
    %1486 = vmatprep.subr.bf16.mxu0 %v1259
    %1487 = vmatpush1.bf16.msra.mxu0 %v1258
    %1488 = vmatprep.subr.bf16.mxu0 %v1263
    %1489 = vmatpush1.bf16.msra.mxu0 %v1262
    %1490 = vmatprep.mubr.bf16.mxu0 %v665
    %1491 = vmatmul.mubr.bf16.gmra.mrb[0].mxu0 %v664
    %v1492 = vpop.f32.mrb[0].mxu0
    %v1493 = vadd.f32 %v801, %v1492
    %v1494 = vpop.f32.mrb[0].mxu0
    %v1495 = vadd.f32 %v805, %v1494
    %v1496 = vpop.f32.mrb[0].mxu0
    %v1497 = vpop.f32.mrb[0].mxu0
    %1498 = vdwg.mxu0
    %1499 = vmatprep.subr.bf16.mxu0 %v1267
    %1500 = vmatpush1.bf16.msra.mxu0 %v1266
    %1501 = vmatprep.subr.bf16.mxu0 %v1271
    %1502 = vmatpush1.bf16.msra.mxu0 %v1270
    %1503 = vmatprep.subr.bf16.mxu0 %v1275
    %1504 = vmatpush1.bf16.msra.mxu0 %v1274
    %1505 = vmatprep.subr.bf16.mxu0 %v1279
    %1506 = vmatpush1.bf16.msra.mxu0 %v1278
    %1507 = vmatprep.subr.bf16.mxu0 %v1283
    %1508 = vmatpush1.bf16.msra.mxu0 %v1282
    %1509 = vmatprep.subr.bf16.mxu0 %v1287
    %1510 = vmatpush1.bf16.msra.mxu0 %v1286
    %1511 = vmatprep.subr.bf16.mxu0 %v1291
    %1512 = vmatpush1.bf16.msra.mxu0 %v1290
    %1513 = vmatprep.subr.bf16.mxu0 %v1295
    %1514 = vmatpush1.bf16.msra.mxu0 %v1294
    %1515 = vmatprep.subr.bf16.mxu0 %v1299
    %1516 = vmatpush1.bf16.msra.mxu0 %v1298
    %1517 = vmatprep.subr.bf16.mxu0 %v1303
    %1518 = vmatpush1.bf16.msra.mxu0 %v1302
    %1519 = vmatprep.subr.bf16.mxu0 %v1307
    %1520 = vmatpush1.bf16.msra.mxu0 %v1306
    %1521 = vmatprep.subr.bf16.mxu0 %v1311
    %1522 = vmatpush1.bf16.msra.mxu0 %v1310
    %1523 = vmatprep.subr.bf16.mxu0 %v1315
    %1524 = vmatpush1.bf16.msra.mxu0 %v1314
    %1525 = vmatprep.subr.bf16.mxu0 %v1319
    %1526 = vmatpush1.bf16.msra.mxu0 %v1318
    %1527 = vmatprep.subr.bf16.mxu0 %v1323
    %1528 = vmatpush1.bf16.msra.mxu0 %v1322
    %1529 = vmatprep.subr.bf16.mxu0 %v1327
    %1530 = vmatpush1.bf16.msra.mxu0 %v1326
    %1531 = vmatprep.mubr.bf16.mxu0 %v667
    %1532 = vmatmul.mubr.bf16.gmra.mrb[0].mxu0 %v666
    %v1533 = vpop.f32.mrb[0].mxu0
    %v1534 = vadd.f32 %v1493, %v1533
    %v1535 = vpop.f32.mrb[0].mxu0
    %v1536 = vadd.f32 %v1495, %v1535
    %v1537 = vpop.f32.mrb[0].mxu0
    %v1538 = vpop.f32.mrb[0].mxu0
    %1539 = vdwg.mxu0
    %1540 = vmatprep.subr.bf16.mxu0 %v1205
    %1541 = vmatpush1.bf16.msra.mxu0 %v1204
    %1542 = vmatprep.subr.bf16.mxu0 %v1209
    %1543 = vmatpush1.bf16.msra.mxu0 %v1208
    %1544 = vmatprep.subr.bf16.mxu0 %v1213
    %1545 = vmatpush1.bf16.msra.mxu0 %v1212
    %1546 = vmatprep.subr.bf16.mxu0 %v1217
    %1547 = vmatpush1.bf16.msra.mxu0 %v1216
    %1548 = vmatprep.subr.bf16.mxu0 %v1221
    %1549 = vmatpush1.bf16.msra.mxu0 %v1220
    %1550 = vmatprep.subr.bf16.mxu0 %v1225
    %1551 = vmatpush1.bf16.msra.mxu0 %v1224
    %1552 = vmatprep.subr.bf16.mxu0 %v1229
    %1553 = vmatpush1.bf16.msra.mxu0 %v1228
    %1554 = vmatprep.subr.bf16.mxu0 %v1233
    %1555 = vmatpush1.bf16.msra.mxu0 %v1232
    %1556 = vmatprep.subr.bf16.mxu0 %v1237
    %1557 = vmatpush1.bf16.msra.mxu0 %v1236
    %1558 = vmatprep.subr.bf16.mxu0 %v1241
    %1559 = vmatpush1.bf16.msra.mxu0 %v1240
    %1560 = vmatprep.subr.bf16.mxu0 %v1245
    %1561 = vmatpush1.bf16.msra.mxu0 %v1244
    %1562 = vmatprep.subr.bf16.mxu0 %v1249
    %1563 = vmatpush1.bf16.msra.mxu0 %v1248
    %1564 = vmatprep.subr.bf16.mxu0 %v1253
    %1565 = vmatpush1.bf16.msra.mxu0 %v1252
    %1566 = vmatprep.subr.bf16.mxu0 %v1257
    %1567 = vmatpush1.bf16.msra.mxu0 %v1256
    %1568 = vmatprep.subr.bf16.mxu0 %v1261
    %1569 = vmatpush1.bf16.msra.mxu0 %v1260
    %1570 = vmatprep.subr.bf16.mxu0 %v1265
    %1571 = vmatpush1.bf16.msra.mxu0 %v1264
    %1572 = vmatprep.mubr.bf16.mxu0 %v665
    %1573 = vmatmul.mubr.bf16.gmra.mrb[0].mxu0 %v664
    %v1574 = vpop.f32.mrb[0].mxu0
    %v1575 = vadd.f32 %v809, %v1574
    %v1576 = vpop.f32.mrb[0].mxu0
    %v1577 = vadd.f32 %v813, %v1576
    %v1578 = vpop.f32.mrb[0].mxu0
    %v1579 = vpop.f32.mrb[0].mxu0
    %1580 = vdwg.mxu0
    %1581 = vmatprep.subr.bf16.mxu0 %v1269
    %1582 = vmatpush1.bf16.msra.mxu0 %v1268
    %1583 = vmatprep.subr.bf16.mxu0 %v1273
    %1584 = vmatpush1.bf16.msra.mxu0 %v1272
    %1585 = vmatprep.subr.bf16.mxu0 %v1277
    %1586 = vmatpush1.bf16.msra.mxu0 %v1276
    %1587 = vmatprep.subr.bf16.mxu0 %v1281
    %1588 = vmatpush1.bf16.msra.mxu0 %v1280
    %1589 = vmatprep.subr.bf16.mxu0 %v1285
    %1590 = vmatpush1.bf16.msra.mxu0 %v1284
    %1591 = vmatprep.subr.bf16.mxu0 %v1289
    %1592 = vmatpush1.bf16.msra.mxu0 %v1288
    %1593 = vmatprep.subr.bf16.mxu0 %v1293
    %1594 = vmatpush1.bf16.msra.mxu0 %v1292
    %1595 = vmatprep.subr.bf16.mxu0 %v1297
    %1596 = vmatpush1.bf16.msra.mxu0 %v1296
    %1597 = vmatprep.subr.bf16.mxu0 %v1301
    %1598 = vmatpush1.bf16.msra.mxu0 %v1300
    %1599 = vmatprep.subr.bf16.mxu0 %v1305
    %1600 = vmatpush1.bf16.msra.mxu0 %v1304
    %1601 = vmatprep.subr.bf16.mxu0 %v1309
    %1602 = vmatpush1.bf16.msra.mxu0 %v1308
    %1603 = vmatprep.subr.bf16.mxu0 %v1313
    %1604 = vmatpush1.bf16.msra.mxu0 %v1312
    %1605 = vmatprep.subr.bf16.mxu0 %v1317
    %1606 = vmatpush1.bf16.msra.mxu0 %v1316
    %1607 = vmatprep.subr.bf16.mxu0 %v1321
    %1608 = vmatpush1.bf16.msra.mxu0 %v1320
    %1609 = vmatprep.subr.bf16.mxu0 %v1325
    %1610 = vmatpush1.bf16.msra.mxu0 %v1324
    %1611 = vmatprep.subr.bf16.mxu0 %v1329
    %1612 = vmatpush1.bf16.msra.mxu0 %v1328
    %1613 = vmatprep.mubr.bf16.mxu0 %v667
    %1614 = vmatmul.mubr.bf16.gmra.mrb[0].mxu0 %v666
    %v1615 = vpop.f32.mrb[0].mxu0
    %v1616 = vadd.f32 %v1575, %v1615
    %v1617 = vpop.f32.mrb[0].mxu0
    %v1618 = vadd.f32 %v1577, %v1617
    %v1619 = vpop.f32.mrb[0].mxu0
    %v1620 = vpop.f32.mrb[0].mxu0
    %1621 = vdwg.mxu0
    %vm1622 = vcmp.gt.f32.partialorder %v1534, 0.0
    %vm1623 = vcmp.gt.f32.partialorder %v1536, 0.0
    %vm1624 = vcmp.gt.f32.partialorder %v1616, 0.0
    %vm1625 = vcmp.gt.f32.partialorder %v1618, 0.0
    %v1626 = vmul.f32 %v1534, 0.5
    %v1627 = vmul.f32 %v1536, 0.5
    %v1628 = vmul.f32 %v1616, 0.5
    %v1629 = vmul.f32 %v1618, 0.5
    %v1630 = vsel %vm1622, %v1534, %v1626
    %v1631 = vsel %vm1623, %v1536, %v1627
    %v1632 = vsel %vm1624, %v1616, %v1628
    %v1633 = vsel %vm1625, %v1618, %v1629
    %v1634 = vpack.c.bf16 %v1630, %v1630
    %v1635 = vpack.c.bf16 %v1631, %v1631
    %v1636 = vpack.c.bf16 %v1632, %v1632
    %v1637 = vpack.c.bf16 %v1633, %v1633
    %v1638 = vld [vmem:[#allocation14] sm:$0xff]
    %v1639 = vld [vmem:[#allocation14 + $0x8] sm:$0xff]
    %v1640 = vld [vmem:[#allocation14 + $0x10] sm:$0xff]
    %v1641 = vld [vmem:[#allocation14 + $0x18] sm:$0xff]
    %v1642 = vld [vmem:[#allocation14 + $0x20] sm:$0xff]
    %v1643 = vld [vmem:[#allocation14 + $0x28] sm:$0xff]
    %v1644 = vld [vmem:[#allocation14 + $0x30] sm:$0xff]
    %v1645 = vld [vmem:[#allocation14 + $0x38] sm:$0xff]
    %v1646 = vld [vmem:[#allocation14 + $0x40] sm:$0xff]
    %v1647 = vld [vmem:[#allocation14 + $0x48] sm:$0xff]
    %v1648 = vld [vmem:[#allocation14 + $0x50] sm:$0xff]
    %v1649 = vld [vmem:[#allocation14 + $0x58] sm:$0xff]
    %v1650 = vld [vmem:[#allocation14 + $0x60] sm:$0xff]
    %v1651 = vld [vmem:[#allocation14 + $0x68] sm:$0xff]
    %v1652 = vld [vmem:[#allocation14 + $0x70] sm:$0xff]
    %v1653 = vld [vmem:[#allocation14 + $0x78] sm:$0xff]
    %v1654 = vld [vmem:[#allocation14 + $0x80] sm:$0xff]
    %v1655 = vld [vmem:[#allocation14 + $0x88] sm:$0xff]
    %v1656 = vld [vmem:[#allocation14 + $0x90] sm:$0xff]
    %v1657 = vld [vmem:[#allocation14 + $0x98] sm:$0xff]
    %v1658 = vld [vmem:[#allocation14 + $0xa0] sm:$0xff]
    %v1659 = vld [vmem:[#allocation14 + $0xa8] sm:$0xff]
    %v1660 = vld [vmem:[#allocation14 + $0xb0] sm:$0xff]
    %v1661 = vld [vmem:[#allocation14 + $0xb8] sm:$0xff]
    %v1662 = vld [vmem:[#allocation14 + $0xc0] sm:$0xff]
    %v1663 = vld [vmem:[#allocation14 + $0xc8] sm:$0xff]
    %v1664 = vld [vmem:[#allocation14 + $0xd0] sm:$0xff]
    %v1665 = vld [vmem:[#allocation14 + $0xd8] sm:$0xff]
    %v1666 = vld [vmem:[#allocation14 + $0xe0] sm:$0xff]
    %v1667 = vld [vmem:[#allocation14 + $0xe8] sm:$0xff]
    %v1668 = vld [vmem:[#allocation14 + $0xf0] sm:$0xff]
    %v1669 = vld [vmem:[#allocation14 + $0xf8] sm:$0xff]
    %v1670 = vld [vmem:[#allocation14 + $0x100] sm:$0xff]
    %v1671 = vld [vmem:[#allocation14 + $0x108] sm:$0xff]
    %v1672 = vld [vmem:[#allocation14 + $0x110] sm:$0xff]
    %v1673 = vld [vmem:[#allocation14 + $0x118] sm:$0xff]
    %v1674 = vld [vmem:[#allocation14 + $0x120] sm:$0xff]
    %v1675 = vld [vmem:[#allocation14 + $0x128] sm:$0xff]
    %v1676 = vld [vmem:[#allocation14 + $0x130] sm:$0xff]
    %v1677 = vld [vmem:[#allocation14 + $0x138] sm:$0xff]
    %v1678 = vld [vmem:[#allocation14 + $0x140] sm:$0xff]
    %v1679 = vld [vmem:[#allocation14 + $0x148] sm:$0xff]
    %v1680 = vld [vmem:[#allocation14 + $0x150] sm:$0xff]
    %v1681 = vld [vmem:[#allocation14 + $0x158] sm:$0xff]
    %v1682 = vld [vmem:[#allocation14 + $0x160] sm:$0xff]
    %v1683 = vld [vmem:[#allocation14 + $0x168] sm:$0xff]
    %v1684 = vld [vmem:[#allocation14 + $0x170] sm:$0xff]
    %v1685 = vld [vmem:[#allocation14 + $0x178] sm:$0xff]
    %v1686 = vld [vmem:[#allocation14 + $0x180] sm:$0xff]
    %v1687 = vld [vmem:[#allocation14 + $0x188] sm:$0xff]
    %v1688 = vld [vmem:[#allocation14 + $0x190] sm:$0xff]
    %v1689 = vld [vmem:[#allocation14 + $0x198] sm:$0xff]
    %v1690 = vld [vmem:[#allocation14 + $0x1a0] sm:$0xff]
    %v1691 = vld [vmem:[#allocation14 + $0x1a8] sm:$0xff]
    %v1692 = vld [vmem:[#allocation14 + $0x1b0] sm:$0xff]
    %v1693 = vld [vmem:[#allocation14 + $0x1b8] sm:$0xff]
    %v1694 = vld [vmem:[#allocation14 + $0x1c0] sm:$0xff]
    %v1695 = vld [vmem:[#allocation14 + $0x1c8] sm:$0xff]
    %v1696 = vld [vmem:[#allocation14 + $0x1d0] sm:$0xff]
    %v1697 = vld [vmem:[#allocation14 + $0x1d8] sm:$0xff]
    %v1698 = vld [vmem:[#allocation14 + $0x1e0] sm:$0xff]
    %v1699 = vld [vmem:[#allocation14 + $0x1e8] sm:$0xff]
    %v1700 = vld [vmem:[#allocation14 + $0x1f0] sm:$0xff]
    %v1701 = vld [vmem:[#allocation14 + $0x1f8] sm:$0xff]
    %v1702 = vld [vmem:[#allocation15] sm:$0x3]
    %v1704 = vlaneseq
    %v1705 = vshrl.u32 %v1704, 7
    %v1706 = vsub.s32 0, %v1705
    %v1707 = vrot.slane %v1702, %v1706
    %v1708 = vlaneseq
    %v1709 = vshrl.u32 %v1708, 7
    %v1710 = vsub.s32 1, %v1709
    %v1711 = vrot.slane %v1702, %v1710
    %v1778 = vunpack.c.l.b16 %v1638
    %v1779 = vunpack.c.h.b16 %v1638
    %v1780 = vunpack.c.l.b16 %v1639
    %v1781 = vunpack.c.h.b16 %v1639
    %v1782 = vunpack.c.l.b16 %v1640
    %v1783 = vunpack.c.h.b16 %v1640
    %v1784 = vunpack.c.l.b16 %v1641
    %v1785 = vunpack.c.h.b16 %v1641
    %v1786 = vunpack.c.l.b16 %v1642
    %v1787 = vunpack.c.h.b16 %v1642
    %v1788 = vunpack.c.l.b16 %v1643
    %v1789 = vunpack.c.h.b16 %v1643
    %v1790 = vunpack.c.l.b16 %v1644
    %v1791 = vunpack.c.h.b16 %v1644
    %v1792 = vunpack.c.l.b16 %v1645
    %v1793 = vunpack.c.h.b16 %v1645
    %v1794 = vunpack.c.l.b16 %v1646
    %v1795 = vunpack.c.h.b16 %v1646
    %v1796 = vunpack.c.l.b16 %v1647
    %v1797 = vunpack.c.h.b16 %v1647
    %v1798 = vunpack.c.l.b16 %v1648
    %v1799 = vunpack.c.h.b16 %v1648
    %v1800 = vunpack.c.l.b16 %v1649
    %v1801 = vunpack.c.h.b16 %v1649
    %v1802 = vunpack.c.l.b16 %v1650
    %v1803 = vunpack.c.h.b16 %v1650
    %v1804 = vunpack.c.l.b16 %v1651
    %v1805 = vunpack.c.h.b16 %v1651
    %v1806 = vunpack.c.l.b16 %v1652
    %v1807 = vunpack.c.h.b16 %v1652
    %v1808 = vunpack.c.l.b16 %v1653
    %v1809 = vunpack.c.h.b16 %v1653
    %v1810 = vunpack.c.l.b16 %v1654
    %v1811 = vunpack.c.h.b16 %v1654
    %v1812 = vunpack.c.l.b16 %v1655
    %v1813 = vunpack.c.h.b16 %v1655
    %v1814 = vunpack.c.l.b16 %v1656
    %v1815 = vunpack.c.h.b16 %v1656
    %v1816 = vunpack.c.l.b16 %v1657
    %v1817 = vunpack.c.h.b16 %v1657
    %v1818 = vunpack.c.l.b16 %v1658
    %v1819 = vunpack.c.h.b16 %v1658
    %v1820 = vunpack.c.l.b16 %v1659
    %v1821 = vunpack.c.h.b16 %v1659
    %v1822 = vunpack.c.l.b16 %v1660
    %v1823 = vunpack.c.h.b16 %v1660
    %v1824 = vunpack.c.l.b16 %v1661
    %v1825 = vunpack.c.h.b16 %v1661
    %v1826 = vunpack.c.l.b16 %v1662
    %v1827 = vunpack.c.h.b16 %v1662
    %v1828 = vunpack.c.l.b16 %v1663
    %v1829 = vunpack.c.h.b16 %v1663
    %v1830 = vunpack.c.l.b16 %v1664
    %v1831 = vunpack.c.h.b16 %v1664
    %v1832 = vunpack.c.l.b16 %v1665
    %v1833 = vunpack.c.h.b16 %v1665
    %v1834 = vunpack.c.l.b16 %v1666
    %v1835 = vunpack.c.h.b16 %v1666
    %v1836 = vunpack.c.l.b16 %v1667
    %v1837 = vunpack.c.h.b16 %v1667
    %v1838 = vunpack.c.l.b16 %v1668
    %v1839 = vunpack.c.h.b16 %v1668
    %v1840 = vunpack.c.l.b16 %v1669
    %v1841 = vunpack.c.h.b16 %v1669
    %v1842 = vunpack.c.l.b16 %v1670
    %v1843 = vunpack.c.h.b16 %v1670
    %v1844 = vunpack.c.l.b16 %v1671
    %v1845 = vunpack.c.h.b16 %v1671
    %v1846 = vunpack.c.l.b16 %v1672
    %v1847 = vunpack.c.h.b16 %v1672
    %v1848 = vunpack.c.l.b16 %v1673
    %v1849 = vunpack.c.h.b16 %v1673
    %v1850 = vunpack.c.l.b16 %v1674
    %v1851 = vunpack.c.h.b16 %v1674
    %v1852 = vunpack.c.l.b16 %v1675
    %v1853 = vunpack.c.h.b16 %v1675
    %v1854 = vunpack.c.l.b16 %v1676
    %v1855 = vunpack.c.h.b16 %v1676
    %v1856 = vunpack.c.l.b16 %v1677
    %v1857 = vunpack.c.h.b16 %v1677
    %v1858 = vunpack.c.l.b16 %v1678
    %v1859 = vunpack.c.h.b16 %v1678
    %v1860 = vunpack.c.l.b16 %v1679
    %v1861 = vunpack.c.h.b16 %v1679
    %v1862 = vunpack.c.l.b16 %v1680
    %v1863 = vunpack.c.h.b16 %v1680
    %v1864 = vunpack.c.l.b16 %v1681
    %v1865 = vunpack.c.h.b16 %v1681
    %v1866 = vunpack.c.l.b16 %v1682
    %v1867 = vunpack.c.h.b16 %v1682
    %v1868 = vunpack.c.l.b16 %v1683
    %v1869 = vunpack.c.h.b16 %v1683
    %v1870 = vunpack.c.l.b16 %v1684
    %v1871 = vunpack.c.h.b16 %v1684
    %v1872 = vunpack.c.l.b16 %v1685
    %v1873 = vunpack.c.h.b16 %v1685
    %v1874 = vunpack.c.l.b16 %v1686
    %v1875 = vunpack.c.h.b16 %v1686
    %v1876 = vunpack.c.l.b16 %v1687
    %v1877 = vunpack.c.h.b16 %v1687
    %v1878 = vunpack.c.l.b16 %v1688
    %v1879 = vunpack.c.h.b16 %v1688
    %v1880 = vunpack.c.l.b16 %v1689
    %v1881 = vunpack.c.h.b16 %v1689
    %v1882 = vunpack.c.l.b16 %v1690
    %v1883 = vunpack.c.h.b16 %v1690
    %v1884 = vunpack.c.l.b16 %v1691
    %v1885 = vunpack.c.h.b16 %v1691
    %v1886 = vunpack.c.l.b16 %v1692
    %v1887 = vunpack.c.h.b16 %v1692
    %v1888 = vunpack.c.l.b16 %v1693
    %v1889 = vunpack.c.h.b16 %v1693
    %v1890 = vunpack.c.l.b16 %v1694
    %v1891 = vunpack.c.h.b16 %v1694
    %v1892 = vunpack.c.l.b16 %v1695
    %v1893 = vunpack.c.h.b16 %v1695
    %v1894 = vunpack.c.l.b16 %v1696
    %v1895 = vunpack.c.h.b16 %v1696
    %v1896 = vunpack.c.l.b16 %v1697
    %v1897 = vunpack.c.h.b16 %v1697
    %v1898 = vunpack.c.l.b16 %v1698
    %v1899 = vunpack.c.h.b16 %v1698
    %v1900 = vunpack.c.l.b16 %v1699
    %v1901 = vunpack.c.h.b16 %v1699
    %v1902 = vunpack.c.l.b16 %v1700
    %v1903 = vunpack.c.h.b16 %v1700
    %v1904 = vunpack.c.l.b16 %v1701
    %v1905 = vunpack.c.h.b16 %v1701
    %v1906 = vpack.c.b16 %v1780, %v1778
    %v1907 = vpack.c.b16 %v1781, %v1779
    %v1908 = vpack.c.b16 %v1784, %v1782
    %v1909 = vpack.c.b16 %v1785, %v1783
    %v1910 = vpack.c.b16 %v1788, %v1786
    %v1911 = vpack.c.b16 %v1789, %v1787
    %v1912 = vpack.c.b16 %v1792, %v1790
    %v1913 = vpack.c.b16 %v1793, %v1791
    %v1914 = vpack.c.b16 %v1796, %v1794
    %v1915 = vpack.c.b16 %v1797, %v1795
    %v1916 = vpack.c.b16 %v1800, %v1798
    %v1917 = vpack.c.b16 %v1801, %v1799
    %v1918 = vpack.c.b16 %v1804, %v1802
    %v1919 = vpack.c.b16 %v1805, %v1803
    %v1920 = vpack.c.b16 %v1808, %v1806
    %v1921 = vpack.c.b16 %v1809, %v1807
    %v1922 = vpack.c.b16 %v1812, %v1810
    %v1923 = vpack.c.b16 %v1813, %v1811
    %v1924 = vpack.c.b16 %v1816, %v1814
    %v1925 = vpack.c.b16 %v1817, %v1815
    %v1926 = vpack.c.b16 %v1820, %v1818
    %v1927 = vpack.c.b16 %v1821, %v1819
    %v1928 = vpack.c.b16 %v1824, %v1822
    %v1929 = vpack.c.b16 %v1825, %v1823
    %v1930 = vpack.c.b16 %v1828, %v1826
    %v1931 = vpack.c.b16 %v1829, %v1827
    %v1932 = vpack.c.b16 %v1832, %v1830
    %v1933 = vpack.c.b16 %v1833, %v1831
    %v1934 = vpack.c.b16 %v1836, %v1834
    %v1935 = vpack.c.b16 %v1837, %v1835
    %v1936 = vpack.c.b16 %v1840, %v1838
    %v1937 = vpack.c.b16 %v1841, %v1839
    %v1938 = vpack.c.b16 %v1844, %v1842
    %v1939 = vpack.c.b16 %v1845, %v1843
    %v1940 = vpack.c.b16 %v1848, %v1846
    %v1941 = vpack.c.b16 %v1849, %v1847
    %v1942 = vpack.c.b16 %v1852, %v1850
    %v1943 = vpack.c.b16 %v1853, %v1851
    %v1944 = vpack.c.b16 %v1856, %v1854
    %v1945 = vpack.c.b16 %v1857, %v1855
    %v1946 = vpack.c.b16 %v1860, %v1858
    %v1947 = vpack.c.b16 %v1861, %v1859
    %v1948 = vpack.c.b16 %v1864, %v1862
    %v1949 = vpack.c.b16 %v1865, %v1863
    %v1950 = vpack.c.b16 %v1868, %v1866
    %v1951 = vpack.c.b16 %v1869, %v1867
    %v1952 = vpack.c.b16 %v1872, %v1870
    %v1953 = vpack.c.b16 %v1873, %v1871
    %v1954 = vpack.c.b16 %v1876, %v1874
    %v1955 = vpack.c.b16 %v1877, %v1875
    %v1956 = vpack.c.b16 %v1880, %v1878
    %v1957 = vpack.c.b16 %v1881, %v1879
    %v1958 = vpack.c.b16 %v1884, %v1882
    %v1959 = vpack.c.b16 %v1885, %v1883
    %v1960 = vpack.c.b16 %v1888, %v1886
    %v1961 = vpack.c.b16 %v1889, %v1887
    %v1962 = vpack.c.b16 %v1892, %v1890
    %v1963 = vpack.c.b16 %v1893, %v1891
    %v1964 = vpack.c.b16 %v1896, %v1894
    %v1965 = vpack.c.b16 %v1897, %v1895
    %v1966 = vpack.c.b16 %v1900, %v1898
    %v1967 = vpack.c.b16 %v1901, %v1899
    %v1968 = vpack.c.b16 %v1904, %v1902
    %v1969 = vpack.c.b16 %v1905, %v1903
    %2034 = vmatprep.subr.bf16.mxu0 %v1907
    %2035 = vmatpush1.bf16.msra.mxu0 %v1906
    %2036 = vmatprep.subr.bf16.mxu0 %v1909
    %2037 = vmatpush1.bf16.msra.mxu0 %v1908
    %2038 = vmatprep.subr.bf16.mxu0 %v1911
    %2039 = vmatpush1.bf16.msra.mxu0 %v1910
    %2040 = vmatprep.subr.bf16.mxu0 %v1913
    %2041 = vmatpush1.bf16.msra.mxu0 %v1912
    %2042 = vmatprep.subr.bf16.mxu0 %v1915
    %2043 = vmatpush1.bf16.msra.mxu0 %v1914
    %2044 = vmatprep.subr.bf16.mxu0 %v1917
    %2045 = vmatpush1.bf16.msra.mxu0 %v1916
    %2046 = vmatprep.subr.bf16.mxu0 %v1919
    %2047 = vmatpush1.bf16.msra.mxu0 %v1918
    %2048 = vmatprep.subr.bf16.mxu0 %v1921
    %2049 = vmatpush1.bf16.msra.mxu0 %v1920
    %2050 = vmatprep.subr.bf16.mxu0 %v1923
    %2051 = vmatpush1.bf16.msra.mxu0 %v1922
    %2052 = vmatprep.subr.bf16.mxu0 %v1925
    %2053 = vmatpush1.bf16.msra.mxu0 %v1924
    %2054 = vmatprep.subr.bf16.mxu0 %v1927
    %2055 = vmatpush1.bf16.msra.mxu0 %v1926
    %2056 = vmatprep.subr.bf16.mxu0 %v1929
    %2057 = vmatpush1.bf16.msra.mxu0 %v1928
    %2058 = vmatprep.subr.bf16.mxu0 %v1931
    %2059 = vmatpush1.bf16.msra.mxu0 %v1930
    %2060 = vmatprep.subr.bf16.mxu0 %v1933
    %2061 = vmatpush1.bf16.msra.mxu0 %v1932
    %2062 = vmatprep.subr.bf16.mxu0 %v1935
    %2063 = vmatpush1.bf16.msra.mxu0 %v1934
    %2064 = vmatprep.subr.bf16.mxu0 %v1937
    %2065 = vmatpush1.bf16.msra.mxu0 %v1936
    %2066 = vmatprep.mubr.bf16.mxu0 %v1635
    %2067 = vmatmul.mubr.bf16.gmra.mrb[0].mxu0 %v1634
    %v2068 = vpop.f32.mrb[0].mxu0
    %v2069 = vadd.f32 %v1707, %v2068
    %v2070 = vpop.f32.mrb[0].mxu0
    %v2071 = vadd.f32 %v1711, %v2070
    %v2072 = vpop.f32.mrb[0].mxu0
    %v2073 = vpop.f32.mrb[0].mxu0
    %2074 = vdwg.mxu0
    %2075 = vmatprep.subr.bf16.mxu0 %v1939
    %2076 = vmatpush1.bf16.msra.mxu0 %v1938
    %2077 = vmatprep.subr.bf16.mxu0 %v1941
    %2078 = vmatpush1.bf16.msra.mxu0 %v1940
    %2079 = vmatprep.subr.bf16.mxu0 %v1943
    %2080 = vmatpush1.bf16.msra.mxu0 %v1942
    %2081 = vmatprep.subr.bf16.mxu0 %v1945
    %2082 = vmatpush1.bf16.msra.mxu0 %v1944
    %2083 = vmatprep.subr.bf16.mxu0 %v1947
    %2084 = vmatpush1.bf16.msra.mxu0 %v1946
    %2085 = vmatprep.subr.bf16.mxu0 %v1949
    %2086 = vmatpush1.bf16.msra.mxu0 %v1948
    %2087 = vmatprep.subr.bf16.mxu0 %v1951
    %2088 = vmatpush1.bf16.msra.mxu0 %v1950
    %2089 = vmatprep.subr.bf16.mxu0 %v1953
    %2090 = vmatpush1.bf16.msra.mxu0 %v1952
    %2091 = vmatprep.subr.bf16.mxu0 %v1955
    %2092 = vmatpush1.bf16.msra.mxu0 %v1954
    %2093 = vmatprep.subr.bf16.mxu0 %v1957
    %2094 = vmatpush1.bf16.msra.mxu0 %v1956
    %2095 = vmatprep.subr.bf16.mxu0 %v1959
    %2096 = vmatpush1.bf16.msra.mxu0 %v1958
    %2097 = vmatprep.subr.bf16.mxu0 %v1961
    %2098 = vmatpush1.bf16.msra.mxu0 %v1960
    %2099 = vmatprep.subr.bf16.mxu0 %v1963
    %2100 = vmatpush1.bf16.msra.mxu0 %v1962
    %2101 = vmatprep.subr.bf16.mxu0 %v1965
    %2102 = vmatpush1.bf16.msra.mxu0 %v1964
    %2103 = vmatprep.subr.bf16.mxu0 %v1967
    %2104 = vmatpush1.bf16.msra.mxu0 %v1966
    %2105 = vmatprep.subr.bf16.mxu0 %v1969
    %2106 = vmatpush1.bf16.msra.mxu0 %v1968
    %2107 = vmatprep.mubr.bf16.mxu0 %v1637
    %2108 = vmatmul.mubr.bf16.gmra.mrb[0].mxu0 %v1636
    %v2109 = vpop.f32.mrb[0].mxu0
    %v2110 = vadd.f32 %v2069, %v2109
    %v2111 = vpop.f32.mrb[0].mxu0
    %v2112 = vadd.f32 %v2071, %v2111
    %v2113 = vpop.f32.mrb[0].mxu0
    %v2114 = vpop.f32.mrb[0].mxu0
    %2115 = vdwg.mxu0
    %vm2116 = vcmp.gt.f32.partialorder %v2110, 0.0
    %vm2117 = vcmp.gt.f32.partialorder %v2112, 0.0
    %v2118 = vmul.f32 %v2110, 0.5
    %v2119 = vmul.f32 %v2112, 0.5
    %v2120 = vsel %vm2116, %v2110, %v2118
    %v2121 = vsel %vm2117, %v2112, %v2119
    %v2122 = vpack.c.bf16 %v2120, %v2120
    %v2123 = vpack.c.bf16 %v2121, %v2121
    %v2124 = vld [vmem:[%s9] sm:$0xf]
    %v2125 = vld [vmem:[%s9 + $0x4] sm:$0xf]
    %v2126 = vld [vmem:[%s9 + $0x8] sm:$0xf]
    %v2127 = vld [vmem:[%s9 + $0xc] sm:$0xf]
    %v2128 = vld [vmem:[%s9 + $0x10] sm:$0xf]
    %v2129 = vld [vmem:[%s9 + $0x14] sm:$0xf]
    %v2130 = vld [vmem:[%s9 + $0x18] sm:$0xf]
    %v2131 = vld [vmem:[%s9 + $0x1c] sm:$0xf]
    %v2132 = vld [vmem:[%s9 + $0x20] sm:$0xf]
    %v2133 = vld [vmem:[%s9 + $0x24] sm:$0xf]
    %v2134 = vld [vmem:[%s9 + $0x28] sm:$0xf]
    %v2135 = vld [vmem:[%s9 + $0x2c] sm:$0xf]
    %v2136 = vld [vmem:[%s9 + $0x30] sm:$0xf]
    %v2137 = vld [vmem:[%s9 + $0x34] sm:$0xf]
    %v2138 = vld [vmem:[%s9 + $0x38] sm:$0xf]
    %v2139 = vld [vmem:[%s9 + $0x3c] sm:$0xf]
    %v2140 = vld [vmem:[%s9 + $0x40] sm:$0xf]
    %v2141 = vld [vmem:[%s9 + $0x44] sm:$0xf]
    %v2142 = vld [vmem:[%s9 + $0x48] sm:$0xf]
    %v2143 = vld [vmem:[%s9 + $0x4c] sm:$0xf]
    %v2144 = vld [vmem:[%s9 + $0x50] sm:$0xf]
    %v2145 = vld [vmem:[%s9 + $0x54] sm:$0xf]
    %v2146 = vld [vmem:[%s9 + $0x58] sm:$0xf]
    %v2147 = vld [vmem:[%s9 + $0x5c] sm:$0xf]
    %v2148 = vld [vmem:[%s9 + $0x60] sm:$0xf]
    %v2149 = vld [vmem:[%s9 + $0x64] sm:$0xf]
    %v2150 = vld [vmem:[%s9 + $0x68] sm:$0xf]
    %v2151 = vld [vmem:[%s9 + $0x6c] sm:$0xf]
    %v2152 = vld [vmem:[%s9 + $0x70] sm:$0xf]
    %v2153 = vld [vmem:[%s9 + $0x74] sm:$0xf]
    %v2154 = vld [vmem:[%s9 + $0x78] sm:$0xf]
    %v2155 = vld [vmem:[%s9 + $0x7c] sm:$0xf]
    %v2156 = vld [vmem:[%s10] sm:$0x1]
    %v2158 = vlaneseq
    %v2159 = vshrl.u32 %v2158, 7
    %v2160 = vsub.s32 0, %v2159
    %v2161 = vrot.slane %v2156, %v2160
    %v2195 = vunpack.c.l.b16 %v2124
    %v2196 = vunpack.c.l.b16 %v2125
    %v2197 = vunpack.c.l.b16 %v2126
    %v2198 = vunpack.c.l.b16 %v2127
    %v2199 = vunpack.c.l.b16 %v2128
    %v2200 = vunpack.c.l.b16 %v2129
    %v2201 = vunpack.c.l.b16 %v2130
    %v2202 = vunpack.c.l.b16 %v2131
    %v2203 = vunpack.c.l.b16 %v2132
    %v2204 = vunpack.c.l.b16 %v2133
    %v2205 = vunpack.c.l.b16 %v2134
    %v2206 = vunpack.c.l.b16 %v2135
    %v2207 = vunpack.c.l.b16 %v2136
    %v2208 = vunpack.c.l.b16 %v2137
    %v2209 = vunpack.c.l.b16 %v2138
    %v2210 = vunpack.c.l.b16 %v2139
    %v2211 = vunpack.c.l.b16 %v2140
    %v2212 = vunpack.c.l.b16 %v2141
    %v2213 = vunpack.c.l.b16 %v2142
    %v2214 = vunpack.c.l.b16 %v2143
    %v2215 = vunpack.c.l.b16 %v2144
    %v2216 = vunpack.c.l.b16 %v2145
    %v2217 = vunpack.c.l.b16 %v2146
    %v2218 = vunpack.c.l.b16 %v2147
    %v2219 = vunpack.c.l.b16 %v2148
    %v2220 = vunpack.c.l.b16 %v2149
    %v2221 = vunpack.c.l.b16 %v2150
    %v2222 = vunpack.c.l.b16 %v2151
    %v2223 = vunpack.c.l.b16 %v2152
    %v2224 = vunpack.c.l.b16 %v2153
    %v2225 = vunpack.c.l.b16 %v2154
    %v2226 = vunpack.c.l.b16 %v2155
    %v2227 = vpack.c.b16 %v2196, %v2195
    %v2228 = vpack.c.b16 %v2198, %v2197
    %v2229 = vpack.c.b16 %v2200, %v2199
    %v2230 = vpack.c.b16 %v2202, %v2201
    %v2231 = vpack.c.b16 %v2204, %v2203
    %v2232 = vpack.c.b16 %v2206, %v2205
    %v2233 = vpack.c.b16 %v2208, %v2207
    %v2234 = vpack.c.b16 %v2210, %v2209
    %v2235 = vpack.c.b16 %v2212, %v2211
    %v2236 = vpack.c.b16 %v2214, %v2213
    %v2237 = vpack.c.b16 %v2216, %v2215
    %v2238 = vpack.c.b16 %v2218, %v2217
    %v2239 = vpack.c.b16 %v2220, %v2219
    %v2240 = vpack.c.b16 %v2222, %v2221
    %v2241 = vpack.c.b16 %v2224, %v2223
    %v2242 = vpack.c.b16 %v2226, %v2225
    %2259 = vmatprep.subr.bf16.mxu0 0
    %2260 = vmatpush1.bf16.msra.mxu0 %v2227
    %2261 = vmatprep.subr.bf16.mxu0 0
    %2262 = vmatpush1.bf16.msra.mxu0 %v2228
    %2263 = vmatprep.subr.bf16.mxu0 0
    %2264 = vmatpush1.bf16.msra.mxu0 %v2229
    %2265 = vmatprep.subr.bf16.mxu0 0
    %2266 = vmatpush1.bf16.msra.mxu0 %v2230
    %2267 = vmatprep.subr.bf16.mxu0 0
    %2268 = vmatpush1.bf16.msra.mxu0 %v2231
    %2269 = vmatprep.subr.bf16.mxu0 0
    %2270 = vmatpush1.bf16.msra.mxu0 %v2232
    %2271 = vmatprep.subr.bf16.mxu0 0
    %2272 = vmatpush1.bf16.msra.mxu0 %v2233
    %2273 = vmatprep.subr.bf16.mxu0 0
    %2274 = vmatpush1.bf16.msra.mxu0 %v2234
    %2275 = vmatprep.subr.bf16.mxu0 0
    %2276 = vmatpush1.bf16.msra.mxu0 %v2235
    %2277 = vmatprep.subr.bf16.mxu0 0
    %2278 = vmatpush1.bf16.msra.mxu0 %v2236
    %2279 = vmatprep.subr.bf16.mxu0 0
    %2280 = vmatpush1.bf16.msra.mxu0 %v2237
    %2281 = vmatprep.subr.bf16.mxu0 0
    %2282 = vmatpush1.bf16.msra.mxu0 %v2238
    %2283 = vmatprep.subr.bf16.mxu0 0
    %2284 = vmatpush1.bf16.msra.mxu0 %v2239
    %2285 = vmatprep.subr.bf16.mxu0 0
    %2286 = vmatpush1.bf16.msra.mxu0 %v2240
    %2287 = vmatprep.subr.bf16.mxu0 0
    %2288 = vmatpush1.bf16.msra.mxu0 %v2241
    %2289 = vmatprep.subr.bf16.mxu0 0
    %2290 = vmatpush1.bf16.msra.mxu0 %v2242
    %2291 = vmatprep.mubr.bf16.mxu0 %v2123
    %2292 = vmatmul.mubr.bf16.gmra.mrb[0].mxu0 %v2122
    %v2293 = vpop.f32.mrb[0].mxu0
    %v2294 = vadd.f32 %v2161, %v2293
    %v2295 = vpop.f32.mrb[0].mxu0
    %v2296 = vpop.f32.mrb[0].mxu0
    %v2297 = vpop.f32.mrb[0].mxu0
    %2298 = vdwg.mxu0
    %v2299 = vsel %vm349, %v2294, -inf
    %2300 = vmax.xlane.f32.xlu0 %v2299
    %v2301 = vpop.xlane.xlu0 %2300
    %v2302 = vsub.f32 %v2294, %v2301
    %v2303 = vmul.f32 %v2302, 1.442695
    %v2304 = vpow.pop %v2303
    %v2305 = vsel %vm349, %v2304, 0.0
    %2306 = vadd.xlane.f32.xlu0 %v2305
    %v2307 = vpop.xlane.xlu0 %2306
    %v2308 = vrcp.pop %v2307
    %v2309 = vmul.f32 %v2304, %v2308
    %v2310 = vmul.f32 %v2309, %v338
    %2312 = vrot.lane.b32.xlu0 %v2310, 32
    %v2313 = vpop.permute.xlu0 %2312
    %v2315 = vsel %vm349, %v338, %v2313
    %v2316 = vsel %vm351, %v2315, 0.0
    %v2317 = vrot.slane %v2316, 4
    %v2318 = vadd.f32 %v2316, %v2317
    %v2319 = vrot.slane %v2318, 2
    %v2320 = vadd.f32 %v2318, %v2319
    %v2321 = vrot.slane %v2320, 1
    %v2322 = vadd.f32 %v2320, %v2321
    %v2323 = vrcp.pop 8.0
    %v2324 = vmul.f32 %v2322, %v2323
    %v2325 = vsub.f32 %v2315, %v2324
    %v2326 = vmul.f32 %v2325, %v2325
    %v2327 = vsel %vm351, %v2326, 0.0
    %v2328 = vrot.slane %v2327, 4
    %v2329 = vadd.f32 %v2327, %v2328
    %v2330 = vrot.slane %v2329, 2
    %v2331 = vadd.f32 %v2329, %v2330
    %v2332 = vrot.slane %v2331, 1
    %v2333 = vadd.f32 %v2331, %v2332
    %v2334 = vmul.f32 %v2333, %v2323
    %v2335 = vadd.f32 %v2334, 1e-05
    %v2336 = vrsqrt.pop %v2335
    %v2337 = vmul.f32 %v2325, %v2336
    %v2338 = vld [vmem:[#allocation24] sm:$0x1]
    %v2340 = vlaneseq
    %v2341 = vshrl.u32 %v2340, 7
    %v2342 = vsub.s32 0, %v2341
    %v2343 = vrot.slane %v2338, %v2342
    %v2345 = vmul.f32 %v2337, %v2343
    %v2346 = vld [vmem:[#allocation26] sm:$0x1]
    %v2348 = vlaneseq
    %v2349 = vshrl.u32 %v2348, 7
    %v2350 = vsub.s32 0, %v2349
    %v2351 = vrot.slane %v2346, %v2350
    %v2353 = vadd.f32 %v2345, %v2351
    %v2354 = vpack.c.bf16 %v2353, %v2353
    %v2355 = vld [vmem:[%s11] sm:$0xff]
    %v2356 = vld [vmem:[%s11 + $0x8] sm:$0xff]
    %v2357 = vld [vmem:[%s11 + $0x10] sm:$0xff]
    %v2358 = vld [vmem:[%s11 + $0x18] sm:$0xff]
    %v2359 = vld [vmem:[%s11 + $0x20] sm:$0xff]
    %v2360 = vld [vmem:[%s11 + $0x28] sm:$0xff]
    %v2361 = vld [vmem:[%s11 + $0x30] sm:$0xff]
    %v2362 = vld [vmem:[%s11 + $0x38] sm:$0xff]
    %v2363 = vld [vmem:[%s11 + $0x40] sm:$0xff]
    %v2364 = vld [vmem:[%s11 + $0x48] sm:$0xff]
    %v2365 = vld [vmem:[%s11 + $0x50] sm:$0xff]
    %v2366 = vld [vmem:[%s11 + $0x58] sm:$0xff]
    %v2367 = vld [vmem:[%s11 + $0x60] sm:$0xff]
    %v2368 = vld [vmem:[%s11 + $0x68] sm:$0xff]
    %v2369 = vld [vmem:[%s11 + $0x70] sm:$0xff]
    %v2370 = vld [vmem:[%s11 + $0x78] sm:$0xff]
    %v2371 = vld [vmem:[#allocation17] sm:$0xf]
    %v2373 = vlaneseq
    %v2374 = vshrl.u32 %v2373, 7
    %v2375 = vsub.s32 0, %v2374
    %v2376 = vrot.slane %v2371, %v2375
    %v2377 = vlaneseq
    %v2378 = vshrl.u32 %v2377, 7
    %v2379 = vsub.s32 1, %v2378
    %v2380 = vrot.slane %v2371, %v2379
    %v2381 = vlaneseq
    %v2382 = vshrl.u32 %v2381, 7
    %v2383 = vsub.s32 2, %v2382
    %v2384 = vrot.slane %v2371, %v2383
    %v2385 = vlaneseq
    %v2386 = vshrl.u32 %v2385, 7
    %v2387 = vsub.s32 3, %v2386
    %v2388 = vrot.slane %v2371, %v2387
    %v2409 = vunpack.c.l.b16 %v2355
    %v2410 = vunpack.c.h.b16 %v2355
    %v2411 = vunpack.c.l.b16 %v2356
    %v2412 = vunpack.c.h.b16 %v2356
    %v2413 = vunpack.c.l.b16 %v2357
    %v2414 = vunpack.c.h.b16 %v2357
    %v2415 = vunpack.c.l.b16 %v2358
    %v2416 = vunpack.c.h.b16 %v2358
    %v2417 = vunpack.c.l.b16 %v2359
    %v2418 = vunpack.c.h.b16 %v2359
    %v2419 = vunpack.c.l.b16 %v2360
    %v2420 = vunpack.c.h.b16 %v2360
    %v2421 = vunpack.c.l.b16 %v2361
    %v2422 = vunpack.c.h.b16 %v2361
    %v2423 = vunpack.c.l.b16 %v2362
    %v2424 = vunpack.c.h.b16 %v2362
    %v2425 = vunpack.c.l.b16 %v2363
    %v2426 = vunpack.c.h.b16 %v2363
    %v2427 = vunpack.c.l.b16 %v2364
    %v2428 = vunpack.c.h.b16 %v2364
    %v2429 = vunpack.c.l.b16 %v2365
    %v2430 = vunpack.c.h.b16 %v2365
    %v2431 = vunpack.c.l.b16 %v2366
    %v2432 = vunpack.c.h.b16 %v2366
    %v2433 = vunpack.c.l.b16 %v2367
    %v2434 = vunpack.c.h.b16 %v2367
    %v2435 = vunpack.c.l.b16 %v2368
    %v2436 = vunpack.c.h.b16 %v2368
    %v2437 = vunpack.c.l.b16 %v2369
    %v2438 = vunpack.c.h.b16 %v2369
    %v2439 = vunpack.c.l.b16 %v2370
    %v2440 = vunpack.c.h.b16 %v2370
    %v2441 = vpack.c.b16 %v2413, %v2409
    %v2442 = vpack.c.b16 %v2414, %v2410
    %v2443 = vpack.c.b16 %v2415, %v2411
    %v2444 = vpack.c.b16 %v2416, %v2412
    %v2445 = vpack.c.b16 %v2421, %v2417
    %v2446 = vpack.c.b16 %v2422, %v2418
    %v2447 = vpack.c.b16 %v2423, %v2419
    %v2448 = vpack.c.b16 %v2424, %v2420
    %v2449 = vpack.c.b16 %v2429, %v2425
    %v2450 = vpack.c.b16 %v2430, %v2426
    %v2451 = vpack.c.b16 %v2431, %v2427
    %v2452 = vpack.c.b16 %v2432, %v2428
    %v2453 = vpack.c.b16 %v2437, %v2433
    %v2454 = vpack.c.b16 %v2438, %v2434
    %v2455 = vpack.c.b16 %v2439, %v2435
    %v2456 = vpack.c.b16 %v2440, %v2436
    %v2474 = vsel %vm351, %v2354, 0
    %2476 = vmatprep.subr.bf16.mxu0 %v2442
    %2477 = vmatpush1.bf16.msra.mxu0 %v2441
    %2478 = vmatprep.subr.bf16.mxu0 %v2446
    %2479 = vmatpush1.bf16.msra.mxu0 %v2445
    %2480 = vmatprep.subr.bf16.mxu0 %v2450
    %2481 = vmatpush1.bf16.msra.mxu0 %v2449
    %2482 = vmatprep.subr.bf16.mxu0 %v2454
    %2483 = vmatpush1.bf16.msra.mxu0 %v2453
    %2484 = vmatprep.subr.bf16.mxu0 0
    %2485 = vmatpush1.bf16.msra.mxu0 0
    %2486 = vmatprep.subr.bf16.mxu0 0
    %2487 = vmatpush1.bf16.msra.mxu0 0
    %2488 = vmatprep.subr.bf16.mxu0 0
    %2489 = vmatpush1.bf16.msra.mxu0 0
    %2490 = vmatprep.subr.bf16.mxu0 0
    %2491 = vmatpush1.bf16.msra.mxu0 0
    %2492 = vmatprep.subr.bf16.mxu0 0
    %2493 = vmatpush1.bf16.msra.mxu0 0
    %2494 = vmatprep.subr.bf16.mxu0 0
    %2495 = vmatpush1.bf16.msra.mxu0 0
    %2496 = vmatprep.subr.bf16.mxu0 0
    %2497 = vmatpush1.bf16.msra.mxu0 0
    %2498 = vmatprep.subr.bf16.mxu0 0
    %2499 = vmatpush1.bf16.msra.mxu0 0
    %2500 = vmatprep.subr.bf16.mxu0 0
    %2501 = vmatpush1.bf16.msra.mxu0 0
    %2502 = vmatprep.subr.bf16.mxu0 0
    %2503 = vmatpush1.bf16.msra.mxu0 0
    %2504 = vmatprep.subr.bf16.mxu0 0
    %2505 = vmatpush1.bf16.msra.mxu0 0
    %2506 = vmatprep.subr.bf16.mxu0 0
    %2507 = vmatpush1.bf16.msra.mxu0 0
    %2508 = vmatprep.mubr.bf16.mxu0 0
    %2509 = vmatmul.mubr.bf16.gmra.mrb[0].mxu0 %v2474
    %v2510 = vpop.f32.mrb[0].mxu0
    %v2511 = vadd.f32 %v2376, %v2510
    %v2512 = vpop.f32.mrb[0].mxu0
    %v2513 = vadd.f32 %v2380, %v2512
    %v2514 = vpop.f32.mrb[0].mxu0
    %v2515 = vpop.f32.mrb[0].mxu0
    %2516 = vdwg.mxu0
    %2517 = vmatprep.subr.bf16.mxu0 %v2444
    %2518 = vmatpush1.bf16.msra.mxu0 %v2443
    %2519 = vmatprep.subr.bf16.mxu0 %v2448
    %2520 = vmatpush1.bf16.msra.mxu0 %v2447
    %2521 = vmatprep.subr.bf16.mxu0 %v2452
    %2522 = vmatpush1.bf16.msra.mxu0 %v2451
    %2523 = vmatprep.subr.bf16.mxu0 %v2456
    %2524 = vmatpush1.bf16.msra.mxu0 %v2455
    %2525 = vmatprep.subr.bf16.mxu0 0
    %2526 = vmatpush1.bf16.msra.mxu0 0
    %2527 = vmatprep.subr.bf16.mxu0 0
    %2528 = vmatpush1.bf16.msra.mxu0 0
    %2529 = vmatprep.subr.bf16.mxu0 0
    %2530 = vmatpush1.bf16.msra.mxu0 0
    %2531 = vmatprep.subr.bf16.mxu0 0
    %2532 = vmatpush1.bf16.msra.mxu0 0
    %2533 = vmatprep.subr.bf16.mxu0 0
    %2534 = vmatpush1.bf16.msra.mxu0 0
    %2535 = vmatprep.subr.bf16.mxu0 0
    %2536 = vmatpush1.bf16.msra.mxu0 0
    %2537 = vmatprep.subr.bf16.mxu0 0
    %2538 = vmatpush1.bf16.msra.mxu0 0
    %2539 = vmatprep.subr.bf16.mxu0 0
    %2540 = vmatpush1.bf16.msra.mxu0 0
    %2541 = vmatprep.subr.bf16.mxu0 0
    %2542 = vmatpush1.bf16.msra.mxu0 0
    %2543 = vmatprep.subr.bf16.mxu0 0
    %2544 = vmatpush1.bf16.msra.mxu0 0
    %2545 = vmatprep.subr.bf16.mxu0 0
    %2546 = vmatpush1.bf16.msra.mxu0 0
    %2547 = vmatprep.subr.bf16.mxu0 0
    %2548 = vmatpush1.bf16.msra.mxu0 0
    %2549 = vmatprep.mubr.bf16.mxu0 0
    %2550 = vmatmul.mubr.bf16.gmra.mrb[0].mxu0 %v2474
    %v2551 = vpop.f32.mrb[0].mxu0
    %v2552 = vadd.f32 %v2384, %v2551
    %v2553 = vpop.f32.mrb[0].mxu0
    %v2554 = vadd.f32 %v2388, %v2553
    %v2555 = vpop.f32.mrb[0].mxu0
    %v2556 = vpop.f32.mrb[0].mxu0
    %2557 = vdwg.mxu0
    %vm2558 = vcmp.gt.f32.partialorder %v2511, 0.0
    %vm2559 = vcmp.gt.f32.partialorder %v2513, 0.0
    %vm2560 = vcmp.gt.f32.partialorder %v2552, 0.0
    %vm2561 = vcmp.gt.f32.partialorder %v2554, 0.0
    %v2562 = vmul.f32 %v2511, 0.5
    %v2563 = vmul.f32 %v2513, 0.5
    %v2564 = vmul.f32 %v2552, 0.5
    %v2565 = vmul.f32 %v2554, 0.5
    %v2566 = vsel %vm2558, %v2511, %v2562
    %v2567 = vsel %vm2559, %v2513, %v2563
    %v2568 = vsel %vm2560, %v2552, %v2564
    %v2569 = vsel %vm2561, %v2554, %v2565
    %v2570 = vpack.c.bf16 %v2566, %v2566
    %v2571 = vpack.c.bf16 %v2567, %v2567
    %v2572 = vpack.c.bf16 %v2568, %v2568
    %v2573 = vpack.c.bf16 %v2569, %v2569
    %v2574 = vld [vmem:[#allocation18] sm:$0xff]
    %v2575 = vld [vmem:[#allocation18 + $0x8] sm:$0xff]
    %v2576 = vld [vmem:[#allocation18 + $0x10] sm:$0xff]
    %v2577 = vld [vmem:[#allocation18 + $0x18] sm:$0xff]
    %v2578 = vld [vmem:[#allocation18 + $0x20] sm:$0xff]
    %v2579 = vld [vmem:[#allocation18 + $0x28] sm:$0xff]
    %v2580 = vld [vmem:[#allocation18 + $0x30] sm:$0xff]
    %v2581 = vld [vmem:[#allocation18 + $0x38] sm:$0xff]
    %v2582 = vld [vmem:[#allocation18 + $0x40] sm:$0xff]
    %v2583 = vld [vmem:[#allocation18 + $0x48] sm:$0xff]
    %v2584 = vld [vmem:[#allocation18 + $0x50] sm:$0xff]
    %v2585 = vld [vmem:[#allocation18 + $0x58] sm:$0xff]
    %v2586 = vld [vmem:[#allocation18 + $0x60] sm:$0xff]
    %v2587 = vld [vmem:[#allocation18 + $0x68] sm:$0xff]
    %v2588 = vld [vmem:[#allocation18 + $0x70] sm:$0xff]
    %v2589 = vld [vmem:[#allocation18 + $0x78] sm:$0xff]
    %v2590 = vld [vmem:[#allocation18 + $0x80] sm:$0xff]
    %v2591 = vld [vmem:[#allocation18 + $0x88] sm:$0xff]
    %v2592 = vld [vmem:[#allocation18 + $0x90] sm:$0xff]
    %v2593 = vld [vmem:[#allocation18 + $0x98] sm:$0xff]
    %v2594 = vld [vmem:[#allocation18 + $0xa0] sm:$0xff]
    %v2595 = vld [vmem:[#allocation18 + $0xa8] sm:$0xff]
    %v2596 = vld [vmem:[#allocation18 + $0xb0] sm:$0xff]
    %v2597 = vld [vmem:[#allocation18 + $0xb8] sm:$0xff]
    %v2598 = vld [vmem:[#allocation18 + $0xc0] sm:$0xff]
    %v2599 = vld [vmem:[#allocation18 + $0xc8] sm:$0xff]
    %v2600 = vld [vmem:[#allocation18 + $0xd0] sm:$0xff]
    %v2601 = vld [vmem:[#allocation18 + $0xd8] sm:$0xff]
    %v2602 = vld [vmem:[#allocation18 + $0xe0] sm:$0xff]
    %v2603 = vld [vmem:[#allocation18 + $0xe8] sm:$0xff]
    %v2604 = vld [vmem:[#allocation18 + $0xf0] sm:$0xff]
    %v2605 = vld [vmem:[#allocation18 + $0xf8] sm:$0xff]
    %v2606 = vld [vmem:[#allocation18 + $0x100] sm:$0xff]
    %v2607 = vld [vmem:[#allocation18 + $0x108] sm:$0xff]
    %v2608 = vld [vmem:[#allocation18 + $0x110] sm:$0xff]
    %v2609 = vld [vmem:[#allocation18 + $0x118] sm:$0xff]
    %v2610 = vld [vmem:[#allocation18 + $0x120] sm:$0xff]
    %v2611 = vld [vmem:[#allocation18 + $0x128] sm:$0xff]
    %v2612 = vld [vmem:[#allocation18 + $0x130] sm:$0xff]
    %v2613 = vld [vmem:[#allocation18 + $0x138] sm:$0xff]
    %v2614 = vld [vmem:[#allocation18 + $0x140] sm:$0xff]
    %v2615 = vld [vmem:[#allocation18 + $0x148] sm:$0xff]
    %v2616 = vld [vmem:[#allocation18 + $0x150] sm:$0xff]
    %v2617 = vld [vmem:[#allocation18 + $0x158] sm:$0xff]
    %v2618 = vld [vmem:[#allocation18 + $0x160] sm:$0xff]
    %v2619 = vld [vmem:[#allocation18 + $0x168] sm:$0xff]
    %v2620 = vld [vmem:[#allocation18 + $0x170] sm:$0xff]
    %v2621 = vld [vmem:[#allocation18 + $0x178] sm:$0xff]
    %v2622 = vld [vmem:[#allocation18 + $0x180] sm:$0xff]
    %v2623 = vld [vmem:[#allocation18 + $0x188] sm:$0xff]
    %v2624 = vld [vmem:[#allocation18 + $0x190] sm:$0xff]
    %v2625 = vld [vmem:[#allocation18 + $0x198] sm:$0xff]
    %v2626 = vld [vmem:[#allocation18 + $0x1a0] sm:$0xff]
    %v2627 = vld [vmem:[#allocation18 + $0x1a8] sm:$0xff]
    %v2628 = vld [vmem:[#allocation18 + $0x1b0] sm:$0xff]
    %v2629 = vld [vmem:[#allocation18 + $0x1b8] sm:$0xff]
    %v2630 = vld [vmem:[#allocation18 + $0x1c0] sm:$0xff]
    %v2631 = vld [vmem:[#allocation18 + $0x1c8] sm:$0xff]
    %v2632 = vld [vmem:[#allocation18 + $0x1d0] sm:$0xff]
    %v2633 = vld [vmem:[#allocation18 + $0x1d8] sm:$0xff]
    %v2634 = vld [vmem:[#allocation18 + $0x1e0] sm:$0xff]
    %v2635 = vld [vmem:[#allocation18 + $0x1e8] sm:$0xff]
    %v2636 = vld [vmem:[#allocation18 + $0x1f0] sm:$0xff]
    %v2637 = vld [vmem:[#allocation18 + $0x1f8] sm:$0xff]
    %v2638 = vld [vmem:[#allocation18 + $0x200] sm:$0xff]
    %v2639 = vld [vmem:[#allocation18 + $0x208] sm:$0xff]
    %v2640 = vld [vmem:[#allocation18 + $0x210] sm:$0xff]
    %v2641 = vld [vmem:[#allocation18 + $0x218] sm:$0xff]
    %v2642 = vld [vmem:[#allocation18 + $0x220] sm:$0xff]
    %v2643 = vld [vmem:[#allocation18 + $0x228] sm:$0xff]
    %v2644 = vld [vmem:[#allocation18 + $0x230] sm:$0xff]
    %v2645 = vld [vmem:[#allocation18 + $0x238] sm:$0xff]
    %v2646 = vld [vmem:[#allocation18 + $0x240] sm:$0xff]
    %v2647 = vld [vmem:[#allocation18 + $0x248] sm:$0xff]
    %v2648 = vld [vmem:[#allocation18 + $0x250] sm:$0xff]
    %v2649 = vld [vmem:[#allocation18 + $0x258] sm:$0xff]
    %v2650 = vld [vmem:[#allocation18 + $0x260] sm:$0xff]
    %v2651 = vld [vmem:[#allocation18 + $0x268] sm:$0xff]
    %v2652 = vld [vmem:[#allocation18 + $0x270] sm:$0xff]
    %v2653 = vld [vmem:[#allocation18 + $0x278] sm:$0xff]
    %v2654 = vld [vmem:[#allocation18 + $0x280] sm:$0xff]
    %v2655 = vld [vmem:[#allocation18 + $0x288] sm:$0xff]
    %v2656 = vld [vmem:[#allocation18 + $0x290] sm:$0xff]
    %v2657 = vld [vmem:[#allocation18 + $0x298] sm:$0xff]
    %v2658 = vld [vmem:[#allocation18 + $0x2a0] sm:$0xff]
    %v2659 = vld [vmem:[#allocation18 + $0x2a8] sm:$0xff]
    %v2660 = vld [vmem:[#allocation18 + $0x2b0] sm:$0xff]
    %v2661 = vld [vmem:[#allocation18 + $0x2b8] sm:$0xff]
    %v2662 = vld [vmem:[#allocation18 + $0x2c0] sm:$0xff]
    %v2663 = vld [vmem:[#allocation18 + $0x2c8] sm:$0xff]
    %v2664 = vld [vmem:[#allocation18 + $0x2d0] sm:$0xff]
    %v2665 = vld [vmem:[#allocation18 + $0x2d8] sm:$0xff]
    %v2666 = vld [vmem:[#allocation18 + $0x2e0] sm:$0xff]
    %v2667 = vld [vmem:[#allocation18 + $0x2e8] sm:$0xff]
    %v2668 = vld [vmem:[#allocation18 + $0x2f0] sm:$0xff]
    %v2669 = vld [vmem:[#allocation18 + $0x2f8] sm:$0xff]
    %v2670 = vld [vmem:[#allocation18 + $0x300] sm:$0xff]
    %v2671 = vld [vmem:[#allocation18 + $0x308] sm:$0xff]
    %v2672 = vld [vmem:[#allocation18 + $0x310] sm:$0xff]
    %v2673 = vld [vmem:[#allocation18 + $0x318] sm:$0xff]
    %v2674 = vld [vmem:[#allocation18 + $0x320] sm:$0xff]
    %v2675 = vld [vmem:[#allocation18 + $0x328] sm:$0xff]
    %v2676 = vld [vmem:[#allocation18 + $0x330] sm:$0xff]
    %v2677 = vld [vmem:[#allocation18 + $0x338] sm:$0xff]
    %v2678 = vld [vmem:[#allocation18 + $0x340] sm:$0xff]
    %v2679 = vld [vmem:[#allocation18 + $0x348] sm:$0xff]
    %v2680 = vld [vmem:[#allocation18 + $0x350] sm:$0xff]
    %v2681 = vld [vmem:[#allocation18 + $0x358] sm:$0xff]
    %v2682 = vld [vmem:[#allocation18 + $0x360] sm:$0xff]
    %v2683 = vld [vmem:[#allocation18 + $0x368] sm:$0xff]
    %v2684 = vld [vmem:[#allocation18 + $0x370] sm:$0xff]
    %v2685 = vld [vmem:[#allocation18 + $0x378] sm:$0xff]
    %v2686 = vld [vmem:[#allocation18 + $0x380] sm:$0xff]
    %v2687 = vld [vmem:[#allocation18 + $0x388] sm:$0xff]
    %v2688 = vld [vmem:[#allocation18 + $0x390] sm:$0xff]
    %v2689 = vld [vmem:[#allocation18 + $0x398] sm:$0xff]
    %v2690 = vld [vmem:[#allocation18 + $0x3a0] sm:$0xff]
    %v2691 = vld [vmem:[#allocation18 + $0x3a8] sm:$0xff]
    %v2692 = vld [vmem:[#allocation18 + $0x3b0] sm:$0xff]
    %v2693 = vld [vmem:[#allocation18 + $0x3b8] sm:$0xff]
    %v2694 = vld [vmem:[#allocation18 + $0x3c0] sm:$0xff]
    %v2695 = vld [vmem:[#allocation18 + $0x3c8] sm:$0xff]
    %v2696 = vld [vmem:[#allocation18 + $0x3d0] sm:$0xff]
    %v2697 = vld [vmem:[#allocation18 + $0x3d8] sm:$0xff]
    %v2698 = vld [vmem:[#allocation18 + $0x3e0] sm:$0xff]
    %v2699 = vld [vmem:[#allocation18 + $0x3e8] sm:$0xff]
    %v2700 = vld [vmem:[#allocation18 + $0x3f0] sm:$0xff]
    %v2701 = vld [vmem:[#allocation18 + $0x3f8] sm:$0xff]
    %v2702 = vld [vmem:[#allocation20] sm:$0xf]
    %v2704 = vlaneseq
    %v2705 = vshrl.u32 %v2704, 7
    %v2706 = vsub.s32 0, %v2705
    %v2707 = vrot.slane %v2702, %v2706
    %v2708 = vlaneseq
    %v2709 = vshrl.u32 %v2708, 7
    %v2710 = vsub.s32 1, %v2709
    %v2711 = vrot.slane %v2702, %v2710
    %v2712 = vlaneseq
    %v2713 = vshrl.u32 %v2712, 7
    %v2714 = vsub.s32 2, %v2713
    %v2715 = vrot.slane %v2702, %v2714
    %v2716 = vlaneseq
    %v2717 = vshrl.u32 %v2716, 7
    %v2718 = vsub.s32 3, %v2717
    %v2719 = vrot.slane %v2702, %v2718
    %v2852 = vunpack.c.l.b16 %v2574
    %v2853 = vunpack.c.h.b16 %v2574
    %v2854 = vunpack.c.l.b16 %v2575
    %v2855 = vunpack.c.h.b16 %v2575
    %v2856 = vunpack.c.l.b16 %v2576
    %v2857 = vunpack.c.h.b16 %v2576
    %v2858 = vunpack.c.l.b16 %v2577
    %v2859 = vunpack.c.h.b16 %v2577
    %v2860 = vunpack.c.l.b16 %v2578
    %v2861 = vunpack.c.h.b16 %v2578
    %v2862 = vunpack.c.l.b16 %v2579
    %v2863 = vunpack.c.h.b16 %v2579
    %v2864 = vunpack.c.l.b16 %v2580
    %v2865 = vunpack.c.h.b16 %v2580
    %v2866 = vunpack.c.l.b16 %v2581
    %v2867 = vunpack.c.h.b16 %v2581
    %v2868 = vunpack.c.l.b16 %v2582
    %v2869 = vunpack.c.h.b16 %v2582
    %v2870 = vunpack.c.l.b16 %v2583
    %v2871 = vunpack.c.h.b16 %v2583
    %v2872 = vunpack.c.l.b16 %v2584
    %v2873 = vunpack.c.h.b16 %v2584
    %v2874 = vunpack.c.l.b16 %v2585
    %v2875 = vunpack.c.h.b16 %v2585
    %v2876 = vunpack.c.l.b16 %v2586
    %v2877 = vunpack.c.h.b16 %v2586
    %v2878 = vunpack.c.l.b16 %v2587
    %v2879 = vunpack.c.h.b16 %v2587
    %v2880 = vunpack.c.l.b16 %v2588
    %v2881 = vunpack.c.h.b16 %v2588
    %v2882 = vunpack.c.l.b16 %v2589
    %v2883 = vunpack.c.h.b16 %v2589
    %v2884 = vunpack.c.l.b16 %v2590
    %v2885 = vunpack.c.h.b16 %v2590
    %v2886 = vunpack.c.l.b16 %v2591
    %v2887 = vunpack.c.h.b16 %v2591
    %v2888 = vunpack.c.l.b16 %v2592
    %v2889 = vunpack.c.h.b16 %v2592
    %v2890 = vunpack.c.l.b16 %v2593
    %v2891 = vunpack.c.h.b16 %v2593
    %v2892 = vunpack.c.l.b16 %v2594
    %v2893 = vunpack.c.h.b16 %v2594
    %v2894 = vunpack.c.l.b16 %v2595
    %v2895 = vunpack.c.h.b16 %v2595
    %v2896 = vunpack.c.l.b16 %v2596
    %v2897 = vunpack.c.h.b16 %v2596
    %v2898 = vunpack.c.l.b16 %v2597
    %v2899 = vunpack.c.h.b16 %v2597
    %v2900 = vunpack.c.l.b16 %v2598
    %v2901 = vunpack.c.h.b16 %v2598
    %v2902 = vunpack.c.l.b16 %v2599
    %v2903 = vunpack.c.h.b16 %v2599
    %v2904 = vunpack.c.l.b16 %v2600
    %v2905 = vunpack.c.h.b16 %v2600
    %v2906 = vunpack.c.l.b16 %v2601
    %v2907 = vunpack.c.h.b16 %v2601
    %v2908 = vunpack.c.l.b16 %v2602
    %v2909 = vunpack.c.h.b16 %v2602
    %v2910 = vunpack.c.l.b16 %v2603
    %v2911 = vunpack.c.h.b16 %v2603
    %v2912 = vunpack.c.l.b16 %v2604
    %v2913 = vunpack.c.h.b16 %v2604
    %v2914 = vunpack.c.l.b16 %v2605
    %v2915 = vunpack.c.h.b16 %v2605
    %v2916 = vunpack.c.l.b16 %v2606
    %v2917 = vunpack.c.h.b16 %v2606
    %v2918 = vunpack.c.l.b16 %v2607
    %v2919 = vunpack.c.h.b16 %v2607
    %v2920 = vunpack.c.l.b16 %v2608
    %v2921 = vunpack.c.h.b16 %v2608
    %v2922 = vunpack.c.l.b16 %v2609
    %v2923 = vunpack.c.h.b16 %v2609
    %v2924 = vunpack.c.l.b16 %v2610
    %v2925 = vunpack.c.h.b16 %v2610
    %v2926 = vunpack.c.l.b16 %v2611
    %v2927 = vunpack.c.h.b16 %v2611
    %v2928 = vunpack.c.l.b16 %v2612
    %v2929 = vunpack.c.h.b16 %v2612
    %v2930 = vunpack.c.l.b16 %v2613
    %v2931 = vunpack.c.h.b16 %v2613
    %v2932 = vunpack.c.l.b16 %v2614
    %v2933 = vunpack.c.h.b16 %v2614
    %v2934 = vunpack.c.l.b16 %v2615
    %v2935 = vunpack.c.h.b16 %v2615
    %v2936 = vunpack.c.l.b16 %v2616
    %v2937 = vunpack.c.h.b16 %v2616
    %v2938 = vunpack.c.l.b16 %v2617
    %v2939 = vunpack.c.h.b16 %v2617
    %v2940 = vunpack.c.l.b16 %v2618
    %v2941 = vunpack.c.h.b16 %v2618
    %v2942 = vunpack.c.l.b16 %v2619
    %v2943 = vunpack.c.h.b16 %v2619
    %v2944 = vunpack.c.l.b16 %v2620
    %v2945 = vunpack.c.h.b16 %v2620
    %v2946 = vunpack.c.l.b16 %v2621
    %v2947 = vunpack.c.h.b16 %v2621
    %v2948 = vunpack.c.l.b16 %v2622
    %v2949 = vunpack.c.h.b16 %v2622
    %v2950 = vunpack.c.l.b16 %v2623
    %v2951 = vunpack.c.h.b16 %v2623
    %v2952 = vunpack.c.l.b16 %v2624
    %v2953 = vunpack.c.h.b16 %v2624
    %v2954 = vunpack.c.l.b16 %v2625
    %v2955 = vunpack.c.h.b16 %v2625
    %v2956 = vunpack.c.l.b16 %v2626
    %v2957 = vunpack.c.h.b16 %v2626
    %v2958 = vunpack.c.l.b16 %v2627
    %v2959 = vunpack.c.h.b16 %v2627
    %v2960 = vunpack.c.l.b16 %v2628
    %v2961 = vunpack.c.h.b16 %v2628
    %v2962 = vunpack.c.l.b16 %v2629
    %v2963 = vunpack.c.h.b16 %v2629
    %v2964 = vunpack.c.l.b16 %v2630
    %v2965 = vunpack.c.h.b16 %v2630
    %v2966 = vunpack.c.l.b16 %v2631
    %v2967 = vunpack.c.h.b16 %v2631
    %v2968 = vunpack.c.l.b16 %v2632
    %v2969 = vunpack.c.h.b16 %v2632
    %v2970 = vunpack.c.l.b16 %v2633
    %v2971 = vunpack.c.h.b16 %v2633
    %v2972 = vunpack.c.l.b16 %v2634
    %v2973 = vunpack.c.h.b16 %v2634
    %v2974 = vunpack.c.l.b16 %v2635
    %v2975 = vunpack.c.h.b16 %v2635
    %v2976 = vunpack.c.l.b16 %v2636
    %v2977 = vunpack.c.h.b16 %v2636
    %v2978 = vunpack.c.l.b16 %v2637
    %v2979 = vunpack.c.h.b16 %v2637
    %v2980 = vunpack.c.l.b16 %v2638
    %v2981 = vunpack.c.h.b16 %v2638
    %v2982 = vunpack.c.l.b16 %v2639
    %v2983 = vunpack.c.h.b16 %v2639
    %v2984 = vunpack.c.l.b16 %v2640
    %v2985 = vunpack.c.h.b16 %v2640
    %v2986 = vunpack.c.l.b16 %v2641
    %v2987 = vunpack.c.h.b16 %v2641
    %v2988 = vunpack.c.l.b16 %v2642
    %v2989 = vunpack.c.h.b16 %v2642
    %v2990 = vunpack.c.l.b16 %v2643
    %v2991 = vunpack.c.h.b16 %v2643
    %v2992 = vunpack.c.l.b16 %v2644
    %v2993 = vunpack.c.h.b16 %v2644
    %v2994 = vunpack.c.l.b16 %v2645
    %v2995 = vunpack.c.h.b16 %v2645
    %v2996 = vunpack.c.l.b16 %v2646
    %v2997 = vunpack.c.h.b16 %v2646
    %v2998 = vunpack.c.l.b16 %v2647
    %v2999 = vunpack.c.h.b16 %v2647
    %v3000 = vunpack.c.l.b16 %v2648
    %v3001 = vunpack.c.h.b16 %v2648
    %v3002 = vunpack.c.l.b16 %v2649
    %v3003 = vunpack.c.h.b16 %v2649
    %v3004 = vunpack.c.l.b16 %v2650
    %v3005 = vunpack.c.h.b16 %v2650
    %v3006 = vunpack.c.l.b16 %v2651
    %v3007 = vunpack.c.h.b16 %v2651
    %v3008 = vunpack.c.l.b16 %v2652
    %v3009 = vunpack.c.h.b16 %v2652
    %v3010 = vunpack.c.l.b16 %v2653
    %v3011 = vunpack.c.h.b16 %v2653
    %v3012 = vunpack.c.l.b16 %v2654
    %v3013 = vunpack.c.h.b16 %v2654
    %v3014 = vunpack.c.l.b16 %v2655
    %v3015 = vunpack.c.h.b16 %v2655
    %v3016 = vunpack.c.l.b16 %v2656
    %v3017 = vunpack.c.h.b16 %v2656
    %v3018 = vunpack.c.l.b16 %v2657
    %v3019 = vunpack.c.h.b16 %v2657
    %v3020 = vunpack.c.l.b16 %v2658
    %v3021 = vunpack.c.h.b16 %v2658
    %v3022 = vunpack.c.l.b16 %v2659
    %v3023 = vunpack.c.h.b16 %v2659
    %v3024 = vunpack.c.l.b16 %v2660
    %v3025 = vunpack.c.h.b16 %v2660
    %v3026 = vunpack.c.l.b16 %v2661
    %v3027 = vunpack.c.h.b16 %v2661
    %v3028 = vunpack.c.l.b16 %v2662
    %v3029 = vunpack.c.h.b16 %v2662
    %v3030 = vunpack.c.l.b16 %v2663
    %v3031 = vunpack.c.h.b16 %v2663
    %v3032 = vunpack.c.l.b16 %v2664
    %v3033 = vunpack.c.h.b16 %v2664
    %v3034 = vunpack.c.l.b16 %v2665
    %v3035 = vunpack.c.h.b16 %v2665
    %v3036 = vunpack.c.l.b16 %v2666
    %v3037 = vunpack.c.h.b16 %v2666
    %v3038 = vunpack.c.l.b16 %v2667
    %v3039 = vunpack.c.h.b16 %v2667
    %v3040 = vunpack.c.l.b16 %v2668
    %v3041 = vunpack.c.h.b16 %v2668
    %v3042 = vunpack.c.l.b16 %v2669
    %v3043 = vunpack.c.h.b16 %v2669
    %v3044 = vunpack.c.l.b16 %v2670
    %v3045 = vunpack.c.h.b16 %v2670
    %v3046 = vunpack.c.l.b16 %v2671
    %v3047 = vunpack.c.h.b16 %v2671
    %v3048 = vunpack.c.l.b16 %v2672
    %v3049 = vunpack.c.h.b16 %v2672
    %v3050 = vunpack.c.l.b16 %v2673
    %v3051 = vunpack.c.h.b16 %v2673
    %v3052 = vunpack.c.l.b16 %v2674
    %v3053 = vunpack.c.h.b16 %v2674
    %v3054 = vunpack.c.l.b16 %v2675
    %v3055 = vunpack.c.h.b16 %v2675
    %v3056 = vunpack.c.l.b16 %v2676
    %v3057 = vunpack.c.h.b16 %v2676
    %v3058 = vunpack.c.l.b16 %v2677
    %v3059 = vunpack.c.h.b16 %v2677
    %v3060 = vunpack.c.l.b16 %v2678
    %v3061 = vunpack.c.h.b16 %v2678
    %v3062 = vunpack.c.l.b16 %v2679
    %v3063 = vunpack.c.h.b16 %v2679
    %v3064 = vunpack.c.l.b16 %v2680
    %v3065 = vunpack.c.h.b16 %v2680
    %v3066 = vunpack.c.l.b16 %v2681
    %v3067 = vunpack.c.h.b16 %v2681
    %v3068 = vunpack.c.l.b16 %v2682
    %v3069 = vunpack.c.h.b16 %v2682
    %v3070 = vunpack.c.l.b16 %v2683
    %v3071 = vunpack.c.h.b16 %v2683
    %v3072 = vunpack.c.l.b16 %v2684
    %v3073 = vunpack.c.h.b16 %v2684
    %v3074 = vunpack.c.l.b16 %v2685
    %v3075 = vunpack.c.h.b16 %v2685
    %v3076 = vunpack.c.l.b16 %v2686
    %v3077 = vunpack.c.h.b16 %v2686
    %v3078 = vunpack.c.l.b16 %v2687
    %v3079 = vunpack.c.h.b16 %v2687
    %v3080 = vunpack.c.l.b16 %v2688
    %v3081 = vunpack.c.h.b16 %v2688
    %v3082 = vunpack.c.l.b16 %v2689
    %v3083 = vunpack.c.h.b16 %v2689
    %v3084 = vunpack.c.l.b16 %v2690
    %v3085 = vunpack.c.h.b16 %v2690
    %v3086 = vunpack.c.l.b16 %v2691
    %v3087 = vunpack.c.h.b16 %v2691
    %v3088 = vunpack.c.l.b16 %v2692
    %v3089 = vunpack.c.h.b16 %v2692
    %v3090 = vunpack.c.l.b16 %v2693
    %v3091 = vunpack.c.h.b16 %v2693
    %v3092 = vunpack.c.l.b16 %v2694
    %v3093 = vunpack.c.h.b16 %v2694
    %v3094 = vunpack.c.l.b16 %v2695
    %v3095 = vunpack.c.h.b16 %v2695
    %v3096 = vunpack.c.l.b16 %v2696
    %v3097 = vunpack.c.h.b16 %v2696
    %v3098 = vunpack.c.l.b16 %v2697
    %v3099 = vunpack.c.h.b16 %v2697
    %v3100 = vunpack.c.l.b16 %v2698
    %v3101 = vunpack.c.h.b16 %v2698
    %v3102 = vunpack.c.l.b16 %v2699
    %v3103 = vunpack.c.h.b16 %v2699
    %v3104 = vunpack.c.l.b16 %v2700
    %v3105 = vunpack.c.h.b16 %v2700
    %v3106 = vunpack.c.l.b16 %v2701
    %v3107 = vunpack.c.h.b16 %v2701
    %v3108 = vpack.c.b16 %v2856, %v2852
    %v3109 = vpack.c.b16 %v2857, %v2853
    %v3110 = vpack.c.b16 %v2858, %v2854
    %v3111 = vpack.c.b16 %v2859, %v2855
    %v3112 = vpack.c.b16 %v2864, %v2860
    %v3113 = vpack.c.b16 %v2865, %v2861
    %v3114 = vpack.c.b16 %v2866, %v2862
    %v3115 = vpack.c.b16 %v2867, %v2863
    %v3116 = vpack.c.b16 %v2872, %v2868
    %v3117 = vpack.c.b16 %v2873, %v2869
    %v3118 = vpack.c.b16 %v2874, %v2870
    %v3119 = vpack.c.b16 %v2875, %v2871
    %v3120 = vpack.c.b16 %v2880, %v2876
    %v3121 = vpack.c.b16 %v2881, %v2877
    %v3122 = vpack.c.b16 %v2882, %v2878
    %v3123 = vpack.c.b16 %v2883, %v2879
    %v3124 = vpack.c.b16 %v2888, %v2884
    %v3125 = vpack.c.b16 %v2889, %v2885
    %v3126 = vpack.c.b16 %v2890, %v2886
    %v3127 = vpack.c.b16 %v2891, %v2887
    %v3128 = vpack.c.b16 %v2896, %v2892
    %v3129 = vpack.c.b16 %v2897, %v2893
    %v3130 = vpack.c.b16 %v2898, %v2894
    %v3131 = vpack.c.b16 %v2899, %v2895
    %v3132 = vpack.c.b16 %v2904, %v2900
    %v3133 = vpack.c.b16 %v2905, %v2901
    %v3134 = vpack.c.b16 %v2906, %v2902
    %v3135 = vpack.c.b16 %v2907, %v2903
    %v3136 = vpack.c.b16 %v2912, %v2908
    %v3137 = vpack.c.b16 %v2913, %v2909
    %v3138 = vpack.c.b16 %v2914, %v2910
    %v3139 = vpack.c.b16 %v2915, %v2911
    %v3140 = vpack.c.b16 %v2920, %v2916
    %v3141 = vpack.c.b16 %v2921, %v2917
    %v3142 = vpack.c.b16 %v2922, %v2918
    %v3143 = vpack.c.b16 %v2923, %v2919
    %v3144 = vpack.c.b16 %v2928, %v2924
    %v3145 = vpack.c.b16 %v2929, %v2925
    %v3146 = vpack.c.b16 %v2930, %v2926
    %v3147 = vpack.c.b16 %v2931, %v2927
    %v3148 = vpack.c.b16 %v2936, %v2932
    %v3149 = vpack.c.b16 %v2937, %v2933
    %v3150 = vpack.c.b16 %v2938, %v2934
    %v3151 = vpack.c.b16 %v2939, %v2935
    %v3152 = vpack.c.b16 %v2944, %v2940
    %v3153 = vpack.c.b16 %v2945, %v2941
    %v3154 = vpack.c.b16 %v2946, %v2942
    %v3155 = vpack.c.b16 %v2947, %v2943
    %v3156 = vpack.c.b16 %v2952, %v2948
    %v3157 = vpack.c.b16 %v2953, %v2949
    %v3158 = vpack.c.b16 %v2954, %v2950
    %v3159 = vpack.c.b16 %v2955, %v2951
    %v3160 = vpack.c.b16 %v2960, %v2956
    %v3161 = vpack.c.b16 %v2961, %v2957
    %v3162 = vpack.c.b16 %v2962, %v2958
    %v3163 = vpack.c.b16 %v2963, %v2959
    %v3164 = vpack.c.b16 %v2968, %v2964
    %v3165 = vpack.c.b16 %v2969, %v2965
    %v3166 = vpack.c.b16 %v2970, %v2966
    %v3167 = vpack.c.b16 %v2971, %v2967
    %v3168 = vpack.c.b16 %v2976, %v2972
    %v3169 = vpack.c.b16 %v2977, %v2973
    %v3170 = vpack.c.b16 %v2978, %v2974
    %v3171 = vpack.c.b16 %v2979, %v2975
    %v3172 = vpack.c.b16 %v2984, %v2980
    %v3173 = vpack.c.b16 %v2985, %v2981
    %v3174 = vpack.c.b16 %v2986, %v2982
    %v3175 = vpack.c.b16 %v2987, %v2983
    %v3176 = vpack.c.b16 %v2992, %v2988
    %v3177 = vpack.c.b16 %v2993, %v2989
    %v3178 = vpack.c.b16 %v2994, %v2990
    %v3179 = vpack.c.b16 %v2995, %v2991
    %v3180 = vpack.c.b16 %v3000, %v2996
    %v3181 = vpack.c.b16 %v3001, %v2997
    %v3182 = vpack.c.b16 %v3002, %v2998
    %v3183 = vpack.c.b16 %v3003, %v2999
    %v3184 = vpack.c.b16 %v3008, %v3004
    %v3185 = vpack.c.b16 %v3009, %v3005
    %v3186 = vpack.c.b16 %v3010, %v3006
    %v3187 = vpack.c.b16 %v3011, %v3007
    %v3188 = vpack.c.b16 %v3016, %v3012
    %v3189 = vpack.c.b16 %v3017, %v3013
    %v3190 = vpack.c.b16 %v3018, %v3014
    %v3191 = vpack.c.b16 %v3019, %v3015
    %v3192 = vpack.c.b16 %v3024, %v3020
    %v3193 = vpack.c.b16 %v3025, %v3021
    %v3194 = vpack.c.b16 %v3026, %v3022
    %v3195 = vpack.c.b16 %v3027, %v3023
    %v3196 = vpack.c.b16 %v3032, %v3028
    %v3197 = vpack.c.b16 %v3033, %v3029
    %v3198 = vpack.c.b16 %v3034, %v3030
    %v3199 = vpack.c.b16 %v3035, %v3031
    %v3200 = vpack.c.b16 %v3040, %v3036
    %v3201 = vpack.c.b16 %v3041, %v3037
    %v3202 = vpack.c.b16 %v3042, %v3038
    %v3203 = vpack.c.b16 %v3043, %v3039
    %v3204 = vpack.c.b16 %v3048, %v3044
    %v3205 = vpack.c.b16 %v3049, %v3045
    %v3206 = vpack.c.b16 %v3050, %v3046
    %v3207 = vpack.c.b16 %v3051, %v3047
    %v3208 = vpack.c.b16 %v3056, %v3052
    %v3209 = vpack.c.b16 %v3057, %v3053
    %v3210 = vpack.c.b16 %v3058, %v3054
    %v3211 = vpack.c.b16 %v3059, %v3055
    %v3212 = vpack.c.b16 %v3064, %v3060
    %v3213 = vpack.c.b16 %v3065, %v3061
    %v3214 = vpack.c.b16 %v3066, %v3062
    %v3215 = vpack.c.b16 %v3067, %v3063
    %v3216 = vpack.c.b16 %v3072, %v3068
    %v3217 = vpack.c.b16 %v3073, %v3069
    %v3218 = vpack.c.b16 %v3074, %v3070
    %v3219 = vpack.c.b16 %v3075, %v3071
    %v3220 = vpack.c.b16 %v3080, %v3076
    %v3221 = vpack.c.b16 %v3081, %v3077
    %v3222 = vpack.c.b16 %v3082, %v3078
    %v3223 = vpack.c.b16 %v3083, %v3079
    %v3224 = vpack.c.b16 %v3088, %v3084
    %v3225 = vpack.c.b16 %v3089, %v3085
    %v3226 = vpack.c.b16 %v3090, %v3086
    %v3227 = vpack.c.b16 %v3091, %v3087
    %v3228 = vpack.c.b16 %v3096, %v3092
    %v3229 = vpack.c.b16 %v3097, %v3093
    %v3230 = vpack.c.b16 %v3098, %v3094
    %v3231 = vpack.c.b16 %v3099, %v3095
    %v3232 = vpack.c.b16 %v3104, %v3100
    %v3233 = vpack.c.b16 %v3105, %v3101
    %v3234 = vpack.c.b16 %v3106, %v3102
    %v3235 = vpack.c.b16 %v3107, %v3103
    %3364 = vmatprep.subr.bf16.mxu0 %v3109
    %3365 = vmatpush1.bf16.msra.mxu0 %v3108
    %3366 = vmatprep.subr.bf16.mxu0 %v3113
    %3367 = vmatpush1.bf16.msra.mxu0 %v3112
    %3368 = vmatprep.subr.bf16.mxu0 %v3117
    %3369 = vmatpush1.bf16.msra.mxu0 %v3116
    %3370 = vmatprep.subr.bf16.mxu0 %v3121
    %3371 = vmatpush1.bf16.msra.mxu0 %v3120
    %3372 = vmatprep.subr.bf16.mxu0 %v3125
    %3373 = vmatpush1.bf16.msra.mxu0 %v3124
    %3374 = vmatprep.subr.bf16.mxu0 %v3129
    %3375 = vmatpush1.bf16.msra.mxu0 %v3128
    %3376 = vmatprep.subr.bf16.mxu0 %v3133
    %3377 = vmatpush1.bf16.msra.mxu0 %v3132
    %3378 = vmatprep.subr.bf16.mxu0 %v3137
    %3379 = vmatpush1.bf16.msra.mxu0 %v3136
    %3380 = vmatprep.subr.bf16.mxu0 %v3141
    %3381 = vmatpush1.bf16.msra.mxu0 %v3140
    %3382 = vmatprep.subr.bf16.mxu0 %v3145
    %3383 = vmatpush1.bf16.msra.mxu0 %v3144
    %3384 = vmatprep.subr.bf16.mxu0 %v3149
    %3385 = vmatpush1.bf16.msra.mxu0 %v3148
    %3386 = vmatprep.subr.bf16.mxu0 %v3153
    %3387 = vmatpush1.bf16.msra.mxu0 %v3152
    %3388 = vmatprep.subr.bf16.mxu0 %v3157
    %3389 = vmatpush1.bf16.msra.mxu0 %v3156
    %3390 = vmatprep.subr.bf16.mxu0 %v3161
    %3391 = vmatpush1.bf16.msra.mxu0 %v3160
    %3392 = vmatprep.subr.bf16.mxu0 %v3165
    %3393 = vmatpush1.bf16.msra.mxu0 %v3164
    %3394 = vmatprep.subr.bf16.mxu0 %v3169
    %3395 = vmatpush1.bf16.msra.mxu0 %v3168
    %3396 = vmatprep.mubr.bf16.mxu0 %v2571
    %3397 = vmatmul.mubr.bf16.gmra.mrb[0].mxu0 %v2570
    %v3398 = vpop.f32.mrb[0].mxu0
    %v3399 = vadd.f32 %v2707, %v3398
    %v3400 = vpop.f32.mrb[0].mxu0
    %v3401 = vadd.f32 %v2711, %v3400
    %v3402 = vpop.f32.mrb[0].mxu0
    %v3403 = vpop.f32.mrb[0].mxu0
    %3404 = vdwg.mxu0
    %3405 = vmatprep.subr.bf16.mxu0 %v3173
    %3406 = vmatpush1.bf16.msra.mxu0 %v3172
    %3407 = vmatprep.subr.bf16.mxu0 %v3177
    %3408 = vmatpush1.bf16.msra.mxu0 %v3176
    %3409 = vmatprep.subr.bf16.mxu0 %v3181
    %3410 = vmatpush1.bf16.msra.mxu0 %v3180
    %3411 = vmatprep.subr.bf16.mxu0 %v3185
    %3412 = vmatpush1.bf16.msra.mxu0 %v3184
    %3413 = vmatprep.subr.bf16.mxu0 %v3189
    %3414 = vmatpush1.bf16.msra.mxu0 %v3188
    %3415 = vmatprep.subr.bf16.mxu0 %v3193
    %3416 = vmatpush1.bf16.msra.mxu0 %v3192
    %3417 = vmatprep.subr.bf16.mxu0 %v3197
    %3418 = vmatpush1.bf16.msra.mxu0 %v3196
    %3419 = vmatprep.subr.bf16.mxu0 %v3201
    %3420 = vmatpush1.bf16.msra.mxu0 %v3200
    %3421 = vmatprep.subr.bf16.mxu0 %v3205
    %3422 = vmatpush1.bf16.msra.mxu0 %v3204
    %3423 = vmatprep.subr.bf16.mxu0 %v3209
    %3424 = vmatpush1.bf16.msra.mxu0 %v3208
    %3425 = vmatprep.subr.bf16.mxu0 %v3213
    %3426 = vmatpush1.bf16.msra.mxu0 %v3212
    %3427 = vmatprep.subr.bf16.mxu0 %v3217
    %3428 = vmatpush1.bf16.msra.mxu0 %v3216
    %3429 = vmatprep.subr.bf16.mxu0 %v3221
    %3430 = vmatpush1.bf16.msra.mxu0 %v3220
    %3431 = vmatprep.subr.bf16.mxu0 %v3225
    %3432 = vmatpush1.bf16.msra.mxu0 %v3224
    %3433 = vmatprep.subr.bf16.mxu0 %v3229
    %3434 = vmatpush1.bf16.msra.mxu0 %v3228
    %3435 = vmatprep.subr.bf16.mxu0 %v3233
    %3436 = vmatpush1.bf16.msra.mxu0 %v3232
    %3437 = vmatprep.mubr.bf16.mxu0 %v2573
    %3438 = vmatmul.mubr.bf16.gmra.mrb[0].mxu0 %v2572
    %v3439 = vpop.f32.mrb[0].mxu0
    %v3440 = vadd.f32 %v3399, %v3439
    %v3441 = vpop.f32.mrb[0].mxu0
    %v3442 = vadd.f32 %v3401, %v3441
    %v3443 = vpop.f32.mrb[0].mxu0
    %v3444 = vpop.f32.mrb[0].mxu0
    %3445 = vdwg.mxu0
    %3446 = vmatprep.subr.bf16.mxu0 %v3111
    %3447 = vmatpush1.bf16.msra.mxu0 %v3110
    %3448 = vmatprep.subr.bf16.mxu0 %v3115
    %3449 = vmatpush1.bf16.msra.mxu0 %v3114
    %3450 = vmatprep.subr.bf16.mxu0 %v3119
    %3451 = vmatpush1.bf16.msra.mxu0 %v3118
    %3452 = vmatprep.subr.bf16.mxu0 %v3123
    %3453 = vmatpush1.bf16.msra.mxu0 %v3122
    %3454 = vmatprep.subr.bf16.mxu0 %v3127
    %3455 = vmatpush1.bf16.msra.mxu0 %v3126
    %3456 = vmatprep.subr.bf16.mxu0 %v3131
    %3457 = vmatpush1.bf16.msra.mxu0 %v3130
    %3458 = vmatprep.subr.bf16.mxu0 %v3135
    %3459 = vmatpush1.bf16.msra.mxu0 %v3134
    %3460 = vmatprep.subr.bf16.mxu0 %v3139
    %3461 = vmatpush1.bf16.msra.mxu0 %v3138
    %3462 = vmatprep.subr.bf16.mxu0 %v3143
    %3463 = vmatpush1.bf16.msra.mxu0 %v3142
    %3464 = vmatprep.subr.bf16.mxu0 %v3147
    %3465 = vmatpush1.bf16.msra.mxu0 %v3146
    %3466 = vmatprep.subr.bf16.mxu0 %v3151
    %3467 = vmatpush1.bf16.msra.mxu0 %v3150
    %3468 = vmatprep.subr.bf16.mxu0 %v3155
    %3469 = vmatpush1.bf16.msra.mxu0 %v3154
    %3470 = vmatprep.subr.bf16.mxu0 %v3159
    %3471 = vmatpush1.bf16.msra.mxu0 %v3158
    %3472 = vmatprep.subr.bf16.mxu0 %v3163
    %3473 = vmatpush1.bf16.msra.mxu0 %v3162
    %3474 = vmatprep.subr.bf16.mxu0 %v3167
    %3475 = vmatpush1.bf16.msra.mxu0 %v3166
    %3476 = vmatprep.subr.bf16.mxu0 %v3171
    %3477 = vmatpush1.bf16.msra.mxu0 %v3170
    %3478 = vmatprep.mubr.bf16.mxu0 %v2571
    %3479 = vmatmul.mubr.bf16.gmra.mrb[0].mxu0 %v2570
    %v3480 = vpop.f32.mrb[0].mxu0
    %v3481 = vadd.f32 %v2715, %v3480
    %v3482 = vpop.f32.mrb[0].mxu0
    %v3483 = vadd.f32 %v2719, %v3482
    %v3484 = vpop.f32.mrb[0].mxu0
    %v3485 = vpop.f32.mrb[0].mxu0
    %3486 = vdwg.mxu0
    %3487 = vmatprep.subr.bf16.mxu0 %v3175
    %3488 = vmatpush1.bf16.msra.mxu0 %v3174
    %3489 = vmatprep.subr.bf16.mxu0 %v3179
    %3490 = vmatpush1.bf16.msra.mxu0 %v3178
    %3491 = vmatprep.subr.bf16.mxu0 %v3183
    %3492 = vmatpush1.bf16.msra.mxu0 %v3182
    %3493 = vmatprep.subr.bf16.mxu0 %v3187
    %3494 = vmatpush1.bf16.msra.mxu0 %v3186
    %3495 = vmatprep.subr.bf16.mxu0 %v3191
    %3496 = vmatpush1.bf16.msra.mxu0 %v3190
    %3497 = vmatprep.subr.bf16.mxu0 %v3195
    %3498 = vmatpush1.bf16.msra.mxu0 %v3194
    %3499 = vmatprep.subr.bf16.mxu0 %v3199
    %3500 = vmatpush1.bf16.msra.mxu0 %v3198
    %3501 = vmatprep.subr.bf16.mxu0 %v3203
    %3502 = vmatpush1.bf16.msra.mxu0 %v3202
    %3503 = vmatprep.subr.bf16.mxu0 %v3207
    %3504 = vmatpush1.bf16.msra.mxu0 %v3206
    %3505 = vmatprep.subr.bf16.mxu0 %v3211
    %3506 = vmatpush1.bf16.msra.mxu0 %v3210
    %3507 = vmatprep.subr.bf16.mxu0 %v3215
    %3508 = vmatpush1.bf16.msra.mxu0 %v3214
    %3509 = vmatprep.subr.bf16.mxu0 %v3219
    %3510 = vmatpush1.bf16.msra.mxu0 %v3218
    %3511 = vmatprep.subr.bf16.mxu0 %v3223
    %3512 = vmatpush1.bf16.msra.mxu0 %v3222
    %3513 = vmatprep.subr.bf16.mxu0 %v3227
    %3514 = vmatpush1.bf16.msra.mxu0 %v3226
    %3515 = vmatprep.subr.bf16.mxu0 %v3231
    %3516 = vmatpush1.bf16.msra.mxu0 %v3230
    %3517 = vmatprep.subr.bf16.mxu0 %v3235
    %3518 = vmatpush1.bf16.msra.mxu0 %v3234
    %3519 = vmatprep.mubr.bf16.mxu0 %v2573
    %3520 = vmatmul.mubr.bf16.gmra.mrb[0].mxu0 %v2572
    %v3521 = vpop.f32.mrb[0].mxu0
    %v3522 = vadd.f32 %v3481, %v3521
    %v3523 = vpop.f32.mrb[0].mxu0
    %v3524 = vadd.f32 %v3483, %v3523
    %v3525 = vpop.f32.mrb[0].mxu0
    %v3526 = vpop.f32.mrb[0].mxu0
    %3527 = vdwg.mxu0
    %vm3528 = vcmp.gt.f32.partialorder %v3440, 0.0
    %vm3529 = vcmp.gt.f32.partialorder %v3442, 0.0
    %vm3530 = vcmp.gt.f32.partialorder %v3522, 0.0
    %vm3531 = vcmp.gt.f32.partialorder %v3524, 0.0
    %v3532 = vmul.f32 %v3440, 0.5
    %v3533 = vmul.f32 %v3442, 0.5
    %v3534 = vmul.f32 %v3522, 0.5
    %v3535 = vmul.f32 %v3524, 0.5
    %v3536 = vsel %vm3528, %v3440, %v3532
    %v3537 = vsel %vm3529, %v3442, %v3533
    %v3538 = vsel %vm3530, %v3522, %v3534
    %v3539 = vsel %vm3531, %v3524, %v3535
    %v3540 = vpack.c.bf16 %v3536, %v3536
    %v3541 = vpack.c.bf16 %v3537, %v3537
    %v3542 = vpack.c.bf16 %v3538, %v3538
    %v3543 = vpack.c.bf16 %v3539, %v3539
    %v3544 = vld [vmem:[#allocation21] sm:$0xff]
    %v3545 = vld [vmem:[#allocation21 + $0x8] sm:$0xff]
    %v3546 = vld [vmem:[#allocation21 + $0x10] sm:$0xff]
    %v3547 = vld [vmem:[#allocation21 + $0x18] sm:$0xff]
    %v3548 = vld [vmem:[#allocation21 + $0x20] sm:$0xff]
    %v3549 = vld [vmem:[#allocation21 + $0x28] sm:$0xff]
    %v3550 = vld [vmem:[#allocation21 + $0x30] sm:$0xff]
    %v3551 = vld [vmem:[#allocation21 + $0x38] sm:$0xff]
    %v3552 = vld [vmem:[#allocation21 + $0x40] sm:$0xff]
    %v3553 = vld [vmem:[#allocation21 + $0x48] sm:$0xff]
    %v3554 = vld [vmem:[#allocation21 + $0x50] sm:$0xff]
    %v3555 = vld [vmem:[#allocation21 + $0x58] sm:$0xff]
    %v3556 = vld [vmem:[#allocation21 + $0x60] sm:$0xff]
    %v3557 = vld [vmem:[#allocation21 + $0x68] sm:$0xff]
    %v3558 = vld [vmem:[#allocation21 + $0x70] sm:$0xff]
    %v3559 = vld [vmem:[#allocation21 + $0x78] sm:$0xff]
    %v3560 = vld [vmem:[#allocation21 + $0x80] sm:$0xff]
    %v3561 = vld [vmem:[#allocation21 + $0x88] sm:$0xff]
    %v3562 = vld [vmem:[#allocation21 + $0x90] sm:$0xff]
    %v3563 = vld [vmem:[#allocation21 + $0x98] sm:$0xff]
    %v3564 = vld [vmem:[#allocation21 + $0xa0] sm:$0xff]
    %v3565 = vld [vmem:[#allocation21 + $0xa8] sm:$0xff]
    %v3566 = vld [vmem:[#allocation21 + $0xb0] sm:$0xff]
    %v3567 = vld [vmem:[#allocation21 + $0xb8] sm:$0xff]
    %v3568 = vld [vmem:[#allocation21 + $0xc0] sm:$0xff]
    %v3569 = vld [vmem:[#allocation21 + $0xc8] sm:$0xff]
    %v3570 = vld [vmem:[#allocation21 + $0xd0] sm:$0xff]
    %v3571 = vld [vmem:[#allocation21 + $0xd8] sm:$0xff]
    %v3572 = vld [vmem:[#allocation21 + $0xe0] sm:$0xff]
    %v3573 = vld [vmem:[#allocation21 + $0xe8] sm:$0xff]
    %v3574 = vld [vmem:[#allocation21 + $0xf0] sm:$0xff]
    %v3575 = vld [vmem:[#allocation21 + $0xf8] sm:$0xff]
    %v3576 = vld [vmem:[#allocation21 + $0x100] sm:$0xff]
    %v3577 = vld [vmem:[#allocation21 + $0x108] sm:$0xff]
    %v3578 = vld [vmem:[#allocation21 + $0x110] sm:$0xff]
    %v3579 = vld [vmem:[#allocation21 + $0x118] sm:$0xff]
    %v3580 = vld [vmem:[#allocation21 + $0x120] sm:$0xff]
    %v3581 = vld [vmem:[#allocation21 + $0x128] sm:$0xff]
    %v3582 = vld [vmem:[#allocation21 + $0x130] sm:$0xff]
    %v3583 = vld [vmem:[#allocation21 + $0x138] sm:$0xff]
    %v3584 = vld [vmem:[#allocation21 + $0x140] sm:$0xff]
    %v3585 = vld [vmem:[#allocation21 + $0x148] sm:$0xff]
    %v3586 = vld [vmem:[#allocation21 + $0x150] sm:$0xff]
    %v3587 = vld [vmem:[#allocation21 + $0x158] sm:$0xff]
    %v3588 = vld [vmem:[#allocation21 + $0x160] sm:$0xff]
    %v3589 = vld [vmem:[#allocation21 + $0x168] sm:$0xff]
    %v3590 = vld [vmem:[#allocation21 + $0x170] sm:$0xff]
    %v3591 = vld [vmem:[#allocation21 + $0x178] sm:$0xff]
    %v3592 = vld [vmem:[#allocation21 + $0x180] sm:$0xff]
    %v3593 = vld [vmem:[#allocation21 + $0x188] sm:$0xff]
    %v3594 = vld [vmem:[#allocation21 + $0x190] sm:$0xff]
    %v3595 = vld [vmem:[#allocation21 + $0x198] sm:$0xff]
    %v3596 = vld [vmem:[#allocation21 + $0x1a0] sm:$0xff]
    %v3597 = vld [vmem:[#allocation21 + $0x1a8] sm:$0xff]
    %v3598 = vld [vmem:[#allocation21 + $0x1b0] sm:$0xff]
    %v3599 = vld [vmem:[#allocation21 + $0x1b8] sm:$0xff]
    %v3600 = vld [vmem:[#allocation21 + $0x1c0] sm:$0xff]
    %v3601 = vld [vmem:[#allocation21 + $0x1c8] sm:$0xff]
    %v3602 = vld [vmem:[#allocation21 + $0x1d0] sm:$0xff]
    %v3603 = vld [vmem:[#allocation21 + $0x1d8] sm:$0xff]
    %v3604 = vld [vmem:[#allocation21 + $0x1e0] sm:$0xff]
    %v3605 = vld [vmem:[#allocation21 + $0x1e8] sm:$0xff]
    %v3606 = vld [vmem:[#allocation21 + $0x1f0] sm:$0xff]
    %v3607 = vld [vmem:[#allocation21 + $0x1f8] sm:$0xff]
    %v3608 = vld [vmem:[%s16] sm:$0x3]
    %v3610 = vlaneseq
    %v3611 = vshrl.u32 %v3610, 7
    %v3612 = vsub.s32 0, %v3611
    %v3613 = vrot.slane %v3608, %v3612
    %v3614 = vlaneseq
    %v3615 = vshrl.u32 %v3614, 7
    %v3616 = vsub.s32 1, %v3615
    %v3617 = vrot.slane %v3608, %v3616
    %v3684 = vunpack.c.l.b16 %v3544
    %v3685 = vunpack.c.h.b16 %v3544
    %v3686 = vunpack.c.l.b16 %v3545
    %v3687 = vunpack.c.h.b16 %v3545
    %v3688 = vunpack.c.l.b16 %v3546
    %v3689 = vunpack.c.h.b16 %v3546
    %v3690 = vunpack.c.l.b16 %v3547
    %v3691 = vunpack.c.h.b16 %v3547
    %v3692 = vunpack.c.l.b16 %v3548
    %v3693 = vunpack.c.h.b16 %v3548
    %v3694 = vunpack.c.l.b16 %v3549
    %v3695 = vunpack.c.h.b16 %v3549
    %v3696 = vunpack.c.l.b16 %v3550
    %v3697 = vunpack.c.h.b16 %v3550
    %v3698 = vunpack.c.l.b16 %v3551
    %v3699 = vunpack.c.h.b16 %v3551
    %v3700 = vunpack.c.l.b16 %v3552
    %v3701 = vunpack.c.h.b16 %v3552
    %v3702 = vunpack.c.l.b16 %v3553
    %v3703 = vunpack.c.h.b16 %v3553
    %v3704 = vunpack.c.l.b16 %v3554
    %v3705 = vunpack.c.h.b16 %v3554
    %v3706 = vunpack.c.l.b16 %v3555
    %v3707 = vunpack.c.h.b16 %v3555
    %v3708 = vunpack.c.l.b16 %v3556
    %v3709 = vunpack.c.h.b16 %v3556
    %v3710 = vunpack.c.l.b16 %v3557
    %v3711 = vunpack.c.h.b16 %v3557
    %v3712 = vunpack.c.l.b16 %v3558
    %v3713 = vunpack.c.h.b16 %v3558
    %v3714 = vunpack.c.l.b16 %v3559
    %v3715 = vunpack.c.h.b16 %v3559
    %v3716 = vunpack.c.l.b16 %v3560
    %v3717 = vunpack.c.h.b16 %v3560
    %v3718 = vunpack.c.l.b16 %v3561
    %v3719 = vunpack.c.h.b16 %v3561
    %v3720 = vunpack.c.l.b16 %v3562
    %v3721 = vunpack.c.h.b16 %v3562
    %v3722 = vunpack.c.l.b16 %v3563
    %v3723 = vunpack.c.h.b16 %v3563
    %v3724 = vunpack.c.l.b16 %v3564
    %v3725 = vunpack.c.h.b16 %v3564
    %v3726 = vunpack.c.l.b16 %v3565
    %v3727 = vunpack.c.h.b16 %v3565
    %v3728 = vunpack.c.l.b16 %v3566
    %v3729 = vunpack.c.h.b16 %v3566
    %v3730 = vunpack.c.l.b16 %v3567
    %v3731 = vunpack.c.h.b16 %v3567
    %v3732 = vunpack.c.l.b16 %v3568
    %v3733 = vunpack.c.h.b16 %v3568
    %v3734 = vunpack.c.l.b16 %v3569
    %v3735 = vunpack.c.h.b16 %v3569
    %v3736 = vunpack.c.l.b16 %v3570
    %v3737 = vunpack.c.h.b16 %v3570
    %v3738 = vunpack.c.l.b16 %v3571
    %v3739 = vunpack.c.h.b16 %v3571
    %v3740 = vunpack.c.l.b16 %v3572
    %v3741 = vunpack.c.h.b16 %v3572
    %v3742 = vunpack.c.l.b16 %v3573
    %v3743 = vunpack.c.h.b16 %v3573
    %v3744 = vunpack.c.l.b16 %v3574
    %v3745 = vunpack.c.h.b16 %v3574
    %v3746 = vunpack.c.l.b16 %v3575
    %v3747 = vunpack.c.h.b16 %v3575
    %v3748 = vunpack.c.l.b16 %v3576
    %v3749 = vunpack.c.h.b16 %v3576
    %v3750 = vunpack.c.l.b16 %v3577
    %v3751 = vunpack.c.h.b16 %v3577
    %v3752 = vunpack.c.l.b16 %v3578
    %v3753 = vunpack.c.h.b16 %v3578
    %v3754 = vunpack.c.l.b16 %v3579
    %v3755 = vunpack.c.h.b16 %v3579
    %v3756 = vunpack.c.l.b16 %v3580
    %v3757 = vunpack.c.h.b16 %v3580
    %v3758 = vunpack.c.l.b16 %v3581
    %v3759 = vunpack.c.h.b16 %v3581
    %v3760 = vunpack.c.l.b16 %v3582
    %v3761 = vunpack.c.h.b16 %v3582
    %v3762 = vunpack.c.l.b16 %v3583
    %v3763 = vunpack.c.h.b16 %v3583
    %v3764 = vunpack.c.l.b16 %v3584
    %v3765 = vunpack.c.h.b16 %v3584
    %v3766 = vunpack.c.l.b16 %v3585
    %v3767 = vunpack.c.h.b16 %v3585
    %v3768 = vunpack.c.l.b16 %v3586
    %v3769 = vunpack.c.h.b16 %v3586
    %v3770 = vunpack.c.l.b16 %v3587
    %v3771 = vunpack.c.h.b16 %v3587
    %v3772 = vunpack.c.l.b16 %v3588
    %v3773 = vunpack.c.h.b16 %v3588
    %v3774 = vunpack.c.l.b16 %v3589
    %v3775 = vunpack.c.h.b16 %v3589
    %v3776 = vunpack.c.l.b16 %v3590
    %v3777 = vunpack.c.h.b16 %v3590
    %v3778 = vunpack.c.l.b16 %v3591
    %v3779 = vunpack.c.h.b16 %v3591
    %v3780 = vunpack.c.l.b16 %v3592
    %v3781 = vunpack.c.h.b16 %v3592
    %v3782 = vunpack.c.l.b16 %v3593
    %v3783 = vunpack.c.h.b16 %v3593
    %v3784 = vunpack.c.l.b16 %v3594
    %v3785 = vunpack.c.h.b16 %v3594
    %v3786 = vunpack.c.l.b16 %v3595
    %v3787 = vunpack.c.h.b16 %v3595
    %v3788 = vunpack.c.l.b16 %v3596
    %v3789 = vunpack.c.h.b16 %v3596
    %v3790 = vunpack.c.l.b16 %v3597
    %v3791 = vunpack.c.h.b16 %v3597
    %v3792 = vunpack.c.l.b16 %v3598
    %v3793 = vunpack.c.h.b16 %v3598
    %v3794 = vunpack.c.l.b16 %v3599
    %v3795 = vunpack.c.h.b16 %v3599
    %v3796 = vunpack.c.l.b16 %v3600
    %v3797 = vunpack.c.h.b16 %v3600
    %v3798 = vunpack.c.l.b16 %v3601
    %v3799 = vunpack.c.h.b16 %v3601
    %v3800 = vunpack.c.l.b16 %v3602
    %v3801 = vunpack.c.h.b16 %v3602
    %v3802 = vunpack.c.l.b16 %v3603
    %v3803 = vunpack.c.h.b16 %v3603
    %v3804 = vunpack.c.l.b16 %v3604
    %v3805 = vunpack.c.h.b16 %v3604
    %v3806 = vunpack.c.l.b16 %v3605
    %v3807 = vunpack.c.h.b16 %v3605
    %v3808 = vunpack.c.l.b16 %v3606
    %v3809 = vunpack.c.h.b16 %v3606
    %v3810 = vunpack.c.l.b16 %v3607
    %v3811 = vunpack.c.h.b16 %v3607
    %v3812 = vpack.c.b16 %v3686, %v3684
    %v3813 = vpack.c.b16 %v3687, %v3685
    %v3814 = vpack.c.b16 %v3690, %v3688
    %v3815 = vpack.c.b16 %v3691, %v3689
    %v3816 = vpack.c.b16 %v3694, %v3692
    %v3817 = vpack.c.b16 %v3695, %v3693
    %v3818 = vpack.c.b16 %v3698, %v3696
    %v3819 = vpack.c.b16 %v3699, %v3697
    %v3820 = vpack.c.b16 %v3702, %v3700
    %v3821 = vpack.c.b16 %v3703, %v3701
    %v3822 = vpack.c.b16 %v3706, %v3704
    %v3823 = vpack.c.b16 %v3707, %v3705
    %v3824 = vpack.c.b16 %v3710, %v3708
    %v3825 = vpack.c.b16 %v3711, %v3709
    %v3826 = vpack.c.b16 %v3714, %v3712
    %v3827 = vpack.c.b16 %v3715, %v3713
    %v3828 = vpack.c.b16 %v3718, %v3716
    %v3829 = vpack.c.b16 %v3719, %v3717
    %v3830 = vpack.c.b16 %v3722, %v3720
    %v3831 = vpack.c.b16 %v3723, %v3721
    %v3832 = vpack.c.b16 %v3726, %v3724
    %v3833 = vpack.c.b16 %v3727, %v3725
    %v3834 = vpack.c.b16 %v3730, %v3728
    %v3835 = vpack.c.b16 %v3731, %v3729
    %v3836 = vpack.c.b16 %v3734, %v3732
    %v3837 = vpack.c.b16 %v3735, %v3733
    %v3838 = vpack.c.b16 %v3738, %v3736
    %v3839 = vpack.c.b16 %v3739, %v3737
    %v3840 = vpack.c.b16 %v3742, %v3740
    %v3841 = vpack.c.b16 %v3743, %v3741
    %v3842 = vpack.c.b16 %v3746, %v3744
    %v3843 = vpack.c.b16 %v3747, %v3745
    %v3844 = vpack.c.b16 %v3750, %v3748
    %v3845 = vpack.c.b16 %v3751, %v3749
    %v3846 = vpack.c.b16 %v3754, %v3752
    %v3847 = vpack.c.b16 %v3755, %v3753
    %v3848 = vpack.c.b16 %v3758, %v3756
    %v3849 = vpack.c.b16 %v3759, %v3757
    %v3850 = vpack.c.b16 %v3762, %v3760
    %v3851 = vpack.c.b16 %v3763, %v3761
    %v3852 = vpack.c.b16 %v3766, %v3764
    %v3853 = vpack.c.b16 %v3767, %v3765
    %v3854 = vpack.c.b16 %v3770, %v3768
    %v3855 = vpack.c.b16 %v3771, %v3769
    %v3856 = vpack.c.b16 %v3774, %v3772
    %v3857 = vpack.c.b16 %v3775, %v3773
    %v3858 = vpack.c.b16 %v3778, %v3776
    %v3859 = vpack.c.b16 %v3779, %v3777
    %v3860 = vpack.c.b16 %v3782, %v3780
    %v3861 = vpack.c.b16 %v3783, %v3781
    %v3862 = vpack.c.b16 %v3786, %v3784
    %v3863 = vpack.c.b16 %v3787, %v3785
    %v3864 = vpack.c.b16 %v3790, %v3788
    %v3865 = vpack.c.b16 %v3791, %v3789
    %v3866 = vpack.c.b16 %v3794, %v3792
    %v3867 = vpack.c.b16 %v3795, %v3793
    %v3868 = vpack.c.b16 %v3798, %v3796
    %v3869 = vpack.c.b16 %v3799, %v3797
    %v3870 = vpack.c.b16 %v3802, %v3800
    %v3871 = vpack.c.b16 %v3803, %v3801
    %v3872 = vpack.c.b16 %v3806, %v3804
    %v3873 = vpack.c.b16 %v3807, %v3805
    %v3874 = vpack.c.b16 %v3810, %v3808
    %v3875 = vpack.c.b16 %v3811, %v3809
    %3940 = vmatprep.subr.bf16.mxu0 %v3813
    %3941 = vmatpush1.bf16.msra.mxu0 %v3812
    %3942 = vmatprep.subr.bf16.mxu0 %v3815
    %3943 = vmatpush1.bf16.msra.mxu0 %v3814
    %3944 = vmatprep.subr.bf16.mxu0 %v3817
    %3945 = vmatpush1.bf16.msra.mxu0 %v3816
    %3946 = vmatprep.subr.bf16.mxu0 %v3819
    %3947 = vmatpush1.bf16.msra.mxu0 %v3818
    %3948 = vmatprep.subr.bf16.mxu0 %v3821
    %3949 = vmatpush1.bf16.msra.mxu0 %v3820
    %3950 = vmatprep.subr.bf16.mxu0 %v3823
    %3951 = vmatpush1.bf16.msra.mxu0 %v3822
    %3952 = vmatprep.subr.bf16.mxu0 %v3825
    %3953 = vmatpush1.bf16.msra.mxu0 %v3824
    %3954 = vmatprep.subr.bf16.mxu0 %v3827
    %3955 = vmatpush1.bf16.msra.mxu0 %v3826
    %3956 = vmatprep.subr.bf16.mxu0 %v3829
    %3957 = vmatpush1.bf16.msra.mxu0 %v3828
    %3958 = vmatprep.subr.bf16.mxu0 %v3831
    %3959 = vmatpush1.bf16.msra.mxu0 %v3830
    %3960 = vmatprep.subr.bf16.mxu0 %v3833
    %3961 = vmatpush1.bf16.msra.mxu0 %v3832
    %3962 = vmatprep.subr.bf16.mxu0 %v3835
    %3963 = vmatpush1.bf16.msra.mxu0 %v3834
    %3964 = vmatprep.subr.bf16.mxu0 %v3837
    %3965 = vmatpush1.bf16.msra.mxu0 %v3836
    %3966 = vmatprep.subr.bf16.mxu0 %v3839
    %3967 = vmatpush1.bf16.msra.mxu0 %v3838
    %3968 = vmatprep.subr.bf16.mxu0 %v3841
    %3969 = vmatpush1.bf16.msra.mxu0 %v3840
    %3970 = vmatprep.subr.bf16.mxu0 %v3843
    %3971 = vmatpush1.bf16.msra.mxu0 %v3842
    %3972 = vmatprep.mubr.bf16.mxu0 %v3541
    %3973 = vmatmul.mubr.bf16.gmra.mrb[0].mxu0 %v3540
    %v3974 = vpop.f32.mrb[0].mxu0
    %v3975 = vadd.f32 %v3613, %v3974
    %v3976 = vpop.f32.mrb[0].mxu0
    %v3977 = vadd.f32 %v3617, %v3976
    %v3978 = vpop.f32.mrb[0].mxu0
    %v3979 = vpop.f32.mrb[0].mxu0
    %3980 = vdwg.mxu0
    %3981 = vmatprep.subr.bf16.mxu0 %v3845
    %3982 = vmatpush1.bf16.msra.mxu0 %v3844
    %3983 = vmatprep.subr.bf16.mxu0 %v3847
    %3984 = vmatpush1.bf16.msra.mxu0 %v3846
    %3985 = vmatprep.subr.bf16.mxu0 %v3849
    %3986 = vmatpush1.bf16.msra.mxu0 %v3848
    %3987 = vmatprep.subr.bf16.mxu0 %v3851
    %3988 = vmatpush1.bf16.msra.mxu0 %v3850
    %3989 = vmatprep.subr.bf16.mxu0 %v3853
    %3990 = vmatpush1.bf16.msra.mxu0 %v3852
    %3991 = vmatprep.subr.bf16.mxu0 %v3855
    %3992 = vmatpush1.bf16.msra.mxu0 %v3854
    %3993 = vmatprep.subr.bf16.mxu0 %v3857
    %3994 = vmatpush1.bf16.msra.mxu0 %v3856
    %3995 = vmatprep.subr.bf16.mxu0 %v3859
    %3996 = vmatpush1.bf16.msra.mxu0 %v3858
    %3997 = vmatprep.subr.bf16.mxu0 %v3861
    %3998 = vmatpush1.bf16.msra.mxu0 %v3860
    %3999 = vmatprep.subr.bf16.mxu0 %v3863
    %4000 = vmatpush1.bf16.msra.mxu0 %v3862
    %4001 = vmatprep.subr.bf16.mxu0 %v3865
    %4002 = vmatpush1.bf16.msra.mxu0 %v3864
    %4003 = vmatprep.subr.bf16.mxu0 %v3867
    %4004 = vmatpush1.bf16.msra.mxu0 %v3866
    %4005 = vmatprep.subr.bf16.mxu0 %v3869
    %4006 = vmatpush1.bf16.msra.mxu0 %v3868
    %4007 = vmatprep.subr.bf16.mxu0 %v3871
    %4008 = vmatpush1.bf16.msra.mxu0 %v3870
    %4009 = vmatprep.subr.bf16.mxu0 %v3873
    %4010 = vmatpush1.bf16.msra.mxu0 %v3872
    %4011 = vmatprep.subr.bf16.mxu0 %v3875
    %4012 = vmatpush1.bf16.msra.mxu0 %v3874
    %4013 = vmatprep.mubr.bf16.mxu0 %v3543
    %4014 = vmatmul.mubr.bf16.gmra.mrb[0].mxu0 %v3542
    %v4015 = vpop.f32.mrb[0].mxu0
    %v4016 = vadd.f32 %v3975, %v4015
    %v4017 = vpop.f32.mrb[0].mxu0
    %v4018 = vadd.f32 %v3977, %v4017
    %v4019 = vpop.f32.mrb[0].mxu0
    %v4020 = vpop.f32.mrb[0].mxu0
    %4021 = vdwg.mxu0
    %vm4022 = vcmp.gt.f32.partialorder %v4016, 0.0
    %vm4023 = vcmp.gt.f32.partialorder %v4018, 0.0
    %v4024 = vmul.f32 %v4016, 0.5
    %v4025 = vmul.f32 %v4018, 0.5
    %v4026 = vsel %vm4022, %v4016, %v4024
    %v4027 = vsel %vm4023, %v4018, %v4025
    %v4028 = vpack.c.bf16 %v4026, %v4026
    %v4029 = vpack.c.bf16 %v4027, %v4027
    %v4030 = vld [vmem:[%s17] sm:$0xf]
    %v4031 = vld [vmem:[%s17 + $0x4] sm:$0xf]
    %v4032 = vld [vmem:[%s17 + $0x8] sm:$0xf]
    %v4033 = vld [vmem:[%s17 + $0xc] sm:$0xf]
    %v4034 = vld [vmem:[%s17 + $0x10] sm:$0xf]
    %v4035 = vld [vmem:[%s17 + $0x14] sm:$0xf]
    %v4036 = vld [vmem:[%s17 + $0x18] sm:$0xf]
    %v4037 = vld [vmem:[%s17 + $0x1c] sm:$0xf]
    %v4038 = vld [vmem:[%s17 + $0x20] sm:$0xf]
    %v4039 = vld [vmem:[%s17 + $0x24] sm:$0xf]
    %v4040 = vld [vmem:[%s17 + $0x28] sm:$0xf]
    %v4041 = vld [vmem:[%s17 + $0x2c] sm:$0xf]
    %v4042 = vld [vmem:[%s17 + $0x30] sm:$0xf]
    %v4043 = vld [vmem:[%s17 + $0x34] sm:$0xf]
    %v4044 = vld [vmem:[%s17 + $0x38] sm:$0xf]
    %v4045 = vld [vmem:[%s17 + $0x3c] sm:$0xf]
    %v4046 = vld [vmem:[%s17 + $0x40] sm:$0xf]
    %v4047 = vld [vmem:[%s17 + $0x44] sm:$0xf]
    %v4048 = vld [vmem:[%s17 + $0x48] sm:$0xf]
    %v4049 = vld [vmem:[%s17 + $0x4c] sm:$0xf]
    %v4050 = vld [vmem:[%s17 + $0x50] sm:$0xf]
    %v4051 = vld [vmem:[%s17 + $0x54] sm:$0xf]
    %v4052 = vld [vmem:[%s17 + $0x58] sm:$0xf]
    %v4053 = vld [vmem:[%s17 + $0x5c] sm:$0xf]
    %v4054 = vld [vmem:[%s17 + $0x60] sm:$0xf]
    %v4055 = vld [vmem:[%s17 + $0x64] sm:$0xf]
    %v4056 = vld [vmem:[%s17 + $0x68] sm:$0xf]
    %v4057 = vld [vmem:[%s17 + $0x6c] sm:$0xf]
    %v4058 = vld [vmem:[%s17 + $0x70] sm:$0xf]
    %v4059 = vld [vmem:[%s17 + $0x74] sm:$0xf]
    %v4060 = vld [vmem:[%s17 + $0x78] sm:$0xf]
    %v4061 = vld [vmem:[%s17 + $0x7c] sm:$0xf]
    %v4062 = vld [vmem:[#allocation23] sm:$0x1]
    %v4064 = vlaneseq
    %v4065 = vshrl.u32 %v4064, 7
    %v4066 = vsub.s32 0, %v4065
    %v4067 = vrot.slane %v4062, %v4066
    %v4101 = vunpack.c.l.b16 %v4030
    %v4102 = vunpack.c.l.b16 %v4031
    %v4103 = vunpack.c.l.b16 %v4032
    %v4104 = vunpack.c.l.b16 %v4033
    %v4105 = vunpack.c.l.b16 %v4034
    %v4106 = vunpack.c.l.b16 %v4035
    %v4107 = vunpack.c.l.b16 %v4036
    %v4108 = vunpack.c.l.b16 %v4037
    %v4109 = vunpack.c.l.b16 %v4038
    %v4110 = vunpack.c.l.b16 %v4039
    %v4111 = vunpack.c.l.b16 %v4040
    %v4112 = vunpack.c.l.b16 %v4041
    %v4113 = vunpack.c.l.b16 %v4042
    %v4114 = vunpack.c.l.b16 %v4043
    %v4115 = vunpack.c.l.b16 %v4044
    %v4116 = vunpack.c.l.b16 %v4045
    %v4117 = vunpack.c.l.b16 %v4046
    %v4118 = vunpack.c.l.b16 %v4047
    %v4119 = vunpack.c.l.b16 %v4048
    %v4120 = vunpack.c.l.b16 %v4049
    %v4121 = vunpack.c.l.b16 %v4050
    %v4122 = vunpack.c.l.b16 %v4051
    %v4123 = vunpack.c.l.b16 %v4052
    %v4124 = vunpack.c.l.b16 %v4053
    %v4125 = vunpack.c.l.b16 %v4054
    %v4126 = vunpack.c.l.b16 %v4055
    %v4127 = vunpack.c.l.b16 %v4056
    %v4128 = vunpack.c.l.b16 %v4057
    %v4129 = vunpack.c.l.b16 %v4058
    %v4130 = vunpack.c.l.b16 %v4059
    %v4131 = vunpack.c.l.b16 %v4060
    %v4132 = vunpack.c.l.b16 %v4061
    %v4133 = vpack.c.b16 %v4102, %v4101
    %v4134 = vpack.c.b16 %v4104, %v4103
    %v4135 = vpack.c.b16 %v4106, %v4105
    %v4136 = vpack.c.b16 %v4108, %v4107
    %v4137 = vpack.c.b16 %v4110, %v4109
    %v4138 = vpack.c.b16 %v4112, %v4111
    %v4139 = vpack.c.b16 %v4114, %v4113
    %v4140 = vpack.c.b16 %v4116, %v4115
    %v4141 = vpack.c.b16 %v4118, %v4117
    %v4142 = vpack.c.b16 %v4120, %v4119
    %v4143 = vpack.c.b16 %v4122, %v4121
    %v4144 = vpack.c.b16 %v4124, %v4123
    %v4145 = vpack.c.b16 %v4126, %v4125
    %v4146 = vpack.c.b16 %v4128, %v4127
    %v4147 = vpack.c.b16 %v4130, %v4129
    %v4148 = vpack.c.b16 %v4132, %v4131
    %4165 = vmatprep.subr.bf16.mxu0 0
    %4166 = vmatpush1.bf16.msra.mxu0 %v4133
    %4167 = vmatprep.subr.bf16.mxu0 0
    %4168 = vmatpush1.bf16.msra.mxu0 %v4134
    %4169 = vmatprep.subr.bf16.mxu0 0
    %4170 = vmatpush1.bf16.msra.mxu0 %v4135
    %4171 = vmatprep.subr.bf16.mxu0 0
    %4172 = vmatpush1.bf16.msra.mxu0 %v4136
    %4173 = vmatprep.subr.bf16.mxu0 0
    %4174 = vmatpush1.bf16.msra.mxu0 %v4137
    %4175 = vmatprep.subr.bf16.mxu0 0
    %4176 = vmatpush1.bf16.msra.mxu0 %v4138
    %4177 = vmatprep.subr.bf16.mxu0 0
    %4178 = vmatpush1.bf16.msra.mxu0 %v4139
    %4179 = vmatprep.subr.bf16.mxu0 0
    %4180 = vmatpush1.bf16.msra.mxu0 %v4140
    %4181 = vmatprep.subr.bf16.mxu0 0
    %4182 = vmatpush1.bf16.msra.mxu0 %v4141
    %4183 = vmatprep.subr.bf16.mxu0 0
    %4184 = vmatpush1.bf16.msra.mxu0 %v4142
    %4185 = vmatprep.subr.bf16.mxu0 0
    %4186 = vmatpush1.bf16.msra.mxu0 %v4143
    %4187 = vmatprep.subr.bf16.mxu0 0
    %4188 = vmatpush1.bf16.msra.mxu0 %v4144
    %4189 = vmatprep.subr.bf16.mxu0 0
    %4190 = vmatpush1.bf16.msra.mxu0 %v4145
    %4191 = vmatprep.subr.bf16.mxu0 0
    %4192 = vmatpush1.bf16.msra.mxu0 %v4146
    %4193 = vmatprep.subr.bf16.mxu0 0
    %4194 = vmatpush1.bf16.msra.mxu0 %v4147
    %4195 = vmatprep.subr.bf16.mxu0 0
    %4196 = vmatpush1.bf16.msra.mxu0 %v4148
    %4197 = vmatprep.mubr.bf16.mxu0 %v4029
    %4198 = vmatmul.mubr.bf16.gmra.mrb[0].mxu0 %v4028
    %v4199 = vpop.f32.mrb[0].mxu0
    %v4200 = vadd.f32 %v4067, %v4199
    %v4201 = vpop.f32.mrb[0].mxu0
    %v4202 = vpop.f32.mrb[0].mxu0
    %v4203 = vpop.f32.mrb[0].mxu0
    %4204 = vdwg.mxu0
    %v4205 = vmax.f32 %v4200, 0.0
    %v4206 = vpack.c.bf16 %v4205, %v4205
    %v4207 = vld [vmem:[#allocation27] sm:$0xf]
    %v4208 = vld [vmem:[#allocation27 + $0x4] sm:$0xf]
    %v4209 = vld [vmem:[#allocation27 + $0x8] sm:$0xf]
    %v4210 = vld [vmem:[#allocation27 + $0xc] sm:$0xf]
    %v4211 = vld [vmem:[#allocation30] sm:$0x1]
    %v4213 = vlaneseq
    %v4214 = vshrl.u32 %v4213, 7
    %v4215 = vsub.s32 0, %v4214
    %v4216 = vrot.slane %v4211, %v4215
    %v4222 = vunpack.c.l.b16 %v4207
    %v4223 = vunpack.c.l.b16 %v4208
    %v4224 = vunpack.c.l.b16 %v4209
    %v4225 = vunpack.c.l.b16 %v4210
    %v4226 = vpack.c.b16 %v4223, %v4222
    %v4227 = vpack.c.b16 %v4225, %v4224
    %v4231 = vsel %vm349, %v4206, 0
    %4233 = vmatprep.subr.bf16.mxu0 0
    %4234 = vmatpush1.bf16.msra.mxu0 %v4226
    %4235 = vmatprep.subr.bf16.mxu0 0
    %4236 = vmatpush1.bf16.msra.mxu0 %v4227
    %4237 = vmatprep.subr.bf16.mxu0 0
    %4238 = vmatpush1.bf16.msra.mxu0 0
    %4239 = vmatprep.subr.bf16.mxu0 0
    %4240 = vmatpush1.bf16.msra.mxu0 0
    %4241 = vmatprep.subr.bf16.mxu0 0
    %4242 = vmatpush1.bf16.msra.mxu0 0
    %4243 = vmatprep.subr.bf16.mxu0 0
    %4244 = vmatpush1.bf16.msra.mxu0 0
    %4245 = vmatprep.subr.bf16.mxu0 0
    %4246 = vmatpush1.bf16.msra.mxu0 0
    %4247 = vmatprep.subr.bf16.mxu0 0
    %4248 = vmatpush1.bf16.msra.mxu0 0
    %4249 = vmatprep.subr.bf16.mxu0 0
    %4250 = vmatpush1.bf16.msra.mxu0 0
    %4251 = vmatprep.subr.bf16.mxu0 0
    %4252 = vmatpush1.bf16.msra.mxu0 0
    %4253 = vmatprep.subr.bf16.mxu0 0
    %4254 = vmatpush1.bf16.msra.mxu0 0
    %4255 = vmatprep.subr.bf16.mxu0 0
    %4256 = vmatpush1.bf16.msra.mxu0 0
    %4257 = vmatprep.subr.bf16.mxu0 0
    %4258 = vmatpush1.bf16.msra.mxu0 0
    %4259 = vmatprep.subr.bf16.mxu0 0
    %4260 = vmatpush1.bf16.msra.mxu0 0
    %4261 = vmatprep.subr.bf16.mxu0 0
    %4262 = vmatpush1.bf16.msra.mxu0 0
    %4263 = vmatprep.subr.bf16.mxu0 0
    %4264 = vmatpush1.bf16.msra.mxu0 0
    %4265 = vmatprep.mubr.bf16.mxu0 0
    %4266 = vmatmul.mubr.bf16.gmra.mrb[0].mxu0 %v4231
    %v4267 = vpop.f32.mrb[0].mxu0
    %v4268 = vadd.f32 %v4216, %v4267
    %v4269 = vpop.f32.mrb[0].mxu0
    %v4270 = vpop.f32.mrb[0].mxu0
    %v4271 = vpop.f32.mrb[0].mxu0
    %4272 = vdwg.mxu0
    %v4273 = vpack.c.bf16 %v340, %v340
    %v4274 = vld [vmem:[#allocation29] sm:$0xf]
    %v4275 = vld [vmem:[#allocation29 + $0x4] sm:$0xf]
    %v4276 = vld [vmem:[#allocation29 + $0x8] sm:$0xf]
    %v4277 = vld [vmem:[#allocation29 + $0xc] sm:$0xf]
    %v4278 = vld [vmem:[#allocation32] sm:$0x1]
    %v4280 = vlaneseq
    %v4281 = vshrl.u32 %v4280, 7
    %v4282 = vsub.s32 0, %v4281
    %v4283 = vrot.slane %v4278, %v4282
    %v4289 = vunpack.c.l.b16 %v4274
    %v4290 = vunpack.c.l.b16 %v4275
    %v4291 = vunpack.c.l.b16 %v4276
    %v4292 = vunpack.c.l.b16 %v4277
    %v4293 = vpack.c.b16 %v4290, %v4289
    %v4294 = vpack.c.b16 %v4292, %v4291
    %v4298 = vsel %vm349, %v4273, 0
    %4300 = vmatprep.subr.bf16.mxu0 0
    %4301 = vmatpush1.bf16.msra.mxu0 %v4293
    %4302 = vmatprep.subr.bf16.mxu0 0
    %4303 = vmatpush1.bf16.msra.mxu0 %v4294
    %4304 = vmatprep.subr.bf16.mxu0 0
    %4305 = vmatpush1.bf16.msra.mxu0 0
    %4306 = vmatprep.subr.bf16.mxu0 0
    %4307 = vmatpush1.bf16.msra.mxu0 0
    %4308 = vmatprep.subr.bf16.mxu0 0
    %4309 = vmatpush1.bf16.msra.mxu0 0
    %4310 = vmatprep.subr.bf16.mxu0 0
    %4311 = vmatpush1.bf16.msra.mxu0 0
    %4312 = vmatprep.subr.bf16.mxu0 0
    %4313 = vmatpush1.bf16.msra.mxu0 0
    %4314 = vmatprep.subr.bf16.mxu0 0
    %4315 = vmatpush1.bf16.msra.mxu0 0
    %4316 = vmatprep.subr.bf16.mxu0 0
    %4317 = vmatpush1.bf16.msra.mxu0 0
    %4318 = vmatprep.subr.bf16.mxu0 0
    %4319 = vmatpush1.bf16.msra.mxu0 0
    %4320 = vmatprep.subr.bf16.mxu0 0
    %4321 = vmatpush1.bf16.msra.mxu0 0
    %4322 = vmatprep.subr.bf16.mxu0 0
    %4323 = vmatpush1.bf16.msra.mxu0 0
    %4324 = vmatprep.subr.bf16.mxu0 0
    %4325 = vmatpush1.bf16.msra.mxu0 0
    %4326 = vmatprep.subr.bf16.mxu0 0
    %4327 = vmatpush1.bf16.msra.mxu0 0
    %4328 = vmatprep.subr.bf16.mxu0 0
    %4329 = vmatpush1.bf16.msra.mxu0 0
    %4330 = vmatprep.subr.bf16.mxu0 0
    %4331 = vmatpush1.bf16.msra.mxu0 0
    %4332 = vmatprep.mubr.bf16.mxu0 0
    %4333 = vmatmul.mubr.bf16.gmra.mrb[0].mxu0 %v4298
    %v4334 = vpop.f32.mrb[0].mxu0
    %v4335 = vadd.f32 %v4283, %v4334
    %v4336 = vpop.f32.mrb[0].mxu0
    %v4337 = vpop.f32.mrb[0].mxu0
    %v4338 = vpop.f32.mrb[0].mxu0
    %4339 = vdwg.mxu0
    %v4340 = vadd.f32 %v4268, %v4335
    %v4341 = vxor.u32 %v4340, 2147483648
    %v4342 = vmul.f32 %v4341, 1.442695
    %v4343 = vpow.pop %v4342
    %v4344 = vadd.f32 %v4343, 1.0
    %v4345 = vrcp.pop %v4344
    %v4346 = vmul.f32 1.0, %v4345
    %4348 = vrot.lane.b32.xlu0 %v4335, 64
    %v4349 = vpop.permute.xlu0 %4348
    %v4351 = vmul.f32 %v4346, %v4349
    %4353 = vrot.lane.b32.xlu0 %v4351, 64
    %v4354 = vpop.permute.xlu0 %4353
    %v4356 = vadd.f32 %v4268, %v4354
    %v4357 = vtanh.pop %v4356
    %v4358 = vsub.f32 1.0, %v4346
    %4360 = vrot.lane.b32.xlu0 %v4357, 96
    %v4361 = vpop.permute.xlu0 %4360
    %v4363 = vmul.f32 %v4358, %v4361
    %v4364 = vmul.f32 %v4346, %v343
    %v4365 = vadd.f32 %v4363, %v4364
    %4367 = vrot.lane.b32.xlu0 %v4365, 96
    %v4368 = vpop.permute.xlu0 %4367
    %4370 = vst.msk [vmem:[#allocation2] sm:$0xff] %vm349, %v4368
    %v4371 = vpack.c.bf16 %v4365, %v4365
    %v4372 = vld [vmem:[%s25] sm:$0xf]
    %v4373 = vld [vmem:[%s25 + $0x4] sm:$0xf]
    %v4374 = vld [vmem:[%s25 + $0x8] sm:$0xf]
    %v4375 = vld [vmem:[%s25 + $0xc] sm:$0xf]
    %v4376 = vld [vmem:[#allocation33] sm:$0x1]
    %v4378 = vlaneseq
    %v4379 = vshrl.u32 %v4378, 7
    %v4380 = vsub.s32 0, %v4379
    %v4381 = vrot.slane %v4376, %v4380
    %4384 = vrot.lane.b32.xlu0 %v4371, 96
    %v4385 = vpop.permute.xlu0 %4384
    %v4390 = vunpack.c.l.b16 %v4372
    %v4391 = vunpack.c.l.b16 %v4373
    %v4392 = vunpack.c.l.b16 %v4374
    %v4393 = vunpack.c.l.b16 %v4375
    %v4394 = vpack.c.b16 %v4391, %v4390
    %v4395 = vpack.c.b16 %v4393, %v4392
    %v4399 = vsel %vm349, %v4385, 0
    %4401 = vmatprep.subr.bf16.mxu0 0
    %4402 = vmatpush1.bf16.msra.mxu0 %v4394
    %4403 = vmatprep.subr.bf16.mxu0 0
    %4404 = vmatpush1.bf16.msra.mxu0 %v4395
    %4405 = vmatprep.subr.bf16.mxu0 0
    %4406 = vmatpush1.bf16.msra.mxu0 0
    %4407 = vmatprep.subr.bf16.mxu0 0
    %4408 = vmatpush1.bf16.msra.mxu0 0
    %4409 = vmatprep.subr.bf16.mxu0 0
    %4410 = vmatpush1.bf16.msra.mxu0 0
    %4411 = vmatprep.subr.bf16.mxu0 0
    %4412 = vmatpush1.bf16.msra.mxu0 0
    %4413 = vmatprep.subr.bf16.mxu0 0
    %4414 = vmatpush1.bf16.msra.mxu0 0
    %4415 = vmatprep.subr.bf16.mxu0 0
    %4416 = vmatpush1.bf16.msra.mxu0 0
    %4417 = vmatprep.subr.bf16.mxu0 0
    %4418 = vmatpush1.bf16.msra.mxu0 0
    %4419 = vmatprep.subr.bf16.mxu0 0
    %4420 = vmatpush1.bf16.msra.mxu0 0
    %4421 = vmatprep.subr.bf16.mxu0 0
    %4422 = vmatpush1.bf16.msra.mxu0 0
    %4423 = vmatprep.subr.bf16.mxu0 0
    %4424 = vmatpush1.bf16.msra.mxu0 0
    %4425 = vmatprep.subr.bf16.mxu0 0
    %4426 = vmatpush1.bf16.msra.mxu0 0
    %4427 = vmatprep.subr.bf16.mxu0 0
    %4428 = vmatpush1.bf16.msra.mxu0 0
    %4429 = vmatprep.subr.bf16.mxu0 0
    %4430 = vmatpush1.bf16.msra.mxu0 0
    %4431 = vmatprep.subr.bf16.mxu0 0
    %4432 = vmatpush1.bf16.msra.mxu0 0
    %4433 = vmatprep.mubr.bf16.mxu0 0
    %4434 = vmatmul.mubr.bf16.gmra.mrb[0].mxu0 %v4399
    %v4435 = vpop.f32.mrb[0].mxu0
    %v4436 = vadd.f32 %v4381, %v4435
    %v4437 = vpop.f32.mrb[0].mxu0
    %v4438 = vpop.f32.mrb[0].mxu0
    %v4439 = vpop.f32.mrb[0].mxu0
    %4440 = vdwg.mxu0
    %4442 = vrot.lane.b32.xlu0 %v2309, 32
    %v4443 = vpop.permute.xlu0 %4442
    %4446 = vrot.lane.b32.xlu0 %v4436, 64
    %v4447 = vpop.permute.xlu0 %4446
    %v4449 = vsel %vm349, %v4368, %v4443
    %v4450 = vsel %vm351, %v4449, %v4447
    %vm4451 = vcmask 588800
    %v4452 = vsel %vm4451, %v4450, 0.0
    %4453 = vst [vmem:[#allocation35] sm:$0xff] %v4452
    // Predicated region
    $region194: #{_decode_steps.1} parent=1 // pred_check
      _
    $region195: #{_decode_steps.1} parent=1 // pred_check_branch
      %4455 = sbr.rel (0) target = $region197
    $region196: #{_decode_steps.1} parent=1 // pred_region
      %s4457 = ssub.s32 128, 128
      %4458 = vsyncadd [#allocation5], %s4457
      %s4460 = sshll.u32 [#allocation35], 4
      %s4461 = int_to_ptr.vmem [resolvable:$true] %s4460
      %4463 = dma.vmem_to_hbm [thread:$0]  %s4461, 128, %s27, [#allocation5]
    $region197: #{_decode_steps.1} parent=1 // pred_fallthru
      _
    // Predicated region
    $region198: #{_decode_steps.1} parent=1 // pred_check
      _
    $region199: #{_decode_steps.1} parent=1 // pred_check_branch
      %4465 = sbr.rel (0) target = $region201
    $region200: #{_decode_steps.1} parent=1 // pred_region
      %4466 = dma.done [#allocation5], 128
    $region201: #{_decode_steps.1} parent=1 // pred_fallthru
      _
    %4467 = vsyncpa [#allocation4], 1
    %4468 = vsyncpa [#allocation7], 1
    %4469 = vsyncpa [#allocation10], 1
    %4470 = vsyncpa [#allocation13], 1
    %4471 = vsyncpa [#allocation16], 1
    %4472 = vsyncpa [#allocation19], 1
    %4473 = vsyncpa [#allocation22], 1
    %4474 = vsyncpa [#allocation25], 1
    %4475 = vsyncpa [#allocation28], 1
    %4476 = vsyncpa [#allocation31], 1
    %4477 = vsyncpa [#allocation34], 1
    %4478 = vsyncpa [#allocation5], 1

</llo_original>
